<compile_context>
chip_gen: v7x
topology: tpu7x:2x2x1
jax: 0.10.0
libtpu: 0.0.40
codegen_flags: <defaults>
</compile_context>

<pallas_src>
import jax
import jax.numpy as jnp
import numpy as np
from jax import lax
from jax.experimental import pallas as pl
from jax.experimental.pallas import tpu as pltpu

HIDDEN = 32        # hidden_size (small-shape stand-in for 256)
OUTPUT_SIZE = 64   # vocab size
MAX_LENGTH = 16    # attention window (small-shape stand-in for 40)

# Fused per-step projection:  [emb | h] (1, 2H)  @  w_fused (2H, PROJ_W), lane-padded to 256.
#   cols [0, ML)        : attention logits   (emb@W_attn_e + h@W_attn_h + b_attn)
#   cols [ML, ML+H)     : combine emb-part   (emb@W_comb_e + b_comb)
#   cols [ML+H, ML+5H)  : LSTM hh-part       (h@W_hh + b_ih + b_hh)
#   cols [ML+5H, 256)   : zero pad
PROJ_RAW = MAX_LENGTH + 5 * HIDDEN   # 176
PROJ_W = 256
assert PROJ_RAW <= PROJ_W

# Packed, lane-dense output-row layout: [logp(V) | attn_w(ML) | h(H) | c(H) | pad] = 256 lanes.
OUT_W = 256
_LOGP0 = 0
_ATTN0 = OUTPUT_SIZE
_H0 = _ATTN0 + MAX_LENGTH
_C0 = _H0 + HIDDEN
_PAD_W = OUT_W - (_C0 + HIDDEN)


def attn_decoder_seq_kernel(
    tok_ref,       # (T,) int32, SMEM scalar prefetch
    emb_tbl_ref,   # (V, H)       embedding table, VMEM resident
    enc_wca_ref,   # (ML, H)      encoder_outputs @ W_combine_applied (pre-folded)
    hc0_ref,       # (1, 2H)      initial [h | c]
    w_fused_ref,   # (2H, PROJ_W) fused [attn | combine-emb | lstm-hh] weight slab
    w_ih_ref,      # (H, 4H)      LSTM input-hidden weights (i, f, g, o)
    w_out_ref,     # (H, V)       output projection
    b_fused_ref,   # (1, PROJ_W)  [b_attn | b_comb | b_ih + b_hh | 0]
    b_out_ref,     # (1, V)
    out_ref,       # (T, OUT_W)   packed outputs, VMEM resident; single HBM writeback at end
    hseq_scr,      # (T, H)       VMEM scratch: per-step h for the batched output projection
):
    H, ML = HIDDEN, MAX_LENGTH
    T = out_ref.shape[0]

    # Resident operands, loaded once and reused across all T steps.
    w_fused = w_fused_ref[...]
    b_fused = b_fused_ref[...]
    w_ih = w_ih_ref[...]
    enc_wca = enc_wca_ref[...]

    h0 = hc0_ref[:, :H]
    c0 = hc0_ref[:, H:]

    def step(t, carry):
        h, c = carry
        tok = tok_ref[t]
        # In-kernel embedding gather from the VMEM-resident table (no per-step DMA).
        emb = emb_tbl_ref[pl.ds(tok, 1), :]                               # (1, H)

        # Single fused projection for emb- and h- parts (+ packed biases).
        lhs = jnp.concatenate([emb, h], axis=1)                           # (1, 2H)
        proj = jnp.dot(lhs, w_fused, preferred_element_type=jnp.float32) + b_fused

        # --- attention weights: exact softmax over MAX_LENGTH ---
        attn_logits = proj[:, :ML]
        m = jnp.max(attn_logits, axis=1, keepdims=True)
        e = jnp.exp(attn_logits - m)
        attn_w = e / jnp.sum(e, axis=1, keepdims=True)

        # --- attn_combine + relu (W_combine_applied pre-folded into enc_wca) ---
        comb = proj[:, ML:ML + H] + jnp.dot(attn_w, enc_wca,
                                            preferred_element_type=jnp.float32)
        x = jnp.maximum(comb, 0.0)

        # --- LSTM cell (gate order i, f, g, o); hh contribution + biases already in proj ---
        gates = jnp.dot(x, w_ih, preferred_element_type=jnp.float32) + proj[:, ML + H:ML + 5 * H]
        sg = jax.nn.sigmoid(gates)                                        # one full-vreg EUP pass
        g_g = jnp.tanh(gates[:, 2 * H:3 * H])                             # tanh only on g slice
        c1 = sg[:, H:2 * H] * c + sg[:, :H] * g_g
        h1 = sg[:, 3 * H:] * jnp.tanh(c1)

        # Per-step stores stay in VMEM; HBM writeback happens once at kernel end.
        hseq_scr[pl.ds(t, 1), :] = h1
        out_ref[pl.ds(t, 1), pl.ds(_ATTN0, ML)] = attn_w
        out_ref[pl.ds(t, 1), pl.ds(_C0, H)] = c1
        return (h1, c1)

    lax.fori_loop(0, T, step, (h0, c0), unroll=True)

    # Output projection + log_softmax hoisted out of the recurrence: one (T,H)@(H,V) matmul.
    hseq = hseq_scr[...]
    logits = jnp.dot(hseq, w_out_ref[...], preferred_element_type=jnp.float32) + b_out_ref[...]
    lm = jnp.max(logits, axis=1, keepdims=True)
    shifted = logits - lm
    logp = shifted - jnp.log(jnp.sum(jnp.exp(shifted), axis=1, keepdims=True))

    out_ref[:, _LOGP0:_LOGP0 + OUTPUT_SIZE] = logp
    out_ref[:, _H0:_H0 + H] = hseq
    out_ref[:, _C0 + H:] = jnp.zeros((T, _PAD_W), jnp.float32)


def init_params(key):
    """PyTorch-equivalent parameters, stored pre-transposed as (in_features, out_features)."""
    ks = jax.random.split(key, 10)
    s = 0.1
    return {
        "embedding": jax.random.normal(ks[0], (OUTPUT_SIZE, HIDDEN), jnp.float32) * s,
        # attn: Linear(2H -> ML), split [emb-part ; hidden-part]
        "w_attn_e": jax.random.normal(ks[1], (HIDDEN, MAX_LENGTH), jnp.float32) * s,
        "w_attn_h": jax.random.normal(ks[2], (HIDDEN, MAX_LENGTH), jnp.float32) * s,
        "b_attn": jax.random.normal(ks[3], (1, MAX_LENGTH), jnp.float32) * s,
        # attn_combine: Linear(2H -> H), split [emb-part ; applied-part]
        "w_comb_e": jax.random.normal(ks[4], (HIDDEN, HIDDEN), jnp.float32) * s,
        "w_comb_a": jax.random.normal(ks[5], (HIDDEN, HIDDEN), jnp.float32) * s,
        "b_comb": jax.random.normal(ks[6], (1, HIDDEN), jnp.float32) * s,
        # LSTM weights (H, 4H), PyTorch gate order i, f, g, o
        "w_ih": jax.random.normal(ks[7], (HIDDEN, 4 * HIDDEN), jnp.float32) * s,
        "b_ih": jnp.zeros((1, 4 * HIDDEN), jnp.float32),
        "w_hh": jax.random.normal(ks[8], (HIDDEN, 4 * HIDDEN), jnp.float32) * s,
        "b_hh": jnp.zeros((1, 4 * HIDDEN), jnp.float32),
        # out: Linear(H -> V)
        "w_out": jax.random.normal(ks[9], (HIDDEN, OUTPUT_SIZE), jnp.float32) * s,
        "b_out": jnp.zeros((1, OUTPUT_SIZE), jnp.float32),
    }


def pack_params(p):
    """One-time packing into the fused, lane-aligned slabs used by the kernel."""
    H, ML = HIDDEN, MAX_LENGTH
    w_fused = jnp.zeros((2 * H, PROJ_W), jnp.float32)
    w_fused = w_fused.at[:H, :ML].set(p["w_attn_e"])
    w_fused = w_fused.at[:H, ML:ML + H].set(p["w_comb_e"])
    w_fused = w_fused.at[H:, :ML].set(p["w_attn_h"])
    w_fused = w_fused.at[H:, ML + H:ML + 5 * H].set(p["w_hh"])

    b_fused = jnp.zeros((1, PROJ_W), jnp.float32)
    b_fused = b_fused.at[:, :ML].set(p["b_attn"])
    b_fused = b_fused.at[:, ML:ML + H].set(p["b_comb"])
    b_fused = b_fused.at[:, ML + H:ML + 5 * H].set(p["b_ih"] + p["b_hh"])

    return {
        "embedding": p["embedding"],   # (V, H)
        "w_fused": w_fused,            # (2H, PROJ_W)
        "w_ca": p["w_comb_a"],         # (H, H) — folded into encoder outputs in the wrapper
        "w_ih": p["w_ih"],             # (H, 4H)
        "w_out": p["w_out"],           # (H, V)
        "b_fused": b_fused,            # (1, PROJ_W)
        "b_out": p["b_out"],           # (1, V)
    }


def attn_decoder_decode(tokens, hidden, encoder_outputs, packed):
    """Run T chained decoder steps in one pallas_call (one grid step). tokens: (T,) int32."""
    T = tokens.shape[0]
    h0 = hidden[0].reshape(1, HIDDEN)
    c0 = hidden[1].reshape(1, HIDDEN)
    hc0 = jnp.concatenate([h0, c0], axis=1)                     # (1, 2H)
    # Fold W_combine_applied into the encoder outputs once per decode call.
    enc_wca = jnp.dot(encoder_outputs, packed["w_ca"])          # (ML, H)

    grid_spec = pltpu.PrefetchScalarGridSpec(
        num_scalar_prefetch=1,
        grid=(1,),   # whole recurrence lives inside the kernel (lax.fori_loop over T)
        in_specs=[
            # All operands are full-array blocks with constant index_maps -> DMA'd once, resident.
            pl.BlockSpec((OUTPUT_SIZE, HIDDEN), lambda i, toks: (0, 0)),          # embedding table
            pl.BlockSpec((MAX_LENGTH, HIDDEN), lambda i, toks: (0, 0)),           # enc @ W_ca
            pl.BlockSpec((1, 2 * HIDDEN), lambda i, toks: (0, 0)),                # [h0 | c0]
            pl.BlockSpec((2 * HIDDEN, PROJ_W), lambda i, toks: (0, 0)),           # fused weights
            pl.BlockSpec((HIDDEN, 4 * HIDDEN), lambda i, toks: (0, 0)),           # W_ih
            pl.BlockSpec((HIDDEN, OUTPUT_SIZE), lambda i, toks: (0, 0)),          # W_out
            pl.BlockSpec((1, PROJ_W), lambda i, toks: (0, 0)),                    # fused biases
            pl.BlockSpec((1, OUTPUT_SIZE), lambda i, toks: (0, 0)),               # b_out
        ],
        out_specs=pl.BlockSpec((T, OUT_W), lambda i, toks: (0, 0)),
        scratch_shapes=[pltpu.VMEM((T, HIDDEN), jnp.float32)],
    )

    out_slab = pl.pallas_call(
        attn_decoder_seq_kernel,
        out_shape=jax.ShapeDtypeStruct((T, OUT_W), jnp.float32),
        grid_spec=grid_spec,
        compiler_params=pltpu.CompilerParams(
            dimension_semantics=("arbitrary",)),   # sequential recurrence
    )(tokens.astype(jnp.int32), packed["embedding"], enc_wca, hc0,
      packed["w_fused"], packed["w_ih"], packed["w_out"],
      packed["b_fused"], packed["b_out"])

    logp_seq = out_slab[:, _LOGP0:_LOGP0 + OUTPUT_SIZE]          # (T, V)
    attn_seq = out_slab[:, _ATTN0:_ATTN0 + MAX_LENGTH]           # (T, ML)
    h_seq = out_slab[:, _H0:_H0 + HIDDEN]                        # (T, H)
    c_seq = out_slab[:, _C0:_C0 + HIDDEN]                        # (T, H)
    hidden_out = (h_seq[-1].reshape(1, 1, HIDDEN), c_seq[-1].reshape(1, 1, HIDDEN))
    return logp_seq, hidden_out, attn_seq


def attn_decoder_forward(token, hidden, encoder_outputs, packed):
    """Single decode step — matches the original AttnDecoderRNN.forward (eval mode)."""
    # TODO(synk): nn.Dropout(p=0.3) treated as eval-mode identity (training-time RNG not reproduced).
    tok = jnp.reshape(token, (1,)).astype(jnp.int32)
    logp, hidden_out, attn_w = attn_decoder_decode(tok, hidden, encoder_outputs, packed)
    return logp, hidden_out, attn_w


def reference_decode(tokens, hidden, encoder_outputs, p):
    """Pure-JAX per-step reference (literal module semantics), for correctness checking."""
    H = HIDDEN
    h = hidden[0].reshape(1, H)
    c = hidden[1].reshape(1, H)
    logps, attns = [], []
    for t in range(int(tokens.shape[0])):
        emb = p["embedding"][tokens[t]].reshape(1, H)
        attn_logits = emb @ p["w_attn_e"] + h @ p["w_attn_h"] + p["b_attn"]
        attn_w = jax.nn.softmax(attn_logits, axis=1)
        applied = attn_w @ encoder_outputs
        x = jax.nn.relu(emb @ p["w_comb_e"] + applied @ p["w_comb_a"] + p["b_comb"])
        gates = x @ p["w_ih"] + p["b_ih"] + h @ p["w_hh"] + p["b_hh"]
        i = jax.nn.sigmoid(gates[:, :H])
        f = jax.nn.sigmoid(gates[:, H:2 * H])
        g = jnp.tanh(gates[:, 2 * H:3 * H])
        o = jax.nn.sigmoid(gates[:, 3 * H:])
        c = f * c + i * g
        h = o * jnp.tanh(c)
        logits = h @ p["w_out"] + p["b_out"]
        logps.append(jax.nn.log_softmax(logits, axis=1))
        attns.append(attn_w)
    return (jnp.concatenate(logps, axis=0),
            (h.reshape(1, 1, H), c.reshape(1, 1, H)),
            jnp.concatenate(attns, axis=0))


if __name__ == "__main__":
    key = jax.random.PRNGKey(0)
    pkey, hkey, ckey, ekey, tkey = jax.random.split(key, 5)
    params = init_params(pkey)
    packed = pack_params(params)

    T = 8
    tokens = jax.random.randint(tkey, (T,), 0, OUTPUT_SIZE, dtype=jnp.int32)
    h0 = jax.random.normal(hkey, (1, 1, HIDDEN), jnp.float32) * 0.1
    c0 = jax.random.normal(ckey, (1, 1, HIDDEN), jnp.float32) * 0.1
    encoder_outputs = jax.random.normal(ekey, (MAX_LENGTH, HIDDEN), jnp.float32) * 0.1

    # Multi-step decode: whole sequence in one pallas_call / one grid step.
    decode = jax.jit(attn_decoder_decode)
    logp, (h1, c1), attn_w = decode(tokens, (h0, c0), encoder_outputs, packed)
    jax.block_until_ready((logp, h1, c1, attn_w))

    # Single-step entry (original module signature), first token only.
    logp1, (h1_s, c1_s), attn1 = attn_decoder_forward(tokens[0], (h0, c0), encoder_outputs, packed)
    jax.block_until_ready((logp1, h1_s, c1_s, attn1))

    # Pure-JAX reference (per-step module semantics).
    ref_logp, (ref_h, ref_c), ref_attn = reference_decode(tokens, (h0, c0), encoder_outputs, params)

    np.testing.assert_allclose(np.asarray(logp), np.asarray(ref_logp), atol=5e-3, rtol=5e-3)
    np.testing.assert_allclose(np.asarray(attn_w), np.asarray(ref_attn), atol=5e-3, rtol=5e-3)
    np.testing.assert_allclose(np.asarray(h1), np.asarray(ref_h), atol=5e-3, rtol=5e-3)
    np.testing.assert_allclose(np.asarray(c1), np.asarray(ref_c), atol=5e-3, rtol=5e-3)
    np.testing.assert_allclose(np.asarray(logp1), np.asarray(ref_logp[:1]), atol=5e-3, rtol=5e-3)

    assert logp.shape == (T, OUTPUT_SIZE) and attn_w.shape == (T, MAX_LENGTH)
    assert h1.shape == (1, 1, HIDDEN) and c1.shape == (1, 1, HIDDEN)
    assert np.allclose(np.exp(np.asarray(logp)).sum(axis=1), 1.0, atol=1e-3)
    assert np.allclose(np.asarray(attn_w).sum(axis=1), 1.0, atol=1e-3)

    # TODO(synk): multi-stream batching (B>=8 rows to fill vreg sublanes / MXU rows) and a leading
    # 'parallel' grid axis for v7x dual-TC are not implemented; the module spec is a single-stream,
    # batch=1 decoder step.
    print("KERNEL_OK")
</pallas_src>

<mosaic_0001>
module attributes {stable_mosaic.version = 11 : i64} {
  func.func @attn_decoder_seq_kernel(%arg0: i32, %arg1: memref<8xi32, #tpu.memory_space<smem>>, %arg2: memref<64x32xf32, #tpu.memory_space<vmem>>, %arg3: memref<16x32xf32, #tpu.memory_space<vmem>>, %arg4: memref<1x64xf32, #tpu.memory_space<vmem>>, %arg5: memref<64x256xf32, #tpu.memory_space<vmem>>, %arg6: memref<32x128xf32, #tpu.memory_space<vmem>>, %arg7: memref<32x64xf32, #tpu.memory_space<vmem>>, %arg8: memref<1x256xf32, #tpu.memory_space<vmem>>, %arg9: memref<1x64xf32, #tpu.memory_space<vmem>>, %arg10: memref<8x256xf32, #tpu.memory_space<vmem>>, %arg11: memref<8x32xf32, #tpu.memory_space<vmem>>) attributes {dimension_semantics = [#tpu.dimension_semantics<arbitrary>], iteration_bounds = array<i64: 1>, scalar_prefetch = 1 : i64, scratch_operands = 1 : i64, tpu.core_type = #tpu.core_type<tc>, window_params = [{pipeline_mode = #tpu.pipeline_mode<synchronous>, transform_indices = @transform_0, window_bounds = array<i64: 64, 32>}, {pipeline_mode = #tpu.pipeline_mode<synchronous>, transform_indices = @transform_1, window_bounds = array<i64: 16, 32>}, {pipeline_mode = #tpu.pipeline_mode<synchronous>, transform_indices = @transform_2, window_bounds = array<i64: 1, 64>}, {pipeline_mode = #tpu.pipeline_mode<synchronous>, transform_indices = @transform_3, window_bounds = array<i64: 64, 256>}, {pipeline_mode = #tpu.pipeline_mode<synchronous>, transform_indices = @transform_4, window_bounds = array<i64: 32, 128>}, {pipeline_mode = #tpu.pipeline_mode<synchronous>, transform_indices = @transform_5, window_bounds = array<i64: 32, 64>}, {pipeline_mode = #tpu.pipeline_mode<synchronous>, transform_indices = @transform_6, window_bounds = array<i64: 1, 256>}, {pipeline_mode = #tpu.pipeline_mode<synchronous>, transform_indices = @transform_7, window_bounds = array<i64: 1, 64>}, {pipeline_mode = #tpu.pipeline_mode<synchronous>, transform_indices = @transform_8, window_bounds = array<i64: 8, 256>}]} {
    %c0 = arith.constant 0 : index
    %c0_0 = arith.constant 0 : index
    %0 = vector.load %arg5[%c0, %c0_0] : memref<64x256xf32, #tpu.memory_space<vmem>>, vector<64x256xf32>
    %c0_1 = arith.constant 0 : index
    %c0_2 = arith.constant 0 : index
    %1 = vector.load %arg8[%c0_1, %c0_2] : memref<1x256xf32, #tpu.memory_space<vmem>>, vector<1x256xf32>
    %c0_3 = arith.constant 0 : index
    %c0_4 = arith.constant 0 : index
    %2 = vector.load %arg6[%c0_3, %c0_4] : memref<32x128xf32, #tpu.memory_space<vmem>>, vector<32x128xf32>
    %c0_5 = arith.constant 0 : index
    %c0_6 = arith.constant 0 : index
    %3 = vector.load %arg3[%c0_5, %c0_6] : memref<16x32xf32, #tpu.memory_space<vmem>>, vector<16x32xf32>
    %c0_7 = arith.constant 0 : index
    %c0_8 = arith.constant 0 : index
    %4 = vector.load %arg4[%c0_7, %c0_8] : memref<1x64xf32, #tpu.memory_space<vmem>>, vector<1x32xf32>
    %c0_9 = arith.constant 0 : index
    %c32 = arith.constant 32 : index
    %5 = vector.load %arg4[%c0_9, %c32] : memref<1x64xf32, #tpu.memory_space<vmem>>, vector<1x32xf32>
    %c0_i32 = arith.constant 0 : i32
    %6 = arith.index_cast %c0_i32 : i32 to index
    %7 = memref.load %arg1[%6] : memref<8xi32, #tpu.memory_space<smem>>
    %8 = arith.index_cast %7 : i32 to index
    %c0_10 = arith.constant 0 : index
    %9 = vector.load %arg2[%8, %c0_10] : memref<64x32xf32, #tpu.memory_space<vmem>>, vector<1x32xf32>
    %10 = tpu.concatenate %9, %4 in 1 : vector<1x32xf32>, vector<1x32xf32> -> vector<1x64xf32>
    %cst = arith.constant dense<0.000000e+00> : vector<1x256xf32>
    %11 = tpu.matmul %10, %0, %cst {dimension_numbers = #tpu.dot_dimension_numbers<[1], [0], [0], [1], [0, 0, 1, 1], [], []>} : vector<1x64xf32>, vector<64x256xf32>, vector<1x256xf32> -> vector<1x256xf32>
    %12 = arith.addf %11, %1 : vector<1x256xf32>
    %13 = vector.extract_strided_slice %12 {offsets = [0, 0], sizes = [1, 16], strides = [1, 1]} : vector<1x256xf32> to vector<1x16xf32>
    %cst_11 = arith.constant dense<0xFF800000> : vector<1xf32>
    %14 = vector.multi_reduction <maximumf>, %13, %cst_11 [1] : vector<1x16xf32> to vector<1xf32>
    %15 = vector.shape_cast %14 : vector<1xf32> to vector<1x1xf32>
    %16 = vector.broadcast %15 : vector<1x1xf32> to vector<1x16xf32>
    %17 = arith.subf %13, %16 : vector<1x16xf32>
    %18 = math.exp %17 : vector<1x16xf32>
    %cst_12 = arith.constant dense<0.000000e+00> : vector<1xf32>
    %19 = vector.multi_reduction <add>, %18, %cst_12 [1] : vector<1x16xf32> to vector<1xf32>
    %20 = vector.shape_cast %19 : vector<1xf32> to vector<1x1xf32>
    %21 = vector.broadcast %20 : vector<1x1xf32> to vector<1x16xf32>
    %22 = arith.divf %18, %21 : vector<1x16xf32>
    %23 = vector.extract_strided_slice %12 {offsets = [0, 16], sizes = [1, 32], strides = [1, 1]} : vector<1x256xf32> to vector<1x32xf32>
    %cst_13 = arith.constant dense<0.000000e+00> : vector<1x32xf32>
    %24 = tpu.matmul %22, %3, %cst_13 {dimension_numbers = #tpu.dot_dimension_numbers<[1], [0], [0], [1], [0, 0, 1, 1], [], []>} : vector<1x16xf32>, vector<16x32xf32>, vector<1x32xf32> -> vector<1x32xf32>
    %25 = arith.addf %23, %24 : vector<1x32xf32>
    %cst_14 = arith.constant 0.000000e+00 : f32
    %26 = vector.broadcast %cst_14 : f32 to vector<1x32xf32>
    %27 = arith.maximumf %25, %26 : vector<1x32xf32>
    %cst_15 = arith.constant dense<0.000000e+00> : vector<1x128xf32>
    %28 = tpu.matmul %27, %2, %cst_15 {dimension_numbers = #tpu.dot_dimension_numbers<[1], [0], [0], [1], [0, 0, 1, 1], [], []>} : vector<1x32xf32>, vector<32x128xf32>, vector<1x128xf32> -> vector<1x128xf32>
    %29 = vector.extract_strided_slice %12 {offsets = [0, 48], sizes = [1, 128], strides = [1, 1]} : vector<1x256xf32> to vector<1x128xf32>
    %30 = arith.addf %28, %29 : vector<1x128xf32>
    %31 = arith.negf %30 : vector<1x128xf32>
    %32 = math.exp %31 : vector<1x128xf32>
    %cst_16 = arith.constant 1.000000e+00 : f32
    %33 = vector.broadcast %cst_16 : f32 to vector<1x128xf32>
    %34 = arith.addf %33, %32 : vector<1x128xf32>
    %35 = arith.divf %33, %34 : vector<1x128xf32>
    %36 = vector.extract_strided_slice %30 {offsets = [0, 64], sizes = [1, 32], strides = [1, 1]} : vector<1x128xf32> to vector<1x32xf32>
    %37 = math.tanh %36 : vector<1x32xf32>
    %38 = vector.extract_strided_slice %35 {offsets = [0, 32], sizes = [1, 32], strides = [1, 1]} : vector<1x128xf32> to vector<1x32xf32>
    %39 = arith.mulf %38, %5 : vector<1x32xf32>
    %40 = vector.extract_strided_slice %35 {offsets = [0, 0], sizes = [1, 32], strides = [1, 1]} : vector<1x128xf32> to vector<1x32xf32>
    %41 = arith.mulf %40, %37 : vector<1x32xf32>
    %42 = arith.addf %39, %41 : vector<1x32xf32>
    %43 = vector.extract_strided_slice %35 {offsets = [0, 96], sizes = [1, 32], strides = [1, 1]} : vector<1x128xf32> to vector<1x32xf32>
    %44 = math.tanh %42 : vector<1x32xf32>
    %45 = arith.mulf %43, %44 : vector<1x32xf32>
    %46 = arith.index_cast %c0_i32 : i32 to index
    %c0_17 = arith.constant 0 : index
    %47 = vector.load %arg11[%46, %c0_17] : memref<8x32xf32, #tpu.memory_space<vmem>>, vector<1x32xf32>
    tpu.vector_store %arg11[%46, %c0_17], %45 {strides = array<i32>} : memref<8x32xf32, #tpu.memory_space<vmem>>, vector<1x32xf32>,
    %48 = arith.index_cast %c0_i32 : i32 to index
    %c64 = arith.constant 64 : index
    %49 = vector.load %arg10[%48, %c64] : memref<8x256xf32, #tpu.memory_space<vmem>>, vector<1x16xf32>
    tpu.vector_store %arg10[%48, %c64], %22 {strides = array<i32>} : memref<8x256xf32, #tpu.memory_space<vmem>>, vector<1x16xf32>,
    %50 = arith.index_cast %c0_i32 : i32 to index
    %c112 = arith.constant 112 : index
    %51 = vector.load %arg10[%50, %c112] : memref<8x256xf32, #tpu.memory_space<vmem>>, vector<1x32xf32>
    tpu.vector_store %arg10[%50, %c112], %42 {strides = array<i32>} : memref<8x256xf32, #tpu.memory_space<vmem>>, vector<1x32xf32>,
    %c1_i32 = arith.constant 1 : i32
    %52 = arith.index_cast %c1_i32 : i32 to index
    %53 = memref.load %arg1[%52] : memref<8xi32, #tpu.memory_space<smem>>
    %54 = arith.index_cast %53 : i32 to index
    %c0_18 = arith.constant 0 : index
    %55 = vector.load %arg2[%54, %c0_18] : memref<64x32xf32, #tpu.memory_space<vmem>>, vector<1x32xf32>
    %56 = tpu.concatenate %55, %45 in 1 : vector<1x32xf32>, vector<1x32xf32> -> vector<1x64xf32>
    %cst_19 = arith.constant dense<0.000000e+00> : vector<1x256xf32>
    %57 = tpu.matmul %56, %0, %cst_19 {dimension_numbers = #tpu.dot_dimension_numbers<[1], [0], [0], [1], [0, 0, 1, 1], [], []>} : vector<1x64xf32>, vector<64x256xf32>, vector<1x256xf32> -> vector<1x256xf32>
    %58 = arith.addf %57, %1 : vector<1x256xf32>
    %59 = vector.extract_strided_slice %58 {offsets = [0, 0], sizes = [1, 16], strides = [1, 1]} : vector<1x256xf32> to vector<1x16xf32>
    %cst_20 = arith.constant dense<0xFF800000> : vector<1xf32>
    %60 = vector.multi_reduction <maximumf>, %59, %cst_20 [1] : vector<1x16xf32> to vector<1xf32>
    %61 = vector.shape_cast %60 : vector<1xf32> to vector<1x1xf32>
    %62 = vector.broadcast %61 : vector<1x1xf32> to vector<1x16xf32>
    %63 = arith.subf %59, %62 : vector<1x16xf32>
    %64 = math.exp %63 : vector<1x16xf32>
    %cst_21 = arith.constant dense<0.000000e+00> : vector<1xf32>
    %65 = vector.multi_reduction <add>, %64, %cst_21 [1] : vector<1x16xf32> to vector<1xf32>
    %66 = vector.shape_cast %65 : vector<1xf32> to vector<1x1xf32>
    %67 = vector.broadcast %66 : vector<1x1xf32> to vector<1x16xf32>
    %68 = arith.divf %64, %67 : vector<1x16xf32>
    %69 = vector.extract_strided_slice %58 {offsets = [0, 16], sizes = [1, 32], strides = [1, 1]} : vector<1x256xf32> to vector<1x32xf32>
    %cst_22 = arith.constant dense<0.000000e+00> : vector<1x32xf32>
    %70 = tpu.matmul %68, %3, %cst_22 {dimension_numbers = #tpu.dot_dimension_numbers<[1], [0], [0], [1], [0, 0, 1, 1], [], []>} : vector<1x16xf32>, vector<16x32xf32>, vector<1x32xf32> -> vector<1x32xf32>
    %71 = arith.addf %69, %70 : vector<1x32xf32>
    %cst_23 = arith.constant 0.000000e+00 : f32
    %72 = vector.broadcast %cst_23 : f32 to vector<1x32xf32>
    %73 = arith.maximumf %71, %72 : vector<1x32xf32>
    %cst_24 = arith.constant dense<0.000000e+00> : vector<1x128xf32>
    %74 = tpu.matmul %73, %2, %cst_24 {dimension_numbers = #tpu.dot_dimension_numbers<[1], [0], [0], [1], [0, 0, 1, 1], [], []>} : vector<1x32xf32>, vector<32x128xf32>, vector<1x128xf32> -> vector<1x128xf32>
    %75 = vector.extract_strided_slice %58 {offsets = [0, 48], sizes = [1, 128], strides = [1, 1]} : vector<1x256xf32> to vector<1x128xf32>
    %76 = arith.addf %74, %75 : vector<1x128xf32>
    %77 = arith.negf %76 : vector<1x128xf32>
    %78 = math.exp %77 : vector<1x128xf32>
    %cst_25 = arith.constant 1.000000e+00 : f32
    %79 = vector.broadcast %cst_25 : f32 to vector<1x128xf32>
    %80 = arith.addf %79, %78 : vector<1x128xf32>
    %81 = arith.divf %79, %80 : vector<1x128xf32>
    %82 = vector.extract_strided_slice %76 {offsets = [0, 64], sizes = [1, 32], strides = [1, 1]} : vector<1x128xf32> to vector<1x32xf32>
    %83 = math.tanh %82 : vector<1x32xf32>
    %84 = vector.extract_strided_slice %81 {offsets = [0, 32], sizes = [1, 32], strides = [1, 1]} : vector<1x128xf32> to vector<1x32xf32>
    %85 = arith.mulf %84, %42 : vector<1x32xf32>
    %86 = vector.extract_strided_slice %81 {offsets = [0, 0], sizes = [1, 32], strides = [1, 1]} : vector<1x128xf32> to vector<1x32xf32>
    %87 = arith.mulf %86, %83 : vector<1x32xf32>
    %88 = arith.addf %85, %87 : vector<1x32xf32>
    %89 = vector.extract_strided_slice %81 {offsets = [0, 96], sizes = [1, 32], strides = [1, 1]} : vector<1x128xf32> to vector<1x32xf32>
    %90 = math.tanh %88 : vector<1x32xf32>
    %91 = arith.mulf %89, %90 : vector<1x32xf32>
    %92 = arith.index_cast %c1_i32 : i32 to index
    %c0_26 = arith.constant 0 : index
    %93 = vector.load %arg11[%92, %c0_26] : memref<8x32xf32, #tpu.memory_space<vmem>>, vector<1x32xf32>
    tpu.vector_store %arg11[%92, %c0_26], %91 {strides = array<i32>} : memref<8x32xf32, #tpu.memory_space<vmem>>, vector<1x32xf32>,
    %94 = arith.index_cast %c1_i32 : i32 to index
    %c64_27 = arith.constant 64 : index
    %95 = vector.load %arg10[%94, %c64_27] : memref<8x256xf32, #tpu.memory_space<vmem>>, vector<1x16xf32>
    tpu.vector_store %arg10[%94, %c64_27], %68 {strides = array<i32>} : memref<8x256xf32, #tpu.memory_space<vmem>>, vector<1x16xf32>,
    %96 = arith.index_cast %c1_i32 : i32 to index
    %c112_28 = arith.constant 112 : index
    %97 = vector.load %arg10[%96, %c112_28] : memref<8x256xf32, #tpu.memory_space<vmem>>, vector<1x32xf32>
    tpu.vector_store %arg10[%96, %c112_28], %88 {strides = array<i32>} : memref<8x256xf32, #tpu.memory_space<vmem>>, vector<1x32xf32>,
    %c2_i32 = arith.constant 2 : i32
    %98 = arith.index_cast %c2_i32 : i32 to index
    %99 = memref.load %arg1[%98] : memref<8xi32, #tpu.memory_space<smem>>
    %100 = arith.index_cast %99 : i32 to index
    %c0_29 = arith.constant 0 : index
    %101 = vector.load %arg2[%100, %c0_29] : memref<64x32xf32, #tpu.memory_space<vmem>>, vector<1x32xf32>
    %102 = tpu.concatenate %101, %91 in 1 : vector<1x32xf32>, vector<1x32xf32> -> vector<1x64xf32>
    %cst_30 = arith.constant dense<0.000000e+00> : vector<1x256xf32>
    %103 = tpu.matmul %102, %0, %cst_30 {dimension_numbers = #tpu.dot_dimension_numbers<[1], [0], [0], [1], [0, 0, 1, 1], [], []>} : vector<1x64xf32>, vector<64x256xf32>, vector<1x256xf32> -> vector<1x256xf32>
    %104 = arith.addf %103, %1 : vector<1x256xf32>
    %105 = vector.extract_strided_slice %104 {offsets = [0, 0], sizes = [1, 16], strides = [1, 1]} : vector<1x256xf32> to vector<1x16xf32>
    %cst_31 = arith.constant dense<0xFF800000> : vector<1xf32>
    %106 = vector.multi_reduction <maximumf>, %105, %cst_31 [1] : vector<1x16xf32> to vector<1xf32>
    %107 = vector.shape_cast %106 : vector<1xf32> to vector<1x1xf32>
    %108 = vector.broadcast %107 : vector<1x1xf32> to vector<1x16xf32>
    %109 = arith.subf %105, %108 : vector<1x16xf32>
    %110 = math.exp %109 : vector<1x16xf32>
    %cst_32 = arith.constant dense<0.000000e+00> : vector<1xf32>
    %111 = vector.multi_reduction <add>, %110, %cst_32 [1] : vector<1x16xf32> to vector<1xf32>
    %112 = vector.shape_cast %111 : vector<1xf32> to vector<1x1xf32>
    %113 = vector.broadcast %112 : vector<1x1xf32> to vector<1x16xf32>
    %114 = arith.divf %110, %113 : vector<1x16xf32>
    %115 = vector.extract_strided_slice %104 {offsets = [0, 16], sizes = [1, 32], strides = [1, 1]} : vector<1x256xf32> to vector<1x32xf32>
    %cst_33 = arith.constant dense<0.000000e+00> : vector<1x32xf32>
    %116 = tpu.matmul %114, %3, %cst_33 {dimension_numbers = #tpu.dot_dimension_numbers<[1], [0], [0], [1], [0, 0, 1, 1], [], []>} : vector<1x16xf32>, vector<16x32xf32>, vector<1x32xf32> -> vector<1x32xf32>
    %117 = arith.addf %115, %116 : vector<1x32xf32>
    %cst_34 = arith.constant 0.000000e+00 : f32
    %118 = vector.broadcast %cst_34 : f32 to vector<1x32xf32>
    %119 = arith.maximumf %117, %118 : vector<1x32xf32>
    %cst_35 = arith.constant dense<0.000000e+00> : vector<1x128xf32>
    %120 = tpu.matmul %119, %2, %cst_35 {dimension_numbers = #tpu.dot_dimension_numbers<[1], [0], [0], [1], [0, 0, 1, 1], [], []>} : vector<1x32xf32>, vector<32x128xf32>, vector<1x128xf32> -> vector<1x128xf32>
    %121 = vector.extract_strided_slice %104 {offsets = [0, 48], sizes = [1, 128], strides = [1, 1]} : vector<1x256xf32> to vector<1x128xf32>
    %122 = arith.addf %120, %121 : vector<1x128xf32>
    %123 = arith.negf %122 : vector<1x128xf32>
    %124 = math.exp %123 : vector<1x128xf32>
    %cst_36 = arith.constant 1.000000e+00 : f32
    %125 = vector.broadcast %cst_36 : f32 to vector<1x128xf32>
    %126 = arith.addf %125, %124 : vector<1x128xf32>
    %127 = arith.divf %125, %126 : vector<1x128xf32>
    %128 = vector.extract_strided_slice %122 {offsets = [0, 64], sizes = [1, 32], strides = [1, 1]} : vector<1x128xf32> to vector<1x32xf32>
    %129 = math.tanh %128 : vector<1x32xf32>
    %130 = vector.extract_strided_slice %127 {offsets = [0, 32], sizes = [1, 32], strides = [1, 1]} : vector<1x128xf32> to vector<1x32xf32>
    %131 = arith.mulf %130, %88 : vector<1x32xf32>
    %132 = vector.extract_strided_slice %127 {offsets = [0, 0], sizes = [1, 32], strides = [1, 1]} : vector<1x128xf32> to vector<1x32xf32>
    %133 = arith.mulf %132, %129 : vector<1x32xf32>
    %134 = arith.addf %131, %133 : vector<1x32xf32>
    %135 = vector.extract_strided_slice %127 {offsets = [0, 96], sizes = [1, 32], strides = [1, 1]} : vector<1x128xf32> to vector<1x32xf32>
    %136 = math.tanh %134 : vector<1x32xf32>
    %137 = arith.mulf %135, %136 : vector<1x32xf32>
    %138 = arith.index_cast %c2_i32 : i32 to index
    %c0_37 = arith.constant 0 : index
    %139 = vector.load %arg11[%138, %c0_37] : memref<8x32xf32, #tpu.memory_space<vmem>>, vector<1x32xf32>
    tpu.vector_store %arg11[%138, %c0_37], %137 {strides = array<i32>} : memref<8x32xf32, #tpu.memory_space<vmem>>, vector<1x32xf32>,
    %140 = arith.index_cast %c2_i32 : i32 to index
    %c64_38 = arith.constant 64 : index
    %141 = vector.load %arg10[%140, %c64_38] : memref<8x256xf32, #tpu.memory_space<vmem>>, vector<1x16xf32>
    tpu.vector_store %arg10[%140, %c64_38], %114 {strides = array<i32>} : memref<8x256xf32, #tpu.memory_space<vmem>>, vector<1x16xf32>,
    %142 = arith.index_cast %c2_i32 : i32 to index
    %c112_39 = arith.constant 112 : index
    %143 = vector.load %arg10[%142, %c112_39] : memref<8x256xf32, #tpu.memory_space<vmem>>, vector<1x32xf32>
    tpu.vector_store %arg10[%142, %c112_39], %134 {strides = array<i32>} : memref<8x256xf32, #tpu.memory_space<vmem>>, vector<1x32xf32>,
    %c3_i32 = arith.constant 3 : i32
    %144 = arith.index_cast %c3_i32 : i32 to index
    %145 = memref.load %arg1[%144] : memref<8xi32, #tpu.memory_space<smem>>
    %146 = arith.index_cast %145 : i32 to index
    %c0_40 = arith.constant 0 : index
    %147 = vector.load %arg2[%146, %c0_40] : memref<64x32xf32, #tpu.memory_space<vmem>>, vector<1x32xf32>
    %148 = tpu.concatenate %147, %137 in 1 : vector<1x32xf32>, vector<1x32xf32> -> vector<1x64xf32>
    %cst_41 = arith.constant dense<0.000000e+00> : vector<1x256xf32>
    %149 = tpu.matmul %148, %0, %cst_41 {dimension_numbers = #tpu.dot_dimension_numbers<[1], [0], [0], [1], [0, 0, 1, 1], [], []>} : vector<1x64xf32>, vector<64x256xf32>, vector<1x256xf32> -> vector<1x256xf32>
    %150 = arith.addf %149, %1 : vector<1x256xf32>
    %151 = vector.extract_strided_slice %150 {offsets = [0, 0], sizes = [1, 16], strides = [1, 1]} : vector<1x256xf32> to vector<1x16xf32>
    %cst_42 = arith.constant dense<0xFF800000> : vector<1xf32>
    %152 = vector.multi_reduction <maximumf>, %151, %cst_42 [1] : vector<1x16xf32> to vector<1xf32>
    %153 = vector.shape_cast %152 : vector<1xf32> to vector<1x1xf32>
    %154 = vector.broadcast %153 : vector<1x1xf32> to vector<1x16xf32>
    %155 = arith.subf %151, %154 : vector<1x16xf32>
    %156 = math.exp %155 : vector<1x16xf32>
    %cst_43 = arith.constant dense<0.000000e+00> : vector<1xf32>
    %157 = vector.multi_reduction <add>, %156, %cst_43 [1] : vector<1x16xf32> to vector<1xf32>
    %158 = vector.shape_cast %157 : vector<1xf32> to vector<1x1xf32>
    %159 = vector.broadcast %158 : vector<1x1xf32> to vector<1x16xf32>
    %160 = arith.divf %156, %159 : vector<1x16xf32>
    %161 = vector.extract_strided_slice %150 {offsets = [0, 16], sizes = [1, 32], strides = [1, 1]} : vector<1x256xf32> to vector<1x32xf32>
    %cst_44 = arith.constant dense<0.000000e+00> : vector<1x32xf32>
    %162 = tpu.matmul %160, %3, %cst_44 {dimension_numbers = #tpu.dot_dimension_numbers<[1], [0], [0], [1], [0, 0, 1, 1], [], []>} : vector<1x16xf32>, vector<16x32xf32>, vector<1x32xf32> -> vector<1x32xf32>
    %163 = arith.addf %161, %162 : vector<1x32xf32>
    %cst_45 = arith.constant 0.000000e+00 : f32
    %164 = vector.broadcast %cst_45 : f32 to vector<1x32xf32>
    %165 = arith.maximumf %163, %164 : vector<1x32xf32>
    %cst_46 = arith.constant dense<0.000000e+00> : vector<1x128xf32>
    %166 = tpu.matmul %165, %2, %cst_46 {dimension_numbers = #tpu.dot_dimension_numbers<[1], [0], [0], [1], [0, 0, 1, 1], [], []>} : vector<1x32xf32>, vector<32x128xf32>, vector<1x128xf32> -> vector<1x128xf32>
    %167 = vector.extract_strided_slice %150 {offsets = [0, 48], sizes = [1, 128], strides = [1, 1]} : vector<1x256xf32> to vector<1x128xf32>
    %168 = arith.addf %166, %167 : vector<1x128xf32>
    %169 = arith.negf %168 : vector<1x128xf32>
    %170 = math.exp %169 : vector<1x128xf32>
    %cst_47 = arith.constant 1.000000e+00 : f32
    %171 = vector.broadcast %cst_47 : f32 to vector<1x128xf32>
    %172 = arith.addf %171, %170 : vector<1x128xf32>
    %173 = arith.divf %171, %172 : vector<1x128xf32>
    %174 = vector.extract_strided_slice %168 {offsets = [0, 64], sizes = [1, 32], strides = [1, 1]} : vector<1x128xf32> to vector<1x32xf32>
    %175 = math.tanh %174 : vector<1x32xf32>
    %176 = vector.extract_strided_slice %173 {offsets = [0, 32], sizes = [1, 32], strides = [1, 1]} : vector<1x128xf32> to vector<1x32xf32>
    %177 = arith.mulf %176, %134 : vector<1x32xf32>
    %178 = vector.extract_strided_slice %173 {offsets = [0, 0], sizes = [1, 32], strides = [1, 1]} : vector<1x128xf32> to vector<1x32xf32>
    %179 = arith.mulf %178, %175 : vector<1x32xf32>
    %180 = arith.addf %177, %179 : vector<1x32xf32>
    %181 = vector.extract_strided_slice %173 {offsets = [0, 96], sizes = [1, 32], strides = [1, 1]} : vector<1x128xf32> to vector<1x32xf32>
    %182 = math.tanh %180 : vector<1x32xf32>
    %183 = arith.mulf %181, %182 : vector<1x32xf32>
    %184 = arith.index_cast %c3_i32 : i32 to index
    %c0_48 = arith.constant 0 : index
    %185 = vector.load %arg11[%184, %c0_48] : memref<8x32xf32, #tpu.memory_space<vmem>>, vector<1x32xf32>
    tpu.vector_store %arg11[%184, %c0_48], %183 {strides = array<i32>} : memref<8x32xf32, #tpu.memory_space<vmem>>, vector<1x32xf32>,
    %186 = arith.index_cast %c3_i32 : i32 to index
    %c64_49 = arith.constant 64 : index
    %187 = vector.load %arg10[%186, %c64_49] : memref<8x256xf32, #tpu.memory_space<vmem>>, vector<1x16xf32>
    tpu.vector_store %arg10[%186, %c64_49], %160 {strides = array<i32>} : memref<8x256xf32, #tpu.memory_space<vmem>>, vector<1x16xf32>,
    %188 = arith.index_cast %c3_i32 : i32 to index
    %c112_50 = arith.constant 112 : index
    %189 = vector.load %arg10[%188, %c112_50] : memref<8x256xf32, #tpu.memory_space<vmem>>, vector<1x32xf32>
    tpu.vector_store %arg10[%188, %c112_50], %180 {strides = array<i32>} : memref<8x256xf32, #tpu.memory_space<vmem>>, vector<1x32xf32>,
    %c4_i32 = arith.constant 4 : i32
    %190 = arith.index_cast %c4_i32 : i32 to index
    %191 = memref.load %arg1[%190] : memref<8xi32, #tpu.memory_space<smem>>
    %192 = arith.index_cast %191 : i32 to index
    %c0_51 = arith.constant 0 : index
    %193 = vector.load %arg2[%192, %c0_51] : memref<64x32xf32, #tpu.memory_space<vmem>>, vector<1x32xf32>
    %194 = tpu.concatenate %193, %183 in 1 : vector<1x32xf32>, vector<1x32xf32> -> vector<1x64xf32>
    %cst_52 = arith.constant dense<0.000000e+00> : vector<1x256xf32>
    %195 = tpu.matmul %194, %0, %cst_52 {dimension_numbers = #tpu.dot_dimension_numbers<[1], [0], [0], [1], [0, 0, 1, 1], [], []>} : vector<1x64xf32>, vector<64x256xf32>, vector<1x256xf32> -> vector<1x256xf32>
    %196 = arith.addf %195, %1 : vector<1x256xf32>
    %197 = vector.extract_strided_slice %196 {offsets = [0, 0], sizes = [1, 16], strides = [1, 1]} : vector<1x256xf32> to vector<1x16xf32>
    %cst_53 = arith.constant dense<0xFF800000> : vector<1xf32>
    %198 = vector.multi_reduction <maximumf>, %197, %cst_53 [1] : vector<1x16xf32> to vector<1xf32>
    %199 = vector.shape_cast %198 : vector<1xf32> to vector<1x1xf32>
    %200 = vector.broadcast %199 : vector<1x1xf32> to vector<1x16xf32>
    %201 = arith.subf %197, %200 : vector<1x16xf32>
    %202 = math.exp %201 : vector<1x16xf32>
    %cst_54 = arith.constant dense<0.000000e+00> : vector<1xf32>
    %203 = vector.multi_reduction <add>, %202, %cst_54 [1] : vector<1x16xf32> to vector<1xf32>
    %204 = vector.shape_cast %203 : vector<1xf32> to vector<1x1xf32>
    %205 = vector.broadcast %204 : vector<1x1xf32> to vector<1x16xf32>
    %206 = arith.divf %202, %205 : vector<1x16xf32>
    %207 = vector.extract_strided_slice %196 {offsets = [0, 16], sizes = [1, 32], strides = [1, 1]} : vector<1x256xf32> to vector<1x32xf32>
    %cst_55 = arith.constant dense<0.000000e+00> : vector<1x32xf32>
    %208 = tpu.matmul %206, %3, %cst_55 {dimension_numbers = #tpu.dot_dimension_numbers<[1], [0], [0], [1], [0, 0, 1, 1], [], []>} : vector<1x16xf32>, vector<16x32xf32>, vector<1x32xf32> -> vector<1x32xf32>
    %209 = arith.addf %207, %208 : vector<1x32xf32>
    %cst_56 = arith.constant 0.000000e+00 : f32
    %210 = vector.broadcast %cst_56 : f32 to vector<1x32xf32>
    %211 = arith.maximumf %209, %210 : vector<1x32xf32>
    %cst_57 = arith.constant dense<0.000000e+00> : vector<1x128xf32>
    %212 = tpu.matmul %211, %2, %cst_57 {dimension_numbers = #tpu.dot_dimension_numbers<[1], [0], [0], [1], [0, 0, 1, 1], [], []>} : vector<1x32xf32>, vector<32x128xf32>, vector<1x128xf32> -> vector<1x128xf32>
    %213 = vector.extract_strided_slice %196 {offsets = [0, 48], sizes = [1, 128], strides = [1, 1]} : vector<1x256xf32> to vector<1x128xf32>
    %214 = arith.addf %212, %213 : vector<1x128xf32>
    %215 = arith.negf %214 : vector<1x128xf32>
    %216 = math.exp %215 : vector<1x128xf32>
    %cst_58 = arith.constant 1.000000e+00 : f32
    %217 = vector.broadcast %cst_58 : f32 to vector<1x128xf32>
    %218 = arith.addf %217, %216 : vector<1x128xf32>
    %219 = arith.divf %217, %218 : vector<1x128xf32>
    %220 = vector.extract_strided_slice %214 {offsets = [0, 64], sizes = [1, 32], strides = [1, 1]} : vector<1x128xf32> to vector<1x32xf32>
    %221 = math.tanh %220 : vector<1x32xf32>
    %222 = vector.extract_strided_slice %219 {offsets = [0, 32], sizes = [1, 32], strides = [1, 1]} : vector<1x128xf32> to vector<1x32xf32>
    %223 = arith.mulf %222, %180 : vector<1x32xf32>
    %224 = vector.extract_strided_slice %219 {offsets = [0, 0], sizes = [1, 32], strides = [1, 1]} : vector<1x128xf32> to vector<1x32xf32>
    %225 = arith.mulf %224, %221 : vector<1x32xf32>
    %226 = arith.addf %223, %225 : vector<1x32xf32>
    %227 = vector.extract_strided_slice %219 {offsets = [0, 96], sizes = [1, 32], strides = [1, 1]} : vector<1x128xf32> to vector<1x32xf32>
    %228 = math.tanh %226 : vector<1x32xf32>
    %229 = arith.mulf %227, %228 : vector<1x32xf32>
    %230 = arith.index_cast %c4_i32 : i32 to index
    %c0_59 = arith.constant 0 : index
    %231 = vector.load %arg11[%230, %c0_59] : memref<8x32xf32, #tpu.memory_space<vmem>>, vector<1x32xf32>
    tpu.vector_store %arg11[%230, %c0_59], %229 {strides = array<i32>} : memref<8x32xf32, #tpu.memory_space<vmem>>, vector<1x32xf32>,
    %232 = arith.index_cast %c4_i32 : i32 to index
    %c64_60 = arith.constant 64 : index
    %233 = vector.load %arg10[%232, %c64_60] : memref<8x256xf32, #tpu.memory_space<vmem>>, vector<1x16xf32>
    tpu.vector_store %arg10[%232, %c64_60], %206 {strides = array<i32>} : memref<8x256xf32, #tpu.memory_space<vmem>>, vector<1x16xf32>,
    %234 = arith.index_cast %c4_i32 : i32 to index
    %c112_61 = arith.constant 112 : index
    %235 = vector.load %arg10[%234, %c112_61] : memref<8x256xf32, #tpu.memory_space<vmem>>, vector<1x32xf32>
    tpu.vector_store %arg10[%234, %c112_61], %226 {strides = array<i32>} : memref<8x256xf32, #tpu.memory_space<vmem>>, vector<1x32xf32>,
    %c5_i32 = arith.constant 5 : i32
    %236 = arith.index_cast %c5_i32 : i32 to index
    %237 = memref.load %arg1[%236] : memref<8xi32, #tpu.memory_space<smem>>
    %238 = arith.index_cast %237 : i32 to index
    %c0_62 = arith.constant 0 : index
    %239 = vector.load %arg2[%238, %c0_62] : memref<64x32xf32, #tpu.memory_space<vmem>>, vector<1x32xf32>
    %240 = tpu.concatenate %239, %229 in 1 : vector<1x32xf32>, vector<1x32xf32> -> vector<1x64xf32>
    %cst_63 = arith.constant dense<0.000000e+00> : vector<1x256xf32>
    %241 = tpu.matmul %240, %0, %cst_63 {dimension_numbers = #tpu.dot_dimension_numbers<[1], [0], [0], [1], [0, 0, 1, 1], [], []>} : vector<1x64xf32>, vector<64x256xf32>, vector<1x256xf32> -> vector<1x256xf32>
    %242 = arith.addf %241, %1 : vector<1x256xf32>
    %243 = vector.extract_strided_slice %242 {offsets = [0, 0], sizes = [1, 16], strides = [1, 1]} : vector<1x256xf32> to vector<1x16xf32>
    %cst_64 = arith.constant dense<0xFF800000> : vector<1xf32>
    %244 = vector.multi_reduction <maximumf>, %243, %cst_64 [1] : vector<1x16xf32> to vector<1xf32>
    %245 = vector.shape_cast %244 : vector<1xf32> to vector<1x1xf32>
    %246 = vector.broadcast %245 : vector<1x1xf32> to vector<1x16xf32>
    %247 = arith.subf %243, %246 : vector<1x16xf32>
    %248 = math.exp %247 : vector<1x16xf32>
    %cst_65 = arith.constant dense<0.000000e+00> : vector<1xf32>
    %249 = vector.multi_reduction <add>, %248, %cst_65 [1] : vector<1x16xf32> to vector<1xf32>
    %250 = vector.shape_cast %249 : vector<1xf32> to vector<1x1xf32>
    %251 = vector.broadcast %250 : vector<1x1xf32> to vector<1x16xf32>
    %252 = arith.divf %248, %251 : vector<1x16xf32>
    %253 = vector.extract_strided_slice %242 {offsets = [0, 16], sizes = [1, 32], strides = [1, 1]} : vector<1x256xf32> to vector<1x32xf32>
    %cst_66 = arith.constant dense<0.000000e+00> : vector<1x32xf32>
    %254 = tpu.matmul %252, %3, %cst_66 {dimension_numbers = #tpu.dot_dimension_numbers<[1], [0], [0], [1], [0, 0, 1, 1], [], []>} : vector<1x16xf32>, vector<16x32xf32>, vector<1x32xf32> -> vector<1x32xf32>
    %255 = arith.addf %253, %254 : vector<1x32xf32>
    %cst_67 = arith.constant 0.000000e+00 : f32
    %256 = vector.broadcast %cst_67 : f32 to vector<1x32xf32>
    %257 = arith.maximumf %255, %256 : vector<1x32xf32>
    %cst_68 = arith.constant dense<0.000000e+00> : vector<1x128xf32>
    %258 = tpu.matmul %257, %2, %cst_68 {dimension_numbers = #tpu.dot_dimension_numbers<[1], [0], [0], [1], [0, 0, 1, 1], [], []>} : vector<1x32xf32>, vector<32x128xf32>, vector<1x128xf32> -> vector<1x128xf32>
    %259 = vector.extract_strided_slice %242 {offsets = [0, 48], sizes = [1, 128], strides = [1, 1]} : vector<1x256xf32> to vector<1x128xf32>
    %260 = arith.addf %258, %259 : vector<1x128xf32>
    %261 = arith.negf %260 : vector<1x128xf32>
    %262 = math.exp %261 : vector<1x128xf32>
    %cst_69 = arith.constant 1.000000e+00 : f32
    %263 = vector.broadcast %cst_69 : f32 to vector<1x128xf32>
    %264 = arith.addf %263, %262 : vector<1x128xf32>
    %265 = arith.divf %263, %264 : vector<1x128xf32>
    %266 = vector.extract_strided_slice %260 {offsets = [0, 64], sizes = [1, 32], strides = [1, 1]} : vector<1x128xf32> to vector<1x32xf32>
    %267 = math.tanh %266 : vector<1x32xf32>
    %268 = vector.extract_strided_slice %265 {offsets = [0, 32], sizes = [1, 32], strides = [1, 1]} : vector<1x128xf32> to vector<1x32xf32>
    %269 = arith.mulf %268, %226 : vector<1x32xf32>
    %270 = vector.extract_strided_slice %265 {offsets = [0, 0], sizes = [1, 32], strides = [1, 1]} : vector<1x128xf32> to vector<1x32xf32>
    %271 = arith.mulf %270, %267 : vector<1x32xf32>
    %272 = arith.addf %269, %271 : vector<1x32xf32>
    %273 = vector.extract_strided_slice %265 {offsets = [0, 96], sizes = [1, 32], strides = [1, 1]} : vector<1x128xf32> to vector<1x32xf32>
    %274 = math.tanh %272 : vector<1x32xf32>
    %275 = arith.mulf %273, %274 : vector<1x32xf32>
    %276 = arith.index_cast %c5_i32 : i32 to index
    %c0_70 = arith.constant 0 : index
    %277 = vector.load %arg11[%276, %c0_70] : memref<8x32xf32, #tpu.memory_space<vmem>>, vector<1x32xf32>
    tpu.vector_store %arg11[%276, %c0_70], %275 {strides = array<i32>} : memref<8x32xf32, #tpu.memory_space<vmem>>, vector<1x32xf32>,
    %278 = arith.index_cast %c5_i32 : i32 to index
    %c64_71 = arith.constant 64 : index
    %279 = vector.load %arg10[%278, %c64_71] : memref<8x256xf32, #tpu.memory_space<vmem>>, vector<1x16xf32>
    tpu.vector_store %arg10[%278, %c64_71], %252 {strides = array<i32>} : memref<8x256xf32, #tpu.memory_space<vmem>>, vector<1x16xf32>,
    %280 = arith.index_cast %c5_i32 : i32 to index
    %c112_72 = arith.constant 112 : index
    %281 = vector.load %arg10[%280, %c112_72] : memref<8x256xf32, #tpu.memory_space<vmem>>, vector<1x32xf32>
    tpu.vector_store %arg10[%280, %c112_72], %272 {strides = array<i32>} : memref<8x256xf32, #tpu.memory_space<vmem>>, vector<1x32xf32>,
    %c6_i32 = arith.constant 6 : i32
    %282 = arith.index_cast %c6_i32 : i32 to index
    %283 = memref.load %arg1[%282] : memref<8xi32, #tpu.memory_space<smem>>
    %284 = arith.index_cast %283 : i32 to index
    %c0_73 = arith.constant 0 : index
    %285 = vector.load %arg2[%284, %c0_73] : memref<64x32xf32, #tpu.memory_space<vmem>>, vector<1x32xf32>
    %286 = tpu.concatenate %285, %275 in 1 : vector<1x32xf32>, vector<1x32xf32> -> vector<1x64xf32>
    %cst_74 = arith.constant dense<0.000000e+00> : vector<1x256xf32>
    %287 = tpu.matmul %286, %0, %cst_74 {dimension_numbers = #tpu.dot_dimension_numbers<[1], [0], [0], [1], [0, 0, 1, 1], [], []>} : vector<1x64xf32>, vector<64x256xf32>, vector<1x256xf32> -> vector<1x256xf32>
    %288 = arith.addf %287, %1 : vector<1x256xf32>
    %289 = vector.extract_strided_slice %288 {offsets = [0, 0], sizes = [1, 16], strides = [1, 1]} : vector<1x256xf32> to vector<1x16xf32>
    %cst_75 = arith.constant dense<0xFF800000> : vector<1xf32>
    %290 = vector.multi_reduction <maximumf>, %289, %cst_75 [1] : vector<1x16xf32> to vector<1xf32>
    %291 = vector.shape_cast %290 : vector<1xf32> to vector<1x1xf32>
    %292 = vector.broadcast %291 : vector<1x1xf32> to vector<1x16xf32>
    %293 = arith.subf %289, %292 : vector<1x16xf32>
    %294 = math.exp %293 : vector<1x16xf32>
    %cst_76 = arith.constant dense<0.000000e+00> : vector<1xf32>
    %295 = vector.multi_reduction <add>, %294, %cst_76 [1] : vector<1x16xf32> to vector<1xf32>
    %296 = vector.shape_cast %295 : vector<1xf32> to vector<1x1xf32>
    %297 = vector.broadcast %296 : vector<1x1xf32> to vector<1x16xf32>
    %298 = arith.divf %294, %297 : vector<1x16xf32>
    %299 = vector.extract_strided_slice %288 {offsets = [0, 16], sizes = [1, 32], strides = [1, 1]} : vector<1x256xf32> to vector<1x32xf32>
    %cst_77 = arith.constant dense<0.000000e+00> : vector<1x32xf32>
    %300 = tpu.matmul %298, %3, %cst_77 {dimension_numbers = #tpu.dot_dimension_numbers<[1], [0], [0], [1], [0, 0, 1, 1], [], []>} : vector<1x16xf32>, vector<16x32xf32>, vector<1x32xf32> -> vector<1x32xf32>
    %301 = arith.addf %299, %300 : vector<1x32xf32>
    %cst_78 = arith.constant 0.000000e+00 : f32
    %302 = vector.broadcast %cst_78 : f32 to vector<1x32xf32>
    %303 = arith.maximumf %301, %302 : vector<1x32xf32>
    %cst_79 = arith.constant dense<0.000000e+00> : vector<1x128xf32>
    %304 = tpu.matmul %303, %2, %cst_79 {dimension_numbers = #tpu.dot_dimension_numbers<[1], [0], [0], [1], [0, 0, 1, 1], [], []>} : vector<1x32xf32>, vector<32x128xf32>, vector<1x128xf32> -> vector<1x128xf32>
    %305 = vector.extract_strided_slice %288 {offsets = [0, 48], sizes = [1, 128], strides = [1, 1]} : vector<1x256xf32> to vector<1x128xf32>
    %306 = arith.addf %304, %305 : vector<1x128xf32>
    %307 = arith.negf %306 : vector<1x128xf32>
    %308 = math.exp %307 : vector<1x128xf32>
    %cst_80 = arith.constant 1.000000e+00 : f32
    %309 = vector.broadcast %cst_80 : f32 to vector<1x128xf32>
    %310 = arith.addf %309, %308 : vector<1x128xf32>
    %311 = arith.divf %309, %310 : vector<1x128xf32>
    %312 = vector.extract_strided_slice %306 {offsets = [0, 64], sizes = [1, 32], strides = [1, 1]} : vector<1x128xf32> to vector<1x32xf32>
    %313 = math.tanh %312 : vector<1x32xf32>
    %314 = vector.extract_strided_slice %311 {offsets = [0, 32], sizes = [1, 32], strides = [1, 1]} : vector<1x128xf32> to vector<1x32xf32>
    %315 = arith.mulf %314, %272 : vector<1x32xf32>
    %316 = vector.extract_strided_slice %311 {offsets = [0, 0], sizes = [1, 32], strides = [1, 1]} : vector<1x128xf32> to vector<1x32xf32>
    %317 = arith.mulf %316, %313 : vector<1x32xf32>
    %318 = arith.addf %315, %317 : vector<1x32xf32>
    %319 = vector.extract_strided_slice %311 {offsets = [0, 96], sizes = [1, 32], strides = [1, 1]} : vector<1x128xf32> to vector<1x32xf32>
    %320 = math.tanh %318 : vector<1x32xf32>
    %321 = arith.mulf %319, %320 : vector<1x32xf32>
    %322 = arith.index_cast %c6_i32 : i32 to index
    %c0_81 = arith.constant 0 : index
    %323 = vector.load %arg11[%322, %c0_81] : memref<8x32xf32, #tpu.memory_space<vmem>>, vector<1x32xf32>
    tpu.vector_store %arg11[%322, %c0_81], %321 {strides = array<i32>} : memref<8x32xf32, #tpu.memory_space<vmem>>, vector<1x32xf32>,
    %324 = arith.index_cast %c6_i32 : i32 to index
    %c64_82 = arith.constant 64 : index
    %325 = vector.load %arg10[%324, %c64_82] : memref<8x256xf32, #tpu.memory_space<vmem>>, vector<1x16xf32>
    tpu.vector_store %arg10[%324, %c64_82], %298 {strides = array<i32>} : memref<8x256xf32, #tpu.memory_space<vmem>>, vector<1x16xf32>,
    %326 = arith.index_cast %c6_i32 : i32 to index
    %c112_83 = arith.constant 112 : index
    %327 = vector.load %arg10[%326, %c112_83] : memref<8x256xf32, #tpu.memory_space<vmem>>, vector<1x32xf32>
    tpu.vector_store %arg10[%326, %c112_83], %318 {strides = array<i32>} : memref<8x256xf32, #tpu.memory_space<vmem>>, vector<1x32xf32>,
    %c7_i32 = arith.constant 7 : i32
    %328 = arith.index_cast %c7_i32 : i32 to index
    %329 = memref.load %arg1[%328] : memref<8xi32, #tpu.memory_space<smem>>
    %330 = arith.index_cast %329 : i32 to index
    %c0_84 = arith.constant 0 : index
    %331 = vector.load %arg2[%330, %c0_84] : memref<64x32xf32, #tpu.memory_space<vmem>>, vector<1x32xf32>
    %332 = tpu.concatenate %331, %321 in 1 : vector<1x32xf32>, vector<1x32xf32> -> vector<1x64xf32>
    %cst_85 = arith.constant dense<0.000000e+00> : vector<1x256xf32>
    %333 = tpu.matmul %332, %0, %cst_85 {dimension_numbers = #tpu.dot_dimension_numbers<[1], [0], [0], [1], [0, 0, 1, 1], [], []>} : vector<1x64xf32>, vector<64x256xf32>, vector<1x256xf32> -> vector<1x256xf32>
    %334 = arith.addf %333, %1 : vector<1x256xf32>
    %335 = vector.extract_strided_slice %334 {offsets = [0, 0], sizes = [1, 16], strides = [1, 1]} : vector<1x256xf32> to vector<1x16xf32>
    %cst_86 = arith.constant dense<0xFF800000> : vector<1xf32>
    %336 = vector.multi_reduction <maximumf>, %335, %cst_86 [1] : vector<1x16xf32> to vector<1xf32>
    %337 = vector.shape_cast %336 : vector<1xf32> to vector<1x1xf32>
    %338 = vector.broadcast %337 : vector<1x1xf32> to vector<1x16xf32>
    %339 = arith.subf %335, %338 : vector<1x16xf32>
    %340 = math.exp %339 : vector<1x16xf32>
    %cst_87 = arith.constant dense<0.000000e+00> : vector<1xf32>
    %341 = vector.multi_reduction <add>, %340, %cst_87 [1] : vector<1x16xf32> to vector<1xf32>
    %342 = vector.shape_cast %341 : vector<1xf32> to vector<1x1xf32>
    %343 = vector.broadcast %342 : vector<1x1xf32> to vector<1x16xf32>
    %344 = arith.divf %340, %343 : vector<1x16xf32>
    %345 = vector.extract_strided_slice %334 {offsets = [0, 16], sizes = [1, 32], strides = [1, 1]} : vector<1x256xf32> to vector<1x32xf32>
    %cst_88 = arith.constant dense<0.000000e+00> : vector<1x32xf32>
    %346 = tpu.matmul %344, %3, %cst_88 {dimension_numbers = #tpu.dot_dimension_numbers<[1], [0], [0], [1], [0, 0, 1, 1], [], []>} : vector<1x16xf32>, vector<16x32xf32>, vector<1x32xf32> -> vector<1x32xf32>
    %347 = arith.addf %345, %346 : vector<1x32xf32>
    %cst_89 = arith.constant 0.000000e+00 : f32
    %348 = vector.broadcast %cst_89 : f32 to vector<1x32xf32>
    %349 = arith.maximumf %347, %348 : vector<1x32xf32>
    %cst_90 = arith.constant dense<0.000000e+00> : vector<1x128xf32>
    %350 = tpu.matmul %349, %2, %cst_90 {dimension_numbers = #tpu.dot_dimension_numbers<[1], [0], [0], [1], [0, 0, 1, 1], [], []>} : vector<1x32xf32>, vector<32x128xf32>, vector<1x128xf32> -> vector<1x128xf32>
    %351 = vector.extract_strided_slice %334 {offsets = [0, 48], sizes = [1, 128], strides = [1, 1]} : vector<1x256xf32> to vector<1x128xf32>
    %352 = arith.addf %350, %351 : vector<1x128xf32>
    %353 = arith.negf %352 : vector<1x128xf32>
    %354 = math.exp %353 : vector<1x128xf32>
    %cst_91 = arith.constant 1.000000e+00 : f32
    %355 = vector.broadcast %cst_91 : f32 to vector<1x128xf32>
    %356 = arith.addf %355, %354 : vector<1x128xf32>
    %357 = arith.divf %355, %356 : vector<1x128xf32>
    %358 = vector.extract_strided_slice %352 {offsets = [0, 64], sizes = [1, 32], strides = [1, 1]} : vector<1x128xf32> to vector<1x32xf32>
    %359 = math.tanh %358 : vector<1x32xf32>
    %360 = vector.extract_strided_slice %357 {offsets = [0, 32], sizes = [1, 32], strides = [1, 1]} : vector<1x128xf32> to vector<1x32xf32>
    %361 = arith.mulf %360, %318 : vector<1x32xf32>
    %362 = vector.extract_strided_slice %357 {offsets = [0, 0], sizes = [1, 32], strides = [1, 1]} : vector<1x128xf32> to vector<1x32xf32>
    %363 = arith.mulf %362, %359 : vector<1x32xf32>
    %364 = arith.addf %361, %363 : vector<1x32xf32>
    %365 = vector.extract_strided_slice %357 {offsets = [0, 96], sizes = [1, 32], strides = [1, 1]} : vector<1x128xf32> to vector<1x32xf32>
    %366 = math.tanh %364 : vector<1x32xf32>
    %367 = arith.mulf %365, %366 : vector<1x32xf32>
    %368 = arith.index_cast %c7_i32 : i32 to index
    %c0_92 = arith.constant 0 : index
    %369 = vector.load %arg11[%368, %c0_92] : memref<8x32xf32, #tpu.memory_space<vmem>>, vector<1x32xf32>
    tpu.vector_store %arg11[%368, %c0_92], %367 {strides = array<i32>} : memref<8x32xf32, #tpu.memory_space<vmem>>, vector<1x32xf32>,
    %370 = arith.index_cast %c7_i32 : i32 to index
    %c64_93 = arith.constant 64 : index
    %371 = vector.load %arg10[%370, %c64_93] : memref<8x256xf32, #tpu.memory_space<vmem>>, vector<1x16xf32>
    tpu.vector_store %arg10[%370, %c64_93], %344 {strides = array<i32>} : memref<8x256xf32, #tpu.memory_space<vmem>>, vector<1x16xf32>,
    %372 = arith.index_cast %c7_i32 : i32 to index
    %c112_94 = arith.constant 112 : index
    %373 = vector.load %arg10[%372, %c112_94] : memref<8x256xf32, #tpu.memory_space<vmem>>, vector<1x32xf32>
    tpu.vector_store %arg10[%372, %c112_94], %364 {strides = array<i32>} : memref<8x256xf32, #tpu.memory_space<vmem>>, vector<1x32xf32>,
    %c8_i32 = arith.constant 8 : i32
    %c0_95 = arith.constant 0 : index
    %c0_96 = arith.constant 0 : index
    %374 = vector.load %arg11[%c0_95, %c0_96] : memref<8x32xf32, #tpu.memory_space<vmem>>, vector<8x32xf32>
    %c0_97 = arith.constant 0 : index
    %c0_98 = arith.constant 0 : index
    %375 = vector.load %arg7[%c0_97, %c0_98] : memref<32x64xf32, #tpu.memory_space<vmem>>, vector<32x64xf32>
    %cst_99 = arith.constant dense<0.000000e+00> : vector<8x64xf32>
    %376 = tpu.matmul %374, %375, %cst_99 {dimension_numbers = #tpu.dot_dimension_numbers<[1], [0], [0], [1], [0, 0, 1, 1], [], []>} : vector<8x32xf32>, vector<32x64xf32>, vector<8x64xf32> -> vector<8x64xf32>
    %c0_100 = arith.constant 0 : index
    %c0_101 = arith.constant 0 : index
    %377 = vector.load %arg9[%c0_100, %c0_101] : memref<1x64xf32, #tpu.memory_space<vmem>>, vector<1x64xf32>
    %378 = vector.broadcast %377 : vector<1x64xf32> to vector<8x64xf32>
    %379 = arith.addf %376, %378 : vector<8x64xf32>
    %cst_102 = arith.constant dense<0xFF800000> : vector<8xf32>
    %380 = vector.multi_reduction <maximumf>, %379, %cst_102 [1] : vector<8x64xf32> to vector<8xf32>
    %381 = vector.shape_cast %380 : vector<8xf32> to vector<8x1xf32>
    %382 = vector.broadcast %381 : vector<8x1xf32> to vector<8x64xf32>
    %383 = arith.subf %379, %382 : vector<8x64xf32>
    %384 = math.exp %383 : vector<8x64xf32>
    %cst_103 = arith.constant dense<0.000000e+00> : vector<8xf32>
    %385 = vector.multi_reduction <add>, %384, %cst_103 [1] : vector<8x64xf32> to vector<8xf32>
    %386 = vector.shape_cast %385 : vector<8xf32> to vector<8x1xf32>
    %387 = math.log %386 : vector<8x1xf32>
    %388 = vector.broadcast %387 : vector<8x1xf32> to vector<8x64xf32>
    %389 = arith.subf %383, %388 : vector<8x64xf32>
    %c0_104 = arith.constant 0 : index
    %c0_105 = arith.constant 0 : index
    %390 = vector.load %arg10[%c0_104, %c0_105] : memref<8x256xf32, #tpu.memory_space<vmem>>, vector<8x64xf32>
    tpu.vector_store %arg10[%c0_104, %c0_105], %389 {strides = array<i32>} : memref<8x256xf32, #tpu.memory_space<vmem>>, vector<8x64xf32>,
    %c0_106 = arith.constant 0 : index
    %c80 = arith.constant 80 : index
    %391 = vector.load %arg10[%c0_106, %c80] : memref<8x256xf32, #tpu.memory_space<vmem>>, vector<8x32xf32>
    tpu.vector_store %arg10[%c0_106, %c80], %374 {strides = array<i32>} : memref<8x256xf32, #tpu.memory_space<vmem>>, vector<8x32xf32>,
    %cst_107 = arith.constant 0.000000e+00 : f32
    %392 = vector.broadcast %cst_107 : f32 to vector<8x112xf32>
    %c0_108 = arith.constant 0 : index
    %c144 = arith.constant 144 : index
    %393 = vector.load %arg10[%c0_108, %c144] : memref<8x256xf32, #tpu.memory_space<vmem>>, vector<8x112xf32>
    tpu.vector_store %arg10[%c0_108, %c144], %392 {strides = array<i32>} : memref<8x256xf32, #tpu.memory_space<vmem>>, vector<8x112xf32>,
    return
  }
  func.func @transform_0(%arg0: i32, %arg1: memref<8xi32, #tpu.memory_space<smem>>) -> (i32, i32) {
    %c0_i32 = arith.constant 0 : i32
    %c0_i32_0 = arith.constant 0 : i32
    %c0_i32_1 = arith.constant 0 : i32
    return %c0_i32, %c0_i32_0 : i32, i32
  }
  func.func @transform_1(%arg0: i32, %arg1: memref<8xi32, #tpu.memory_space<smem>>) -> (i32, i32) {
    %c0_i32 = arith.constant 0 : i32
    %c0_i32_0 = arith.constant 0 : i32
    %c0_i32_1 = arith.constant 0 : i32
    return %c0_i32, %c0_i32_0 : i32, i32
  }
  func.func @transform_2(%arg0: i32, %arg1: memref<8xi32, #tpu.memory_space<smem>>) -> (i32, i32) {
    %c0_i32 = arith.constant 0 : i32
    %c0_i32_0 = arith.constant 0 : i32
    %c0_i32_1 = arith.constant 0 : i32
    return %c0_i32, %c0_i32_0 : i32, i32
  }
  func.func @transform_3(%arg0: i32, %arg1: memref<8xi32, #tpu.memory_space<smem>>) -> (i32, i32) {
    %c0_i32 = arith.constant 0 : i32
    %c0_i32_0 = arith.constant 0 : i32
    %c0_i32_1 = arith.constant 0 : i32
    return %c0_i32, %c0_i32_0 : i32, i32
  }
  func.func @transform_4(%arg0: i32, %arg1: memref<8xi32, #tpu.memory_space<smem>>) -> (i32, i32) {
    %c0_i32 = arith.constant 0 : i32
    %c0_i32_0 = arith.constant 0 : i32
    %c0_i32_1 = arith.constant 0 : i32
    return %c0_i32, %c0_i32_0 : i32, i32
  }
  func.func @transform_5(%arg0: i32, %arg1: memref<8xi32, #tpu.memory_space<smem>>) -> (i32, i32) {
    %c0_i32 = arith.constant 0 : i32
    %c0_i32_0 = arith.constant 0 : i32
    %c0_i32_1 = arith.constant 0 : i32
    return %c0_i32, %c0_i32_0 : i32, i32
  }
  func.func @transform_6(%arg0: i32, %arg1: memref<8xi32, #tpu.memory_space<smem>>) -> (i32, i32) {
    %c0_i32 = arith.constant 0 : i32
    %c0_i32_0 = arith.constant 0 : i32
    %c0_i32_1 = arith.constant 0 : i32
    return %c0_i32, %c0_i32_0 : i32, i32
  }
  func.func @transform_7(%arg0: i32, %arg1: memref<8xi32, #tpu.memory_space<smem>>) -> (i32, i32) {
    %c0_i32 = arith.constant 0 : i32
    %c0_i32_0 = arith.constant 0 : i32
    %c0_i32_1 = arith.constant 0 : i32
    return %c0_i32, %c0_i32_0 : i32, i32
  }
  func.func @transform_8(%arg0: i32, %arg1: memref<8xi32, #tpu.memory_space<smem>>) -> (i32, i32) {
    %c0_i32 = arith.constant 0 : i32
    %c0_i32_0 = arith.constant 0 : i32
    %c0_i32_1 = arith.constant 0 : i32
    return %c0_i32, %c0_i32_0 : i32, i32
  }
}

</mosaic_0001>

<llo_original>
// kernel: attn_decoder_decode.1
$region0: #{attn_decoder_decode.1}
  #allocation0 [shape = 'u32[]', space=smem, size = 0x4, offset = 0x4, fixed_abs, tag = 'smem constant byte address 0x4 - core index']
  #allocation1 [shape = 'u32[144,128]{1,0:T(1,128)}', space=vmem, size = 0x12000, scoped, tag = 'internal scratch']
  #allocation2 [shape = 'f32[8,32]{1,0:T(8,128)}', space=vmem, size = 0x1000, scoped, tag = 'scratch operand']
  #allocation3 [shape = 's32[1]{0}', space=sflag, size = 0x4, scoped, tag = 'scoped memory for attn_decoder_decode.1']
  #allocation4 [shape = 'u8[512]{0}', space=smem, size = 0x200, scoped, tag = 'prefetched SMEM operand 0']
  %s0 = inlined_call_operand.vmem [shape: s32[8], index: 0, kind: input, shape index: {}]
  %s1 = inlined_call_operand.vmem [shape: f32[64,32], index: 1, kind: input, shape index: {}]
  %s2 = inlined_call_operand.vmem [shape: f32[16,32], index: 2, kind: input, shape index: {}]
  %s3 = inlined_call_operand.vmem [shape: f32[1,64], index: 3, kind: input, shape index: {}]
  %s4 = inlined_call_operand.vmem [shape: f32[64,256], index: 4, kind: input, shape index: {}]
  %s5 = inlined_call_operand.vmem [shape: f32[32,128], index: 5, kind: input, shape index: {}]
  %s6 = inlined_call_operand.vmem [shape: f32[32,64], index: 6, kind: input, shape index: {}]
  %s7 = inlined_call_operand.vmem [shape: f32[1,256], index: 7, kind: input, shape index: {}]
  %s8 = inlined_call_operand.vmem [shape: f32[1,64], index: 8, kind: input, shape index: {}]
  %s9 = inlined_call_operand.vmem [shape: f32[8,256], index: 9, kind: output, shape index: {}]
  %s10 = sld [smem:[#allocation0]]
  $region42: #{attn_decoder_decode.1} parent=0
    _
  %s12 = ssub.s32 1, %s10
  %s13 = scalar_select 0, %s12, %s10
  %s14 = sshll.u32 %s0, 4
  %s15 = int_to_ptr.vmem [resolvable:$true] %s14
  %17 = dma.vmem_to_smem %s15, 16, [#allocation4], [#allocation3]
  %18 = dma.done [#allocation3], 16
  %19 = sfence
  // Predicated region
  $region2: #{attn_decoder_decode.1} parent=0 // pred_check
    _
  $region3: #{attn_decoder_decode.1} parent=0 // pred_check_branch
    %21 = sbr.rel (0) target = $region5
  $region4: #{attn_decoder_decode.1} parent=0 // pred_region
    _
  $region5: #{attn_decoder_decode.1} parent=0 // pred_fallthru
    _
  // Predicated region
  $region6: #{attn_decoder_decode.1} parent=0 // pred_check
    _
  $region7: #{attn_decoder_decode.1} parent=0 // pred_check_branch
    %23 = sbr.rel (0) target = $region9
  $region8: #{attn_decoder_decode.1} parent=0 // pred_region
    _
  $region9: #{attn_decoder_decode.1} parent=0 // pred_fallthru
    _
  // Predicated region
  $region10: #{attn_decoder_decode.1} parent=0 // pred_check
    _
  $region11: #{attn_decoder_decode.1} parent=0 // pred_check_branch
    %25 = sbr.rel (0) target = $region13
  $region12: #{attn_decoder_decode.1} parent=0 // pred_region
    _
  $region13: #{attn_decoder_decode.1} parent=0 // pred_fallthru
    _
  // Predicated region
  $region14: #{attn_decoder_decode.1} parent=0 // pred_check
    _
  $region15: #{attn_decoder_decode.1} parent=0 // pred_check_branch
    %27 = sbr.rel (0) target = $region17
  $region16: #{attn_decoder_decode.1} parent=0 // pred_region
    _
  $region17: #{attn_decoder_decode.1} parent=0 // pred_fallthru
    _
  // Predicated region
  $region18: #{attn_decoder_decode.1} parent=0 // pred_check
    _
  $region19: #{attn_decoder_decode.1} parent=0 // pred_check_branch
    %29 = sbr.rel (0) target = $region21
  $region20: #{attn_decoder_decode.1} parent=0 // pred_region
    _
  $region21: #{attn_decoder_decode.1} parent=0 // pred_fallthru
    _
  // Predicated region
  $region22: #{attn_decoder_decode.1} parent=0 // pred_check
    _
  $region23: #{attn_decoder_decode.1} parent=0 // pred_check_branch
    %31 = sbr.rel (0) target = $region25
  $region24: #{attn_decoder_decode.1} parent=0 // pred_region
    _
  $region25: #{attn_decoder_decode.1} parent=0 // pred_fallthru
    _
  // Predicated region
  $region26: #{attn_decoder_decode.1} parent=0 // pred_check
    _
  $region27: #{attn_decoder_decode.1} parent=0 // pred_check_branch
    %33 = sbr.rel (0) target = $region29
  $region28: #{attn_decoder_decode.1} parent=0 // pred_region
    _
  $region29: #{attn_decoder_decode.1} parent=0 // pred_fallthru
    _
  // Predicated region
  $region30: #{attn_decoder_decode.1} parent=0 // pred_check
    _
  $region31: #{attn_decoder_decode.1} parent=0 // pred_check_branch
    %35 = sbr.rel (0) target = $region33
  $region32: #{attn_decoder_decode.1} parent=0 // pred_region
    _
  $region33: #{attn_decoder_decode.1} parent=0 // pred_fallthru
    _
  %v36 = vld [vmem:[%s4] sm:$0xff]
  %v37 = vld [vmem:[%s4 + $0x8] sm:$0xff]
  %v38 = vld [vmem:[%s4 + $0x10] sm:$0xff]
  %v39 = vld [vmem:[%s4 + $0x18] sm:$0xff]
  %v40 = vld [vmem:[%s4 + $0x20] sm:$0xff]
  %v41 = vld [vmem:[%s4 + $0x28] sm:$0xff]
  %v42 = vld [vmem:[%s4 + $0x30] sm:$0xff]
  %v43 = vld [vmem:[%s4 + $0x38] sm:$0xff]
  %v44 = vld [vmem:[%s4 + $0x40] sm:$0xff]
  %v45 = vld [vmem:[%s4 + $0x48] sm:$0xff]
  %v46 = vld [vmem:[%s4 + $0x50] sm:$0xff]
  %v47 = vld [vmem:[%s4 + $0x58] sm:$0xff]
  %v48 = vld [vmem:[%s4 + $0x60] sm:$0xff]
  %v49 = vld [vmem:[%s4 + $0x68] sm:$0xff]
  %v50 = vld [vmem:[%s4 + $0x70] sm:$0xff]
  %v51 = vld [vmem:[%s4 + $0x78] sm:$0xff]
  %v52 = vld [vmem:[%s7] sm:$0x3]
  %v53 = vld [vmem:[%s5] sm:$0xff]
  %v54 = vld [vmem:[%s5 + $0x8] sm:$0xff]
  %v55 = vld [vmem:[%s5 + $0x10] sm:$0xff]
  %v56 = vld [vmem:[%s5 + $0x18] sm:$0xff]
  %v57 = vld [vmem:[%s2] sm:$0xff]
  %v58 = vld [vmem:[%s2 + $0x8] sm:$0xff]
  %v59 = vld [vmem:[%s3] sm:$0x1]
  %s60 = sld [smem:[#allocation4]]
  %s61 = scalar_lea.vmem %s1, %s60
  %v62 = vld [vmem:[%s61] sm:$0x1]
  %v64 = vlaneseq
  %v65 = vshrl.u32 %v64, 7
  %v66 = vsub.s32 0, %v65
  %v67 = vrot.slane %v59, %v66
  %68 = vrot.lane.b32.xlu0 %v67, 32
  %v69 = vpop.permute.xlu0 %68
  %vm71 = vcmask 261120
  %v72 = vsel %vm71, %v62, %v69
  %v74 = vlaneseq
  %v75 = vshrl.u32 %v74, 7
  %v76 = vsub.s32 0, %v75
  %v77 = vrot.slane %v52, %v76
  %v78 = vlaneseq
  %v79 = vshrl.u32 %v78, 7
  %v80 = vsub.s32 1, %v79
  %v81 = vrot.slane %v52, %v80
  %vm84 = vcmask 523264
  %v86 = vsel %vm84, %v72, 0
  %88 = vmatprep.subr.mxu0 %v37
  %89 = vmatpush1.msra.mxu0 %v36
  %90 = vmatprep.subr.mxu0 %v39
  %91 = vmatpush1.msra.mxu0 %v38
  %92 = vmatprep.subr.mxu0 %v41
  %93 = vmatpush1.msra.mxu0 %v40
  %94 = vmatprep.subr.mxu0 %v43
  %95 = vmatpush1.msra.mxu0 %v42
  %96 = vmatprep.subr.mxu0 %v45
  %97 = vmatpush1.msra.mxu0 %v44
  %98 = vmatprep.subr.mxu0 %v47
  %99 = vmatpush1.msra.mxu0 %v46
  %100 = vmatprep.subr.mxu0 %v49
  %101 = vmatpush1.msra.mxu0 %v48
  %102 = vmatprep.subr.mxu0 %v51
  %103 = vmatpush1.msra.mxu0 %v50
  %104 = vmatprep.subr.mxu0 0.0
  %105 = vmatpush1.msra.mxu0 0.0
  %106 = vmatprep.subr.mxu0 0.0
  %107 = vmatpush1.msra.mxu0 0.0
  %108 = vmatprep.subr.mxu0 0.0
  %109 = vmatpush1.msra.mxu0 0.0
  %110 = vmatprep.subr.mxu0 0.0
  %111 = vmatpush1.msra.mxu0 0.0
  %112 = vmatprep.subr.mxu0 0.0
  %113 = vmatpush1.msra.mxu0 0.0
  %114 = vmatprep.subr.mxu0 0.0
  %115 = vmatpush1.msra.mxu0 0.0
  %116 = vmatprep.subr.mxu0 0.0
  %117 = vmatpush1.msra.mxu0 0.0
  %118 = vmatprep.subr.mxu0 0.0
  %119 = vmatpush1.msra.mxu0 0.0
  %120 = vmatprep.subr.mxu0 0.0
  %121 = vmatpush1.msra.mxu0 0.0
  %122 = vmatprep.subr.mxu0 0.0
  %123 = vmatpush1.msra.mxu0 0.0
  %124 = vmatprep.subr.mxu0 0.0
  %125 = vmatpush1.msra.mxu0 0.0
  %126 = vmatprep.subr.mxu0 0.0
  %127 = vmatpush1.msra.mxu0 0.0
  %128 = vmatprep.subr.mxu0 0.0
  %129 = vmatpush1.msra.mxu0 0.0
  %130 = vmatprep.subr.mxu0 0.0
  %131 = vmatpush1.msra.mxu0 0.0
  %132 = vmatprep.subr.mxu0 0.0
  %133 = vmatpush1.msra.mxu0 0.0
  %134 = vmatprep.subr.mxu0 0.0
  %135 = vmatpush1.msra.mxu0 0.0
  %136 = vmatprep.subr.mxu0 0.0
  %137 = vmatpush1.msra.mxu0 0.0
  %138 = vmatprep.subr.mxu0 0.0
  %139 = vmatpush1.msra.mxu0 0.0
  %140 = vmatprep.subr.mxu0 0.0
  %141 = vmatpush1.msra.mxu0 0.0
  %142 = vmatprep.subr.mxu0 0.0
  %143 = vmatpush1.msra.mxu0 0.0
  %144 = vmatprep.subr.mxu0 0.0
  %145 = vmatpush1.msra.mxu0 0.0
  %146 = vmatprep.subr.mxu0 0.0
  %147 = vmatpush1.msra.mxu0 0.0
  %148 = vmatprep.subr.mxu0 0.0
  %149 = vmatpush1.msra.mxu0 0.0
  %150 = vmatprep.subr.mxu0 0.0
  %151 = vmatpush1.msra.mxu0 0.0
  %152 = vmatprep.mubr.f32.mxu0 0.0
  %153 = vmatmul.mubr.f32.gmra.mrb[0].mxu0 %v86
  %v154 = vpop.f32.mrb[0].mxu0
  %v155 = vadd.f32 %v77, %v154
  %v156 = vpop.f32.mrb[0].mxu0
  %v157 = vadd.f32 %v81, %v156
  %158 = vdwg.mxu0
  %vm159 = vcmask 122880
  %v160 = vsel %vm159, %v155, -inf
  %161 = vmax.xlane.f32.xlu0 %v160
  %v162 = vpop.xlane.xlu0 %161
  %v163 = vsub.f32 %v155, %v162
  %v164 = vmul.f32 %v163, 1.442695
  %v165 = vpow.pop %v164
  %v166 = vsel %vm159, %v165, 0.0
  %167 = vadd.xlane.f32.xlu0 %v166
  %v168 = vpop.xlane.xlu0 %167
  %v169 = vrcp.pop %v168
  %v170 = vmul.f32 %v165, %v169
  %vm171 = vcmask 130048
  %v173 = vsel %vm171, %v170, 0
  %175 = vmatprep.subr.mxu0 0.0
  %176 = vmatpush1.msra.mxu0 %v57
  %177 = vmatprep.subr.mxu0 0.0
  %178 = vmatpush1.msra.mxu0 %v58
  %179 = vmatprep.subr.mxu0 0.0
  %180 = vmatpush1.msra.mxu0 0.0
  %181 = vmatprep.subr.mxu0 0.0
  %182 = vmatpush1.msra.mxu0 0.0
  %183 = vmatprep.subr.mxu0 0.0
  %184 = vmatpush1.msra.mxu0 0.0
  %185 = vmatprep.subr.mxu0 0.0
  %186 = vmatpush1.msra.mxu0 0.0
  %187 = vmatprep.subr.mxu0 0.0
  %188 = vmatpush1.msra.mxu0 0.0
  %189 = vmatprep.subr.mxu0 0.0
  %190 = vmatpush1.msra.mxu0 0.0
  %191 = vmatprep.subr.mxu0 0.0
  %192 = vmatpush1.msra.mxu0 0.0
  %193 = vmatprep.subr.mxu0 0.0
  %194 = vmatpush1.msra.mxu0 0.0
  %195 = vmatprep.subr.mxu0 0.0
  %196 = vmatpush1.msra.mxu0 0.0
  %197 = vmatprep.subr.mxu0 0.0
  %198 = vmatpush1.msra.mxu0 0.0
  %199 = vmatprep.subr.mxu0 0.0
  %200 = vmatpush1.msra.mxu0 0.0
  %201 = vmatprep.subr.mxu0 0.0
  %202 = vmatpush1.msra.mxu0 0.0
  %203 = vmatprep.subr.mxu0 0.0
  %204 = vmatpush1.msra.mxu0 0.0
  %205 = vmatprep.subr.mxu0 0.0
  %206 = vmatpush1.msra.mxu0 0.0
  %207 = vmatprep.subr.mxu0 0.0
  %208 = vmatpush1.msra.mxu0 0.0
  %209 = vmatprep.subr.mxu0 0.0
  %210 = vmatpush1.msra.mxu0 0.0
  %211 = vmatprep.subr.mxu0 0.0
  %212 = vmatpush1.msra.mxu0 0.0
  %213 = vmatprep.subr.mxu0 0.0
  %214 = vmatpush1.msra.mxu0 0.0
  %215 = vmatprep.subr.mxu0 0.0
  %216 = vmatpush1.msra.mxu0 0.0
  %217 = vmatprep.subr.mxu0 0.0
  %218 = vmatpush1.msra.mxu0 0.0
  %219 = vmatprep.subr.mxu0 0.0
  %220 = vmatpush1.msra.mxu0 0.0
  %221 = vmatprep.subr.mxu0 0.0
  %222 = vmatpush1.msra.mxu0 0.0
  %223 = vmatprep.subr.mxu0 0.0
  %224 = vmatpush1.msra.mxu0 0.0
  %225 = vmatprep.subr.mxu0 0.0
  %226 = vmatpush1.msra.mxu0 0.0
  %227 = vmatprep.subr.mxu0 0.0
  %228 = vmatpush1.msra.mxu0 0.0
  %229 = vmatprep.subr.mxu0 0.0
  %230 = vmatpush1.msra.mxu0 0.0
  %231 = vmatprep.subr.mxu0 0.0
  %232 = vmatpush1.msra.mxu0 0.0
  %233 = vmatprep.subr.mxu0 0.0
  %234 = vmatpush1.msra.mxu0 0.0
  %235 = vmatprep.subr.mxu0 0.0
  %236 = vmatpush1.msra.mxu0 0.0
  %237 = vmatprep.subr.mxu0 0.0
  %238 = vmatpush1.msra.mxu0 0.0
  %239 = vmatprep.mubr.f32.mxu0 0.0
  %240 = vmatmul.mubr.f32.gmra.mrb[0].mxu0 %v173
  %v241 = vpop.f32.mrb[0].mxu0
  %v242 = vadd.f32 0.0, %v241
  %v243 = vpop.f32.mrb[0].mxu0
  %244 = vdwg.mxu0
  %246 = vrot.lane.b32.xlu0 %v242, 16
  %v247 = vpop.permute.xlu0 %246
  %v249 = vadd.f32 %v155, %v247
  %v250 = vmax.f32 %v249, 0.0
  %252 = vrot.lane.b32.xlu0 %v250, 112
  %v253 = vpop.permute.xlu0 %252
  %256 = vrot.lane.b32.xlu0 %v155, 80
  %v257 = vpop.permute.xlu0 %256
  %258 = vrot.lane.b32.xlu0 %v157, 80
  %v259 = vpop.permute.xlu0 %258
  %vm260 = vcmask 654336
  %v261 = vsel %vm260, %v257, %v259
  %v263 = vsel %vm71, %v253, 0
  %265 = vmatprep.subr.mxu0 0.0
  %266 = vmatpush1.msra.mxu0 %v53
  %267 = vmatprep.subr.mxu0 0.0
  %268 = vmatpush1.msra.mxu0 %v54
  %269 = vmatprep.subr.mxu0 0.0
  %270 = vmatpush1.msra.mxu0 %v55
  %271 = vmatprep.subr.mxu0 0.0
  %272 = vmatpush1.msra.mxu0 %v56
  %273 = vmatprep.subr.mxu0 0.0
  %274 = vmatpush1.msra.mxu0 0.0
  %275 = vmatprep.subr.mxu0 0.0
  %276 = vmatpush1.msra.mxu0 0.0
  %277 = vmatprep.subr.mxu0 0.0
  %278 = vmatpush1.msra.mxu0 0.0
  %279 = vmatprep.subr.mxu0 0.0
  %280 = vmatpush1.msra.mxu0 0.0
  %281 = vmatprep.subr.mxu0 0.0
  %282 = vmatpush1.msra.mxu0 0.0
  %283 = vmatprep.subr.mxu0 0.0
  %284 = vmatpush1.msra.mxu0 0.0
  %285 = vmatprep.subr.mxu0 0.0
  %286 = vmatpush1.msra.mxu0 0.0
  %287 = vmatprep.subr.mxu0 0.0
  %288 = vmatpush1.msra.mxu0 0.0
  %289 = vmatprep.subr.mxu0 0.0
  %290 = vmatpush1.msra.mxu0 0.0
  %291 = vmatprep.subr.mxu0 0.0
  %292 = vmatpush1.msra.mxu0 0.0
  %293 = vmatprep.subr.mxu0 0.0
  %294 = vmatpush1.msra.mxu0 0.0
  %295 = vmatprep.subr.mxu0 0.0
  %296 = vmatpush1.msra.mxu0 0.0
  %297 = vmatprep.subr.mxu0 0.0
  %298 = vmatpush1.msra.mxu0 0.0
  %299 = vmatprep.subr.mxu0 0.0
  %300 = vmatpush1.msra.mxu0 0.0
  %301 = vmatprep.subr.mxu0 0.0
  %302 = vmatpush1.msra.mxu0 0.0
  %303 = vmatprep.subr.mxu0 0.0
  %304 = vmatpush1.msra.mxu0 0.0
  %305 = vmatprep.subr.mxu0 0.0
  %306 = vmatpush1.msra.mxu0 0.0
  %307 = vmatprep.subr.mxu0 0.0
  %308 = vmatpush1.msra.mxu0 0.0
  %309 = vmatprep.subr.mxu0 0.0
  %310 = vmatpush1.msra.mxu0 0.0
  %311 = vmatprep.subr.mxu0 0.0
  %312 = vmatpush1.msra.mxu0 0.0
  %313 = vmatprep.subr.mxu0 0.0
  %314 = vmatpush1.msra.mxu0 0.0
  %315 = vmatprep.subr.mxu0 0.0
  %316 = vmatpush1.msra.mxu0 0.0
  %317 = vmatprep.subr.mxu0 0.0
  %318 = vmatpush1.msra.mxu0 0.0
  %319 = vmatprep.subr.mxu0 0.0
  %320 = vmatpush1.msra.mxu0 0.0
  %321 = vmatprep.subr.mxu0 0.0
  %322 = vmatpush1.msra.mxu0 0.0
  %323 = vmatprep.subr.mxu0 0.0
  %324 = vmatpush1.msra.mxu0 0.0
  %325 = vmatprep.subr.mxu0 0.0
  %326 = vmatpush1.msra.mxu0 0.0
  %327 = vmatprep.subr.mxu0 0.0
  %328 = vmatpush1.msra.mxu0 0.0
  %329 = vmatprep.mubr.f32.mxu0 0.0
  %330 = vmatmul.mubr.f32.gmra.mrb[0].mxu0 %v263
  %v331 = vpop.f32.mrb[0].mxu0
  %v332 = vadd.f32 %v261, %v331
  %v333 = vpop.f32.mrb[0].mxu0
  %334 = vdwg.mxu0
  %v335 = vxor.u32 %v332, 2147483648
  %v336 = vmul.f32 %v335, 1.442695
  %v337 = vpow.pop %v336
  %v338 = vadd.f32 %v337, 1.0
  %v339 = vrcp.pop %v338
  %v340 = vmul.f32 1.0, %v339
  %v341 = vtanh.pop %v332
  %v342 = vmul.f32 %v340, %v59
  %344 = vrot.lane.b32.xlu0 %v341, 64
  %v345 = vpop.permute.xlu0 %344
  %v347 = vmul.f32 %v340, %v345
  %349 = vrot.lane.b32.xlu0 %v347, 32
  %v350 = vpop.permute.xlu0 %349
  %v352 = vadd.f32 %v342, %v350
  %v353 = vtanh.pop %v352
  %355 = vrot.lane.b32.xlu0 %v353, 64
  %v356 = vpop.permute.xlu0 %355
  %v358 = vmul.f32 %v340, %v356
  %360 = vrot.lane.b32.xlu0 %v358, 32
  %v361 = vpop.permute.xlu0 %360
  %vm363 = vcmask 253952
  %364 = vst.msk [vmem:[#allocation2] sm:$0x1] %vm363, %v361
  %365 = vrot.lane.b32.xlu0 %v170, 64
  %v366 = vpop.permute.xlu0 %365
  %vm368 = vcmask 647680
  %369 = vst.msk [vmem:[%s9] sm:$0x1] %vm368, %v366
  %371 = vrot.lane.b32.xlu0 %v352, 80
  %v372 = vpop.permute.xlu0 %371
  %vm374 = vcmask 1041280
  %375 = vst.msk [vmem:[%s9] sm:$0x1] %vm374, %v372
  %376 = vst.msk [vmem:[%s9 + $0x8] sm:$0x1] %vm159, %v372
  %s377 = sld [smem:[#allocation4 + $0x1]]
  %s378 = scalar_lea.vmem %s1, %s377
  %v379 = vld [vmem:[%s378] sm:$0x1]
  %380 = vrot.lane.b32.xlu0 %v358, 64
  %v381 = vpop.permute.xlu0 %380
  %v383 = vsel %vm71, %v379, %v381
  %v385 = vsel %vm84, %v383, 0
  %387 = vmatprep.subr.mxu0 %v37
  %388 = vmatpush1.msra.mxu0 %v36
  %389 = vmatprep.subr.mxu0 %v39
  %390 = vmatpush1.msra.mxu0 %v38
  %391 = vmatprep.subr.mxu0 %v41
  %392 = vmatpush1.msra.mxu0 %v40
  %393 = vmatprep.subr.mxu0 %v43
  %394 = vmatpush1.msra.mxu0 %v42
  %395 = vmatprep.subr.mxu0 %v45
  %396 = vmatpush1.msra.mxu0 %v44
  %397 = vmatprep.subr.mxu0 %v47
  %398 = vmatpush1.msra.mxu0 %v46
  %399 = vmatprep.subr.mxu0 %v49
  %400 = vmatpush1.msra.mxu0 %v48
  %401 = vmatprep.subr.mxu0 %v51
  %402 = vmatpush1.msra.mxu0 %v50
  %403 = vmatprep.subr.mxu0 0.0
  %404 = vmatpush1.msra.mxu0 0.0
  %405 = vmatprep.subr.mxu0 0.0
  %406 = vmatpush1.msra.mxu0 0.0
  %407 = vmatprep.subr.mxu0 0.0
  %408 = vmatpush1.msra.mxu0 0.0
  %409 = vmatprep.subr.mxu0 0.0
  %410 = vmatpush1.msra.mxu0 0.0
  %411 = vmatprep.subr.mxu0 0.0
  %412 = vmatpush1.msra.mxu0 0.0
  %413 = vmatprep.subr.mxu0 0.0
  %414 = vmatpush1.msra.mxu0 0.0
  %415 = vmatprep.subr.mxu0 0.0
  %416 = vmatpush1.msra.mxu0 0.0
  %417 = vmatprep.subr.mxu0 0.0
  %418 = vmatpush1.msra.mxu0 0.0
  %419 = vmatprep.subr.mxu0 0.0
  %420 = vmatpush1.msra.mxu0 0.0
  %421 = vmatprep.subr.mxu0 0.0
  %422 = vmatpush1.msra.mxu0 0.0
  %423 = vmatprep.subr.mxu0 0.0
  %424 = vmatpush1.msra.mxu0 0.0
  %425 = vmatprep.subr.mxu0 0.0
  %426 = vmatpush1.msra.mxu0 0.0
  %427 = vmatprep.subr.mxu0 0.0
  %428 = vmatpush1.msra.mxu0 0.0
  %429 = vmatprep.subr.mxu0 0.0
  %430 = vmatpush1.msra.mxu0 0.0
  %431 = vmatprep.subr.mxu0 0.0
  %432 = vmatpush1.msra.mxu0 0.0
  %433 = vmatprep.subr.mxu0 0.0
  %434 = vmatpush1.msra.mxu0 0.0
  %435 = vmatprep.subr.mxu0 0.0
  %436 = vmatpush1.msra.mxu0 0.0
  %437 = vmatprep.subr.mxu0 0.0
  %438 = vmatpush1.msra.mxu0 0.0
  %439 = vmatprep.subr.mxu0 0.0
  %440 = vmatpush1.msra.mxu0 0.0
  %441 = vmatprep.subr.mxu0 0.0
  %442 = vmatpush1.msra.mxu0 0.0
  %443 = vmatprep.subr.mxu0 0.0
  %444 = vmatpush1.msra.mxu0 0.0
  %445 = vmatprep.subr.mxu0 0.0
  %446 = vmatpush1.msra.mxu0 0.0
  %447 = vmatprep.subr.mxu0 0.0
  %448 = vmatpush1.msra.mxu0 0.0
  %449 = vmatprep.subr.mxu0 0.0
  %450 = vmatpush1.msra.mxu0 0.0
  %451 = vmatprep.mubr.f32.mxu0 0.0
  %452 = vmatmul.mubr.f32.gmra.mrb[0].mxu0 %v385
  %v453 = vpop.f32.mrb[0].mxu0
  %v454 = vadd.f32 %v77, %v453
  %v455 = vpop.f32.mrb[0].mxu0
  %v456 = vadd.f32 %v81, %v455
  %457 = vdwg.mxu0
  %v458 = vsel %vm159, %v454, -inf
  %459 = vmax.xlane.f32.xlu0 %v458
  %v460 = vpop.xlane.xlu0 %459
  %v461 = vsub.f32 %v454, %v460
  %v462 = vmul.f32 %v461, 1.442695
  %v463 = vpow.pop %v462
  %v464 = vsel %vm159, %v463, 0.0
  %465 = vadd.xlane.f32.xlu0 %v464
  %v466 = vpop.xlane.xlu0 %465
  %v467 = vrcp.pop %v466
  %v468 = vmul.f32 %v463, %v467
  %v470 = vsel %vm171, %v468, 0
  %472 = vmatprep.subr.mxu0 0.0
  %473 = vmatpush1.msra.mxu0 %v57
  %474 = vmatprep.subr.mxu0 0.0
  %475 = vmatpush1.msra.mxu0 %v58
  %476 = vmatprep.subr.mxu0 0.0
  %477 = vmatpush1.msra.mxu0 0.0
  %478 = vmatprep.subr.mxu0 0.0
  %479 = vmatpush1.msra.mxu0 0.0
  %480 = vmatprep.subr.mxu0 0.0
  %481 = vmatpush1.msra.mxu0 0.0
  %482 = vmatprep.subr.mxu0 0.0
  %483 = vmatpush1.msra.mxu0 0.0
  %484 = vmatprep.subr.mxu0 0.0
  %485 = vmatpush1.msra.mxu0 0.0
  %486 = vmatprep.subr.mxu0 0.0
  %487 = vmatpush1.msra.mxu0 0.0
  %488 = vmatprep.subr.mxu0 0.0
  %489 = vmatpush1.msra.mxu0 0.0
  %490 = vmatprep.subr.mxu0 0.0
  %491 = vmatpush1.msra.mxu0 0.0
  %492 = vmatprep.subr.mxu0 0.0
  %493 = vmatpush1.msra.mxu0 0.0
  %494 = vmatprep.subr.mxu0 0.0
  %495 = vmatpush1.msra.mxu0 0.0
  %496 = vmatprep.subr.mxu0 0.0
  %497 = vmatpush1.msra.mxu0 0.0
  %498 = vmatprep.subr.mxu0 0.0
  %499 = vmatpush1.msra.mxu0 0.0
  %500 = vmatprep.subr.mxu0 0.0
  %501 = vmatpush1.msra.mxu0 0.0
  %502 = vmatprep.subr.mxu0 0.0
  %503 = vmatpush1.msra.mxu0 0.0
  %504 = vmatprep.subr.mxu0 0.0
  %505 = vmatpush1.msra.mxu0 0.0
  %506 = vmatprep.subr.mxu0 0.0
  %507 = vmatpush1.msra.mxu0 0.0
  %508 = vmatprep.subr.mxu0 0.0
  %509 = vmatpush1.msra.mxu0 0.0
  %510 = vmatprep.subr.mxu0 0.0
  %511 = vmatpush1.msra.mxu0 0.0
  %512 = vmatprep.subr.mxu0 0.0
  %513 = vmatpush1.msra.mxu0 0.0
  %514 = vmatprep.subr.mxu0 0.0
  %515 = vmatpush1.msra.mxu0 0.0
  %516 = vmatprep.subr.mxu0 0.0
  %517 = vmatpush1.msra.mxu0 0.0
  %518 = vmatprep.subr.mxu0 0.0
  %519 = vmatpush1.msra.mxu0 0.0
  %520 = vmatprep.subr.mxu0 0.0
  %521 = vmatpush1.msra.mxu0 0.0
  %522 = vmatprep.subr.mxu0 0.0
  %523 = vmatpush1.msra.mxu0 0.0
  %524 = vmatprep.subr.mxu0 0.0
  %525 = vmatpush1.msra.mxu0 0.0
  %526 = vmatprep.subr.mxu0 0.0
  %527 = vmatpush1.msra.mxu0 0.0
  %528 = vmatprep.subr.mxu0 0.0
  %529 = vmatpush1.msra.mxu0 0.0
  %530 = vmatprep.subr.mxu0 0.0
  %531 = vmatpush1.msra.mxu0 0.0
  %532 = vmatprep.subr.mxu0 0.0
  %533 = vmatpush1.msra.mxu0 0.0
  %534 = vmatprep.subr.mxu0 0.0
  %535 = vmatpush1.msra.mxu0 0.0
  %536 = vmatprep.mubr.f32.mxu0 0.0
  %537 = vmatmul.mubr.f32.gmra.mrb[0].mxu0 %v470
  %v538 = vpop.f32.mrb[0].mxu0
  %v539 = vadd.f32 0.0, %v538
  %v540 = vpop.f32.mrb[0].mxu0
  %541 = vdwg.mxu0
  %543 = vrot.lane.b32.xlu0 %v539, 16
  %v544 = vpop.permute.xlu0 %543
  %v546 = vadd.f32 %v454, %v544
  %v547 = vmax.f32 %v546, 0.0
  %549 = vrot.lane.b32.xlu0 %v547, 112
  %v550 = vpop.permute.xlu0 %549
  %553 = vrot.lane.b32.xlu0 %v454, 80
  %v554 = vpop.permute.xlu0 %553
  %555 = vrot.lane.b32.xlu0 %v456, 80
  %v556 = vpop.permute.xlu0 %555
  %v557 = vsel %vm260, %v554, %v556
  %v559 = vsel %vm71, %v550, 0
  %561 = vmatprep.subr.mxu0 0.0
  %562 = vmatpush1.msra.mxu0 %v53
  %563 = vmatprep.subr.mxu0 0.0
  %564 = vmatpush1.msra.mxu0 %v54
  %565 = vmatprep.subr.mxu0 0.0
  %566 = vmatpush1.msra.mxu0 %v55
  %567 = vmatprep.subr.mxu0 0.0
  %568 = vmatpush1.msra.mxu0 %v56
  %569 = vmatprep.subr.mxu0 0.0
  %570 = vmatpush1.msra.mxu0 0.0
  %571 = vmatprep.subr.mxu0 0.0
  %572 = vmatpush1.msra.mxu0 0.0
  %573 = vmatprep.subr.mxu0 0.0
  %574 = vmatpush1.msra.mxu0 0.0
  %575 = vmatprep.subr.mxu0 0.0
  %576 = vmatpush1.msra.mxu0 0.0
  %577 = vmatprep.subr.mxu0 0.0
  %578 = vmatpush1.msra.mxu0 0.0
  %579 = vmatprep.subr.mxu0 0.0
  %580 = vmatpush1.msra.mxu0 0.0
  %581 = vmatprep.subr.mxu0 0.0
  %582 = vmatpush1.msra.mxu0 0.0
  %583 = vmatprep.subr.mxu0 0.0
  %584 = vmatpush1.msra.mxu0 0.0
  %585 = vmatprep.subr.mxu0 0.0
  %586 = vmatpush1.msra.mxu0 0.0
  %587 = vmatprep.subr.mxu0 0.0
  %588 = vmatpush1.msra.mxu0 0.0
  %589 = vmatprep.subr.mxu0 0.0
  %590 = vmatpush1.msra.mxu0 0.0
  %591 = vmatprep.subr.mxu0 0.0
  %592 = vmatpush1.msra.mxu0 0.0
  %593 = vmatprep.subr.mxu0 0.0
  %594 = vmatpush1.msra.mxu0 0.0
  %595 = vmatprep.subr.mxu0 0.0
  %596 = vmatpush1.msra.mxu0 0.0
  %597 = vmatprep.subr.mxu0 0.0
  %598 = vmatpush1.msra.mxu0 0.0
  %599 = vmatprep.subr.mxu0 0.0
  %600 = vmatpush1.msra.mxu0 0.0
  %601 = vmatprep.subr.mxu0 0.0
  %602 = vmatpush1.msra.mxu0 0.0
  %603 = vmatprep.subr.mxu0 0.0
  %604 = vmatpush1.msra.mxu0 0.0
  %605 = vmatprep.subr.mxu0 0.0
  %606 = vmatpush1.msra.mxu0 0.0
  %607 = vmatprep.subr.mxu0 0.0
  %608 = vmatpush1.msra.mxu0 0.0
  %609 = vmatprep.subr.mxu0 0.0
  %610 = vmatpush1.msra.mxu0 0.0
  %611 = vmatprep.subr.mxu0 0.0
  %612 = vmatpush1.msra.mxu0 0.0
  %613 = vmatprep.subr.mxu0 0.0
  %614 = vmatpush1.msra.mxu0 0.0
  %615 = vmatprep.subr.mxu0 0.0
  %616 = vmatpush1.msra.mxu0 0.0
  %617 = vmatprep.subr.mxu0 0.0
  %618 = vmatpush1.msra.mxu0 0.0
  %619 = vmatprep.subr.mxu0 0.0
  %620 = vmatpush1.msra.mxu0 0.0
  %621 = vmatprep.subr.mxu0 0.0
  %622 = vmatpush1.msra.mxu0 0.0
  %623 = vmatprep.subr.mxu0 0.0
  %624 = vmatpush1.msra.mxu0 0.0
  %625 = vmatprep.mubr.f32.mxu0 0.0
  %626 = vmatmul.mubr.f32.gmra.mrb[0].mxu0 %v559
  %v627 = vpop.f32.mrb[0].mxu0
  %v628 = vadd.f32 %v557, %v627
  %v629 = vpop.f32.mrb[0].mxu0
  %630 = vdwg.mxu0
  %v631 = vxor.u32 %v628, 2147483648
  %v632 = vmul.f32 %v631, 1.442695
  %v633 = vpow.pop %v632
  %v634 = vadd.f32 %v633, 1.0
  %v635 = vrcp.pop %v634
  %v636 = vmul.f32 1.0, %v635
  %v637 = vtanh.pop %v628
  %v638 = vmul.f32 %v636, %v352
  %640 = vrot.lane.b32.xlu0 %v637, 64
  %v641 = vpop.permute.xlu0 %640
  %v643 = vmul.f32 %v636, %v641
  %645 = vrot.lane.b32.xlu0 %v643, 32
  %v646 = vpop.permute.xlu0 %645
  %v648 = vadd.f32 %v638, %v646
  %v649 = vtanh.pop %v648
  %651 = vrot.lane.b32.xlu0 %v649, 64
  %v652 = vpop.permute.xlu0 %651
  %v654 = vmul.f32 %v636, %v652
  %656 = vrot.lane.b32.xlu0 %v654, 32
  %v657 = vpop.permute.xlu0 %656
  %659 = vst.msk [vmem:[#allocation2 + $0x1] sm:$0x1] %vm363, %v657
  %660 = vrot.lane.b32.xlu0 %v468, 64
  %v661 = vpop.permute.xlu0 %660
  %663 = vst.msk [vmem:[%s9 + $0x1] sm:$0x1] %vm368, %v661
  %665 = vrot.lane.b32.xlu0 %v648, 80
  %v666 = vpop.permute.xlu0 %665
  %668 = vst.msk [vmem:[%s9 + $0x1] sm:$0x1] %vm374, %v666
  %669 = vst.msk [vmem:[%s9 + $0x9] sm:$0x1] %vm159, %v666
  %s670 = sld [smem:[#allocation4 + $0x2]]
  %s671 = scalar_lea.vmem %s1, %s670
  %v672 = vld [vmem:[%s671] sm:$0x1]
  %673 = vrot.lane.b32.xlu0 %v654, 64
  %v674 = vpop.permute.xlu0 %673
  %v676 = vsel %vm71, %v672, %v674
  %v678 = vsel %vm84, %v676, 0
  %680 = vmatprep.subr.mxu0 %v37
  %681 = vmatpush1.msra.mxu0 %v36
  %682 = vmatprep.subr.mxu0 %v39
  %683 = vmatpush1.msra.mxu0 %v38
  %684 = vmatprep.subr.mxu0 %v41
  %685 = vmatpush1.msra.mxu0 %v40
  %686 = vmatprep.subr.mxu0 %v43
  %687 = vmatpush1.msra.mxu0 %v42
  %688 = vmatprep.subr.mxu0 %v45
  %689 = vmatpush1.msra.mxu0 %v44
  %690 = vmatprep.subr.mxu0 %v47
  %691 = vmatpush1.msra.mxu0 %v46
  %692 = vmatprep.subr.mxu0 %v49
  %693 = vmatpush1.msra.mxu0 %v48
  %694 = vmatprep.subr.mxu0 %v51
  %695 = vmatpush1.msra.mxu0 %v50
  %696 = vmatprep.subr.mxu0 0.0
  %697 = vmatpush1.msra.mxu0 0.0
  %698 = vmatprep.subr.mxu0 0.0
  %699 = vmatpush1.msra.mxu0 0.0
  %700 = vmatprep.subr.mxu0 0.0
  %701 = vmatpush1.msra.mxu0 0.0
  %702 = vmatprep.subr.mxu0 0.0
  %703 = vmatpush1.msra.mxu0 0.0
  %704 = vmatprep.subr.mxu0 0.0
  %705 = vmatpush1.msra.mxu0 0.0
  %706 = vmatprep.subr.mxu0 0.0
  %707 = vmatpush1.msra.mxu0 0.0
  %708 = vmatprep.subr.mxu0 0.0
  %709 = vmatpush1.msra.mxu0 0.0
  %710 = vmatprep.subr.mxu0 0.0
  %711 = vmatpush1.msra.mxu0 0.0
  %712 = vmatprep.subr.mxu0 0.0
  %713 = vmatpush1.msra.mxu0 0.0
  %714 = vmatprep.subr.mxu0 0.0
  %715 = vmatpush1.msra.mxu0 0.0
  %716 = vmatprep.subr.mxu0 0.0
  %717 = vmatpush1.msra.mxu0 0.0
  %718 = vmatprep.subr.mxu0 0.0
  %719 = vmatpush1.msra.mxu0 0.0
  %720 = vmatprep.subr.mxu0 0.0
  %721 = vmatpush1.msra.mxu0 0.0
  %722 = vmatprep.subr.mxu0 0.0
  %723 = vmatpush1.msra.mxu0 0.0
  %724 = vmatprep.subr.mxu0 0.0
  %725 = vmatpush1.msra.mxu0 0.0
  %726 = vmatprep.subr.mxu0 0.0
  %727 = vmatpush1.msra.mxu0 0.0
  %728 = vmatprep.subr.mxu0 0.0
  %729 = vmatpush1.msra.mxu0 0.0
  %730 = vmatprep.subr.mxu0 0.0
  %731 = vmatpush1.msra.mxu0 0.0
  %732 = vmatprep.subr.mxu0 0.0
  %733 = vmatpush1.msra.mxu0 0.0
  %734 = vmatprep.subr.mxu0 0.0
  %735 = vmatpush1.msra.mxu0 0.0
  %736 = vmatprep.subr.mxu0 0.0
  %737 = vmatpush1.msra.mxu0 0.0
  %738 = vmatprep.subr.mxu0 0.0
  %739 = vmatpush1.msra.mxu0 0.0
  %740 = vmatprep.subr.mxu0 0.0
  %741 = vmatpush1.msra.mxu0 0.0
  %742 = vmatprep.subr.mxu0 0.0
  %743 = vmatpush1.msra.mxu0 0.0
  %744 = vmatprep.mubr.f32.mxu0 0.0
  %745 = vmatmul.mubr.f32.gmra.mrb[0].mxu0 %v678
  %v746 = vpop.f32.mrb[0].mxu0
  %v747 = vadd.f32 %v77, %v746
  %v748 = vpop.f32.mrb[0].mxu0
  %v749 = vadd.f32 %v81, %v748
  %750 = vdwg.mxu0
  %v751 = vsel %vm159, %v747, -inf
  %752 = vmax.xlane.f32.xlu0 %v751
  %v753 = vpop.xlane.xlu0 %752
  %v754 = vsub.f32 %v747, %v753
  %v755 = vmul.f32 %v754, 1.442695
  %v756 = vpow.pop %v755
  %v757 = vsel %vm159, %v756, 0.0
  %758 = vadd.xlane.f32.xlu0 %v757
  %v759 = vpop.xlane.xlu0 %758
  %v760 = vrcp.pop %v759
  %v761 = vmul.f32 %v756, %v760
  %v763 = vsel %vm171, %v761, 0
  %765 = vmatprep.subr.mxu0 0.0
  %766 = vmatpush1.msra.mxu0 %v57
  %767 = vmatprep.subr.mxu0 0.0
  %768 = vmatpush1.msra.mxu0 %v58
  %769 = vmatprep.subr.mxu0 0.0
  %770 = vmatpush1.msra.mxu0 0.0
  %771 = vmatprep.subr.mxu0 0.0
  %772 = vmatpush1.msra.mxu0 0.0
  %773 = vmatprep.subr.mxu0 0.0
  %774 = vmatpush1.msra.mxu0 0.0
  %775 = vmatprep.subr.mxu0 0.0
  %776 = vmatpush1.msra.mxu0 0.0
  %777 = vmatprep.subr.mxu0 0.0
  %778 = vmatpush1.msra.mxu0 0.0
  %779 = vmatprep.subr.mxu0 0.0
  %780 = vmatpush1.msra.mxu0 0.0
  %781 = vmatprep.subr.mxu0 0.0
  %782 = vmatpush1.msra.mxu0 0.0
  %783 = vmatprep.subr.mxu0 0.0
  %784 = vmatpush1.msra.mxu0 0.0
  %785 = vmatprep.subr.mxu0 0.0
  %786 = vmatpush1.msra.mxu0 0.0
  %787 = vmatprep.subr.mxu0 0.0
  %788 = vmatpush1.msra.mxu0 0.0
  %789 = vmatprep.subr.mxu0 0.0
  %790 = vmatpush1.msra.mxu0 0.0
  %791 = vmatprep.subr.mxu0 0.0
  %792 = vmatpush1.msra.mxu0 0.0
  %793 = vmatprep.subr.mxu0 0.0
  %794 = vmatpush1.msra.mxu0 0.0
  %795 = vmatprep.subr.mxu0 0.0
  %796 = vmatpush1.msra.mxu0 0.0
  %797 = vmatprep.subr.mxu0 0.0
  %798 = vmatpush1.msra.mxu0 0.0
  %799 = vmatprep.subr.mxu0 0.0
  %800 = vmatpush1.msra.mxu0 0.0
  %801 = vmatprep.subr.mxu0 0.0
  %802 = vmatpush1.msra.mxu0 0.0
  %803 = vmatprep.subr.mxu0 0.0
  %804 = vmatpush1.msra.mxu0 0.0
  %805 = vmatprep.subr.mxu0 0.0
  %806 = vmatpush1.msra.mxu0 0.0
  %807 = vmatprep.subr.mxu0 0.0
  %808 = vmatpush1.msra.mxu0 0.0
  %809 = vmatprep.subr.mxu0 0.0
  %810 = vmatpush1.msra.mxu0 0.0
  %811 = vmatprep.subr.mxu0 0.0
  %812 = vmatpush1.msra.mxu0 0.0
  %813 = vmatprep.subr.mxu0 0.0
  %814 = vmatpush1.msra.mxu0 0.0
  %815 = vmatprep.subr.mxu0 0.0
  %816 = vmatpush1.msra.mxu0 0.0
  %817 = vmatprep.subr.mxu0 0.0
  %818 = vmatpush1.msra.mxu0 0.0
  %819 = vmatprep.subr.mxu0 0.0
  %820 = vmatpush1.msra.mxu0 0.0
  %821 = vmatprep.subr.mxu0 0.0
  %822 = vmatpush1.msra.mxu0 0.0
  %823 = vmatprep.subr.mxu0 0.0
  %824 = vmatpush1.msra.mxu0 0.0
  %825 = vmatprep.subr.mxu0 0.0
  %826 = vmatpush1.msra.mxu0 0.0
  %827 = vmatprep.subr.mxu0 0.0
  %828 = vmatpush1.msra.mxu0 0.0
  %829 = vmatprep.mubr.f32.mxu0 0.0
  %830 = vmatmul.mubr.f32.gmra.mrb[0].mxu0 %v763
  %v831 = vpop.f32.mrb[0].mxu0
  %v832 = vadd.f32 0.0, %v831
  %v833 = vpop.f32.mrb[0].mxu0
  %834 = vdwg.mxu0
  %836 = vrot.lane.b32.xlu0 %v832, 16
  %v837 = vpop.permute.xlu0 %836
  %v839 = vadd.f32 %v747, %v837
  %v840 = vmax.f32 %v839, 0.0
  %842 = vrot.lane.b32.xlu0 %v840, 112
  %v843 = vpop.permute.xlu0 %842
  %846 = vrot.lane.b32.xlu0 %v747, 80
  %v847 = vpop.permute.xlu0 %846
  %848 = vrot.lane.b32.xlu0 %v749, 80
  %v849 = vpop.permute.xlu0 %848
  %v850 = vsel %vm260, %v847, %v849
  %v852 = vsel %vm71, %v843, 0
  %854 = vmatprep.subr.mxu0 0.0
  %855 = vmatpush1.msra.mxu0 %v53
  %856 = vmatprep.subr.mxu0 0.0
  %857 = vmatpush1.msra.mxu0 %v54
  %858 = vmatprep.subr.mxu0 0.0
  %859 = vmatpush1.msra.mxu0 %v55
  %860 = vmatprep.subr.mxu0 0.0
  %861 = vmatpush1.msra.mxu0 %v56
  %862 = vmatprep.subr.mxu0 0.0
  %863 = vmatpush1.msra.mxu0 0.0
  %864 = vmatprep.subr.mxu0 0.0
  %865 = vmatpush1.msra.mxu0 0.0
  %866 = vmatprep.subr.mxu0 0.0
  %867 = vmatpush1.msra.mxu0 0.0
  %868 = vmatprep.subr.mxu0 0.0
  %869 = vmatpush1.msra.mxu0 0.0
  %870 = vmatprep.subr.mxu0 0.0
  %871 = vmatpush1.msra.mxu0 0.0
  %872 = vmatprep.subr.mxu0 0.0
  %873 = vmatpush1.msra.mxu0 0.0
  %874 = vmatprep.subr.mxu0 0.0
  %875 = vmatpush1.msra.mxu0 0.0
  %876 = vmatprep.subr.mxu0 0.0
  %877 = vmatpush1.msra.mxu0 0.0
  %878 = vmatprep.subr.mxu0 0.0
  %879 = vmatpush1.msra.mxu0 0.0
  %880 = vmatprep.subr.mxu0 0.0
  %881 = vmatpush1.msra.mxu0 0.0
  %882 = vmatprep.subr.mxu0 0.0
  %883 = vmatpush1.msra.mxu0 0.0
  %884 = vmatprep.subr.mxu0 0.0
  %885 = vmatpush1.msra.mxu0 0.0
  %886 = vmatprep.subr.mxu0 0.0
  %887 = vmatpush1.msra.mxu0 0.0
  %888 = vmatprep.subr.mxu0 0.0
  %889 = vmatpush1.msra.mxu0 0.0
  %890 = vmatprep.subr.mxu0 0.0
  %891 = vmatpush1.msra.mxu0 0.0
  %892 = vmatprep.subr.mxu0 0.0
  %893 = vmatpush1.msra.mxu0 0.0
  %894 = vmatprep.subr.mxu0 0.0
  %895 = vmatpush1.msra.mxu0 0.0
  %896 = vmatprep.subr.mxu0 0.0
  %897 = vmatpush1.msra.mxu0 0.0
  %898 = vmatprep.subr.mxu0 0.0
  %899 = vmatpush1.msra.mxu0 0.0
  %900 = vmatprep.subr.mxu0 0.0
  %901 = vmatpush1.msra.mxu0 0.0
  %902 = vmatprep.subr.mxu0 0.0
  %903 = vmatpush1.msra.mxu0 0.0
  %904 = vmatprep.subr.mxu0 0.0
  %905 = vmatpush1.msra.mxu0 0.0
  %906 = vmatprep.subr.mxu0 0.0
  %907 = vmatpush1.msra.mxu0 0.0
  %908 = vmatprep.subr.mxu0 0.0
  %909 = vmatpush1.msra.mxu0 0.0
  %910 = vmatprep.subr.mxu0 0.0
  %911 = vmatpush1.msra.mxu0 0.0
  %912 = vmatprep.subr.mxu0 0.0
  %913 = vmatpush1.msra.mxu0 0.0
  %914 = vmatprep.subr.mxu0 0.0
  %915 = vmatpush1.msra.mxu0 0.0
  %916 = vmatprep.subr.mxu0 0.0
  %917 = vmatpush1.msra.mxu0 0.0
  %918 = vmatprep.mubr.f32.mxu0 0.0
  %919 = vmatmul.mubr.f32.gmra.mrb[0].mxu0 %v852
  %v920 = vpop.f32.mrb[0].mxu0
  %v921 = vadd.f32 %v850, %v920
  %v922 = vpop.f32.mrb[0].mxu0
  %923 = vdwg.mxu0
  %v924 = vxor.u32 %v921, 2147483648
  %v925 = vmul.f32 %v924, 1.442695
  %v926 = vpow.pop %v925
  %v927 = vadd.f32 %v926, 1.0
  %v928 = vrcp.pop %v927
  %v929 = vmul.f32 1.0, %v928
  %v930 = vtanh.pop %v921
  %v931 = vmul.f32 %v929, %v648
  %933 = vrot.lane.b32.xlu0 %v930, 64
  %v934 = vpop.permute.xlu0 %933
  %v936 = vmul.f32 %v929, %v934
  %938 = vrot.lane.b32.xlu0 %v936, 32
  %v939 = vpop.permute.xlu0 %938
  %v941 = vadd.f32 %v931, %v939
  %v942 = vtanh.pop %v941
  %944 = vrot.lane.b32.xlu0 %v942, 64
  %v945 = vpop.permute.xlu0 %944
  %v947 = vmul.f32 %v929, %v945
  %949 = vrot.lane.b32.xlu0 %v947, 32
  %v950 = vpop.permute.xlu0 %949
  %952 = vst.msk [vmem:[#allocation2 + $0x2] sm:$0x1] %vm363, %v950
  %953 = vrot.lane.b32.xlu0 %v761, 64
  %v954 = vpop.permute.xlu0 %953
  %956 = vst.msk [vmem:[%s9 + $0x2] sm:$0x1] %vm368, %v954
  %958 = vrot.lane.b32.xlu0 %v941, 80
  %v959 = vpop.permute.xlu0 %958
  %961 = vst.msk [vmem:[%s9 + $0x2] sm:$0x1] %vm374, %v959
  %962 = vst.msk [vmem:[%s9 + $0xa] sm:$0x1] %vm159, %v959
  %s963 = sld [smem:[#allocation4 + $0x3]]
  %s964 = scalar_lea.vmem %s1, %s963
  %v965 = vld [vmem:[%s964] sm:$0x1]
  %966 = vrot.lane.b32.xlu0 %v947, 64
  %v967 = vpop.permute.xlu0 %966
  %v969 = vsel %vm71, %v965, %v967
  %v971 = vsel %vm84, %v969, 0
  %973 = vmatprep.subr.mxu0 %v37
  %974 = vmatpush1.msra.mxu0 %v36
  %975 = vmatprep.subr.mxu0 %v39
  %976 = vmatpush1.msra.mxu0 %v38
  %977 = vmatprep.subr.mxu0 %v41
  %978 = vmatpush1.msra.mxu0 %v40
  %979 = vmatprep.subr.mxu0 %v43
  %980 = vmatpush1.msra.mxu0 %v42
  %981 = vmatprep.subr.mxu0 %v45
  %982 = vmatpush1.msra.mxu0 %v44
  %983 = vmatprep.subr.mxu0 %v47
  %984 = vmatpush1.msra.mxu0 %v46
  %985 = vmatprep.subr.mxu0 %v49
  %986 = vmatpush1.msra.mxu0 %v48
  %987 = vmatprep.subr.mxu0 %v51
  %988 = vmatpush1.msra.mxu0 %v50
  %989 = vmatprep.subr.mxu0 0.0
  %990 = vmatpush1.msra.mxu0 0.0
  %991 = vmatprep.subr.mxu0 0.0
  %992 = vmatpush1.msra.mxu0 0.0
  %993 = vmatprep.subr.mxu0 0.0
  %994 = vmatpush1.msra.mxu0 0.0
  %995 = vmatprep.subr.mxu0 0.0
  %996 = vmatpush1.msra.mxu0 0.0
  %997 = vmatprep.subr.mxu0 0.0
  %998 = vmatpush1.msra.mxu0 0.0
  %999 = vmatprep.subr.mxu0 0.0
  %1000 = vmatpush1.msra.mxu0 0.0
  %1001 = vmatprep.subr.mxu0 0.0
  %1002 = vmatpush1.msra.mxu0 0.0
  %1003 = vmatprep.subr.mxu0 0.0
  %1004 = vmatpush1.msra.mxu0 0.0
  %1005 = vmatprep.subr.mxu0 0.0
  %1006 = vmatpush1.msra.mxu0 0.0
  %1007 = vmatprep.subr.mxu0 0.0
  %1008 = vmatpush1.msra.mxu0 0.0
  %1009 = vmatprep.subr.mxu0 0.0
  %1010 = vmatpush1.msra.mxu0 0.0
  %1011 = vmatprep.subr.mxu0 0.0
  %1012 = vmatpush1.msra.mxu0 0.0
  %1013 = vmatprep.subr.mxu0 0.0
  %1014 = vmatpush1.msra.mxu0 0.0
  %1015 = vmatprep.subr.mxu0 0.0
  %1016 = vmatpush1.msra.mxu0 0.0
  %1017 = vmatprep.subr.mxu0 0.0
  %1018 = vmatpush1.msra.mxu0 0.0
  %1019 = vmatprep.subr.mxu0 0.0
  %1020 = vmatpush1.msra.mxu0 0.0
  %1021 = vmatprep.subr.mxu0 0.0
  %1022 = vmatpush1.msra.mxu0 0.0
  %1023 = vmatprep.subr.mxu0 0.0
  %1024 = vmatpush1.msra.mxu0 0.0
  %1025 = vmatprep.subr.mxu0 0.0
  %1026 = vmatpush1.msra.mxu0 0.0
  %1027 = vmatprep.subr.mxu0 0.0
  %1028 = vmatpush1.msra.mxu0 0.0
  %1029 = vmatprep.subr.mxu0 0.0
  %1030 = vmatpush1.msra.mxu0 0.0
  %1031 = vmatprep.subr.mxu0 0.0
  %1032 = vmatpush1.msra.mxu0 0.0
  %1033 = vmatprep.subr.mxu0 0.0
  %1034 = vmatpush1.msra.mxu0 0.0
  %1035 = vmatprep.subr.mxu0 0.0
  %1036 = vmatpush1.msra.mxu0 0.0
  %1037 = vmatprep.mubr.f32.mxu0 0.0
  %1038 = vmatmul.mubr.f32.gmra.mrb[0].mxu0 %v971
  %v1039 = vpop.f32.mrb[0].mxu0
  %v1040 = vadd.f32 %v77, %v1039
  %v1041 = vpop.f32.mrb[0].mxu0
  %v1042 = vadd.f32 %v81, %v1041
  %1043 = vdwg.mxu0
  %v1044 = vsel %vm159, %v1040, -inf
  %1045 = vmax.xlane.f32.xlu0 %v1044
  %v1046 = vpop.xlane.xlu0 %1045
  %v1047 = vsub.f32 %v1040, %v1046
  %v1048 = vmul.f32 %v1047, 1.442695
  %v1049 = vpow.pop %v1048
  %v1050 = vsel %vm159, %v1049, 0.0
  %1051 = vadd.xlane.f32.xlu0 %v1050
  %v1052 = vpop.xlane.xlu0 %1051
  %v1053 = vrcp.pop %v1052
  %v1054 = vmul.f32 %v1049, %v1053
  %v1056 = vsel %vm171, %v1054, 0
  %1058 = vmatprep.subr.mxu0 0.0
  %1059 = vmatpush1.msra.mxu0 %v57
  %1060 = vmatprep.subr.mxu0 0.0
  %1061 = vmatpush1.msra.mxu0 %v58
  %1062 = vmatprep.subr.mxu0 0.0
  %1063 = vmatpush1.msra.mxu0 0.0
  %1064 = vmatprep.subr.mxu0 0.0
  %1065 = vmatpush1.msra.mxu0 0.0
  %1066 = vmatprep.subr.mxu0 0.0
  %1067 = vmatpush1.msra.mxu0 0.0
  %1068 = vmatprep.subr.mxu0 0.0
  %1069 = vmatpush1.msra.mxu0 0.0
  %1070 = vmatprep.subr.mxu0 0.0
  %1071 = vmatpush1.msra.mxu0 0.0
  %1072 = vmatprep.subr.mxu0 0.0
  %1073 = vmatpush1.msra.mxu0 0.0
  %1074 = vmatprep.subr.mxu0 0.0
  %1075 = vmatpush1.msra.mxu0 0.0
  %1076 = vmatprep.subr.mxu0 0.0
  %1077 = vmatpush1.msra.mxu0 0.0
  %1078 = vmatprep.subr.mxu0 0.0
  %1079 = vmatpush1.msra.mxu0 0.0
  %1080 = vmatprep.subr.mxu0 0.0
  %1081 = vmatpush1.msra.mxu0 0.0
  %1082 = vmatprep.subr.mxu0 0.0
  %1083 = vmatpush1.msra.mxu0 0.0
  %1084 = vmatprep.subr.mxu0 0.0
  %1085 = vmatpush1.msra.mxu0 0.0
  %1086 = vmatprep.subr.mxu0 0.0
  %1087 = vmatpush1.msra.mxu0 0.0
  %1088 = vmatprep.subr.mxu0 0.0
  %1089 = vmatpush1.msra.mxu0 0.0
  %1090 = vmatprep.subr.mxu0 0.0
  %1091 = vmatpush1.msra.mxu0 0.0
  %1092 = vmatprep.subr.mxu0 0.0
  %1093 = vmatpush1.msra.mxu0 0.0
  %1094 = vmatprep.subr.mxu0 0.0
  %1095 = vmatpush1.msra.mxu0 0.0
  %1096 = vmatprep.subr.mxu0 0.0
  %1097 = vmatpush1.msra.mxu0 0.0
  %1098 = vmatprep.subr.mxu0 0.0
  %1099 = vmatpush1.msra.mxu0 0.0
  %1100 = vmatprep.subr.mxu0 0.0
  %1101 = vmatpush1.msra.mxu0 0.0
  %1102 = vmatprep.subr.mxu0 0.0
  %1103 = vmatpush1.msra.mxu0 0.0
  %1104 = vmatprep.subr.mxu0 0.0
  %1105 = vmatpush1.msra.mxu0 0.0
  %1106 = vmatprep.subr.mxu0 0.0
  %1107 = vmatpush1.msra.mxu0 0.0
  %1108 = vmatprep.subr.mxu0 0.0
  %1109 = vmatpush1.msra.mxu0 0.0
  %1110 = vmatprep.subr.mxu0 0.0
  %1111 = vmatpush1.msra.mxu0 0.0
  %1112 = vmatprep.subr.mxu0 0.0
  %1113 = vmatpush1.msra.mxu0 0.0
  %1114 = vmatprep.subr.mxu0 0.0
  %1115 = vmatpush1.msra.mxu0 0.0
  %1116 = vmatprep.subr.mxu0 0.0
  %1117 = vmatpush1.msra.mxu0 0.0
  %1118 = vmatprep.subr.mxu0 0.0
  %1119 = vmatpush1.msra.mxu0 0.0
  %1120 = vmatprep.subr.mxu0 0.0
  %1121 = vmatpush1.msra.mxu0 0.0
  %1122 = vmatprep.mubr.f32.mxu0 0.0
  %1123 = vmatmul.mubr.f32.gmra.mrb[0].mxu0 %v1056
  %v1124 = vpop.f32.mrb[0].mxu0
  %v1125 = vadd.f32 0.0, %v1124
  %v1126 = vpop.f32.mrb[0].mxu0
  %1127 = vdwg.mxu0
  %1129 = vrot.lane.b32.xlu0 %v1125, 16
  %v1130 = vpop.permute.xlu0 %1129
  %v1132 = vadd.f32 %v1040, %v1130
  %v1133 = vmax.f32 %v1132, 0.0
  %1135 = vrot.lane.b32.xlu0 %v1133, 112
  %v1136 = vpop.permute.xlu0 %1135
  %1139 = vrot.lane.b32.xlu0 %v1040, 80
  %v1140 = vpop.permute.xlu0 %1139
  %1141 = vrot.lane.b32.xlu0 %v1042, 80
  %v1142 = vpop.permute.xlu0 %1141
  %v1143 = vsel %vm260, %v1140, %v1142
  %v1145 = vsel %vm71, %v1136, 0
  %1147 = vmatprep.subr.mxu0 0.0
  %1148 = vmatpush1.msra.mxu0 %v53
  %1149 = vmatprep.subr.mxu0 0.0
  %1150 = vmatpush1.msra.mxu0 %v54
  %1151 = vmatprep.subr.mxu0 0.0
  %1152 = vmatpush1.msra.mxu0 %v55
  %1153 = vmatprep.subr.mxu0 0.0
  %1154 = vmatpush1.msra.mxu0 %v56
  %1155 = vmatprep.subr.mxu0 0.0
  %1156 = vmatpush1.msra.mxu0 0.0
  %1157 = vmatprep.subr.mxu0 0.0
  %1158 = vmatpush1.msra.mxu0 0.0
  %1159 = vmatprep.subr.mxu0 0.0
  %1160 = vmatpush1.msra.mxu0 0.0
  %1161 = vmatprep.subr.mxu0 0.0
  %1162 = vmatpush1.msra.mxu0 0.0
  %1163 = vmatprep.subr.mxu0 0.0
  %1164 = vmatpush1.msra.mxu0 0.0
  %1165 = vmatprep.subr.mxu0 0.0
  %1166 = vmatpush1.msra.mxu0 0.0
  %1167 = vmatprep.subr.mxu0 0.0
  %1168 = vmatpush1.msra.mxu0 0.0
  %1169 = vmatprep.subr.mxu0 0.0
  %1170 = vmatpush1.msra.mxu0 0.0
  %1171 = vmatprep.subr.mxu0 0.0
  %1172 = vmatpush1.msra.mxu0 0.0
  %1173 = vmatprep.subr.mxu0 0.0
  %1174 = vmatpush1.msra.mxu0 0.0
  %1175 = vmatprep.subr.mxu0 0.0
  %1176 = vmatpush1.msra.mxu0 0.0
  %1177 = vmatprep.subr.mxu0 0.0
  %1178 = vmatpush1.msra.mxu0 0.0
  %1179 = vmatprep.subr.mxu0 0.0
  %1180 = vmatpush1.msra.mxu0 0.0
  %1181 = vmatprep.subr.mxu0 0.0
  %1182 = vmatpush1.msra.mxu0 0.0
  %1183 = vmatprep.subr.mxu0 0.0
  %1184 = vmatpush1.msra.mxu0 0.0
  %1185 = vmatprep.subr.mxu0 0.0
  %1186 = vmatpush1.msra.mxu0 0.0
  %1187 = vmatprep.subr.mxu0 0.0
  %1188 = vmatpush1.msra.mxu0 0.0
  %1189 = vmatprep.subr.mxu0 0.0
  %1190 = vmatpush1.msra.mxu0 0.0
  %1191 = vmatprep.subr.mxu0 0.0
  %1192 = vmatpush1.msra.mxu0 0.0
  %1193 = vmatprep.subr.mxu0 0.0
  %1194 = vmatpush1.msra.mxu0 0.0
  %1195 = vmatprep.subr.mxu0 0.0
  %1196 = vmatpush1.msra.mxu0 0.0
  %1197 = vmatprep.subr.mxu0 0.0
  %1198 = vmatpush1.msra.mxu0 0.0
  %1199 = vmatprep.subr.mxu0 0.0
  %1200 = vmatpush1.msra.mxu0 0.0
  %1201 = vmatprep.subr.mxu0 0.0
  %1202 = vmatpush1.msra.mxu0 0.0
  %1203 = vmatprep.subr.mxu0 0.0
  %1204 = vmatpush1.msra.mxu0 0.0
  %1205 = vmatprep.subr.mxu0 0.0
  %1206 = vmatpush1.msra.mxu0 0.0
  %1207 = vmatprep.subr.mxu0 0.0
  %1208 = vmatpush1.msra.mxu0 0.0
  %1209 = vmatprep.subr.mxu0 0.0
  %1210 = vmatpush1.msra.mxu0 0.0
  %1211 = vmatprep.mubr.f32.mxu0 0.0
  %1212 = vmatmul.mubr.f32.gmra.mrb[0].mxu0 %v1145
  %v1213 = vpop.f32.mrb[0].mxu0
  %v1214 = vadd.f32 %v1143, %v1213
  %v1215 = vpop.f32.mrb[0].mxu0
  %1216 = vdwg.mxu0
  %v1217 = vxor.u32 %v1214, 2147483648
  %v1218 = vmul.f32 %v1217, 1.442695
  %v1219 = vpow.pop %v1218
  %v1220 = vadd.f32 %v1219, 1.0
  %v1221 = vrcp.pop %v1220
  %v1222 = vmul.f32 1.0, %v1221
  %v1223 = vtanh.pop %v1214
  %v1224 = vmul.f32 %v1222, %v941
  %1226 = vrot.lane.b32.xlu0 %v1223, 64
  %v1227 = vpop.permute.xlu0 %1226
  %v1229 = vmul.f32 %v1222, %v1227
  %1231 = vrot.lane.b32.xlu0 %v1229, 32
  %v1232 = vpop.permute.xlu0 %1231
  %v1234 = vadd.f32 %v1224, %v1232
  %v1235 = vtanh.pop %v1234
  %1237 = vrot.lane.b32.xlu0 %v1235, 64
  %v1238 = vpop.permute.xlu0 %1237
  %v1240 = vmul.f32 %v1222, %v1238
  %1242 = vrot.lane.b32.xlu0 %v1240, 32
  %v1243 = vpop.permute.xlu0 %1242
  %1245 = vst.msk [vmem:[#allocation2 + $0x3] sm:$0x1] %vm363, %v1243
  %1246 = vrot.lane.b32.xlu0 %v1054, 64
  %v1247 = vpop.permute.xlu0 %1246
  %1249 = vst.msk [vmem:[%s9 + $0x3] sm:$0x1] %vm368, %v1247
  %1251 = vrot.lane.b32.xlu0 %v1234, 80
  %v1252 = vpop.permute.xlu0 %1251
  %1254 = vst.msk [vmem:[%s9 + $0x3] sm:$0x1] %vm374, %v1252
  %1255 = vst.msk [vmem:[%s9 + $0xb] sm:$0x1] %vm159, %v1252
  %s1256 = sld [smem:[#allocation4 + $0x4]]
  %s1257 = scalar_lea.vmem %s1, %s1256
  %v1258 = vld [vmem:[%s1257] sm:$0x1]
  %1259 = vrot.lane.b32.xlu0 %v1240, 64
  %v1260 = vpop.permute.xlu0 %1259
  %v1262 = vsel %vm71, %v1258, %v1260
  %v1264 = vsel %vm84, %v1262, 0
  %1266 = vmatprep.subr.mxu0 %v37
  %1267 = vmatpush1.msra.mxu0 %v36
  %1268 = vmatprep.subr.mxu0 %v39
  %1269 = vmatpush1.msra.mxu0 %v38
  %1270 = vmatprep.subr.mxu0 %v41
  %1271 = vmatpush1.msra.mxu0 %v40
  %1272 = vmatprep.subr.mxu0 %v43
  %1273 = vmatpush1.msra.mxu0 %v42
  %1274 = vmatprep.subr.mxu0 %v45
  %1275 = vmatpush1.msra.mxu0 %v44
  %1276 = vmatprep.subr.mxu0 %v47
  %1277 = vmatpush1.msra.mxu0 %v46
  %1278 = vmatprep.subr.mxu0 %v49
  %1279 = vmatpush1.msra.mxu0 %v48
  %1280 = vmatprep.subr.mxu0 %v51
  %1281 = vmatpush1.msra.mxu0 %v50
  %1282 = vmatprep.subr.mxu0 0.0
  %1283 = vmatpush1.msra.mxu0 0.0
  %1284 = vmatprep.subr.mxu0 0.0
  %1285 = vmatpush1.msra.mxu0 0.0
  %1286 = vmatprep.subr.mxu0 0.0
  %1287 = vmatpush1.msra.mxu0 0.0
  %1288 = vmatprep.subr.mxu0 0.0
  %1289 = vmatpush1.msra.mxu0 0.0
  %1290 = vmatprep.subr.mxu0 0.0
  %1291 = vmatpush1.msra.mxu0 0.0
  %1292 = vmatprep.subr.mxu0 0.0
  %1293 = vmatpush1.msra.mxu0 0.0
  %1294 = vmatprep.subr.mxu0 0.0
  %1295 = vmatpush1.msra.mxu0 0.0
  %1296 = vmatprep.subr.mxu0 0.0
  %1297 = vmatpush1.msra.mxu0 0.0
  %1298 = vmatprep.subr.mxu0 0.0
  %1299 = vmatpush1.msra.mxu0 0.0
  %1300 = vmatprep.subr.mxu0 0.0
  %1301 = vmatpush1.msra.mxu0 0.0
  %1302 = vmatprep.subr.mxu0 0.0
  %1303 = vmatpush1.msra.mxu0 0.0
  %1304 = vmatprep.subr.mxu0 0.0
  %1305 = vmatpush1.msra.mxu0 0.0
  %1306 = vmatprep.subr.mxu0 0.0
  %1307 = vmatpush1.msra.mxu0 0.0
  %1308 = vmatprep.subr.mxu0 0.0
  %1309 = vmatpush1.msra.mxu0 0.0
  %1310 = vmatprep.subr.mxu0 0.0
  %1311 = vmatpush1.msra.mxu0 0.0
  %1312 = vmatprep.subr.mxu0 0.0
  %1313 = vmatpush1.msra.mxu0 0.0
  %1314 = vmatprep.subr.mxu0 0.0
  %1315 = vmatpush1.msra.mxu0 0.0
  %1316 = vmatprep.subr.mxu0 0.0
  %1317 = vmatpush1.msra.mxu0 0.0
  %1318 = vmatprep.subr.mxu0 0.0
  %1319 = vmatpush1.msra.mxu0 0.0
  %1320 = vmatprep.subr.mxu0 0.0
  %1321 = vmatpush1.msra.mxu0 0.0
  %1322 = vmatprep.subr.mxu0 0.0
  %1323 = vmatpush1.msra.mxu0 0.0
  %1324 = vmatprep.subr.mxu0 0.0
  %1325 = vmatpush1.msra.mxu0 0.0
  %1326 = vmatprep.subr.mxu0 0.0
  %1327 = vmatpush1.msra.mxu0 0.0
  %1328 = vmatprep.subr.mxu0 0.0
  %1329 = vmatpush1.msra.mxu0 0.0
  %1330 = vmatprep.mubr.f32.mxu0 0.0
  %1331 = vmatmul.mubr.f32.gmra.mrb[0].mxu0 %v1264
  %v1332 = vpop.f32.mrb[0].mxu0
  %v1333 = vadd.f32 %v77, %v1332
  %v1334 = vpop.f32.mrb[0].mxu0
  %v1335 = vadd.f32 %v81, %v1334
  %1336 = vdwg.mxu0
  %v1337 = vsel %vm159, %v1333, -inf
  %1338 = vmax.xlane.f32.xlu0 %v1337
  %v1339 = vpop.xlane.xlu0 %1338
  %v1340 = vsub.f32 %v1333, %v1339
  %v1341 = vmul.f32 %v1340, 1.442695
  %v1342 = vpow.pop %v1341
  %v1343 = vsel %vm159, %v1342, 0.0
  %1344 = vadd.xlane.f32.xlu0 %v1343
  %v1345 = vpop.xlane.xlu0 %1344
  %v1346 = vrcp.pop %v1345
  %v1347 = vmul.f32 %v1342, %v1346
  %v1349 = vsel %vm171, %v1347, 0
  %1351 = vmatprep.subr.mxu0 0.0
  %1352 = vmatpush1.msra.mxu0 %v57
  %1353 = vmatprep.subr.mxu0 0.0
  %1354 = vmatpush1.msra.mxu0 %v58
  %1355 = vmatprep.subr.mxu0 0.0
  %1356 = vmatpush1.msra.mxu0 0.0
  %1357 = vmatprep.subr.mxu0 0.0
  %1358 = vmatpush1.msra.mxu0 0.0
  %1359 = vmatprep.subr.mxu0 0.0
  %1360 = vmatpush1.msra.mxu0 0.0
  %1361 = vmatprep.subr.mxu0 0.0
  %1362 = vmatpush1.msra.mxu0 0.0
  %1363 = vmatprep.subr.mxu0 0.0
  %1364 = vmatpush1.msra.mxu0 0.0
  %1365 = vmatprep.subr.mxu0 0.0
  %1366 = vmatpush1.msra.mxu0 0.0
  %1367 = vmatprep.subr.mxu0 0.0
  %1368 = vmatpush1.msra.mxu0 0.0
  %1369 = vmatprep.subr.mxu0 0.0
  %1370 = vmatpush1.msra.mxu0 0.0
  %1371 = vmatprep.subr.mxu0 0.0
  %1372 = vmatpush1.msra.mxu0 0.0
  %1373 = vmatprep.subr.mxu0 0.0
  %1374 = vmatpush1.msra.mxu0 0.0
  %1375 = vmatprep.subr.mxu0 0.0
  %1376 = vmatpush1.msra.mxu0 0.0
  %1377 = vmatprep.subr.mxu0 0.0
  %1378 = vmatpush1.msra.mxu0 0.0
  %1379 = vmatprep.subr.mxu0 0.0
  %1380 = vmatpush1.msra.mxu0 0.0
  %1381 = vmatprep.subr.mxu0 0.0
  %1382 = vmatpush1.msra.mxu0 0.0
  %1383 = vmatprep.subr.mxu0 0.0
  %1384 = vmatpush1.msra.mxu0 0.0
  %1385 = vmatprep.subr.mxu0 0.0
  %1386 = vmatpush1.msra.mxu0 0.0
  %1387 = vmatprep.subr.mxu0 0.0
  %1388 = vmatpush1.msra.mxu0 0.0
  %1389 = vmatprep.subr.mxu0 0.0
  %1390 = vmatpush1.msra.mxu0 0.0
  %1391 = vmatprep.subr.mxu0 0.0
  %1392 = vmatpush1.msra.mxu0 0.0
  %1393 = vmatprep.subr.mxu0 0.0
  %1394 = vmatpush1.msra.mxu0 0.0
  %1395 = vmatprep.subr.mxu0 0.0
  %1396 = vmatpush1.msra.mxu0 0.0
  %1397 = vmatprep.subr.mxu0 0.0
  %1398 = vmatpush1.msra.mxu0 0.0
  %1399 = vmatprep.subr.mxu0 0.0
  %1400 = vmatpush1.msra.mxu0 0.0
  %1401 = vmatprep.subr.mxu0 0.0
  %1402 = vmatpush1.msra.mxu0 0.0
  %1403 = vmatprep.subr.mxu0 0.0
  %1404 = vmatpush1.msra.mxu0 0.0
  %1405 = vmatprep.subr.mxu0 0.0
  %1406 = vmatpush1.msra.mxu0 0.0
  %1407 = vmatprep.subr.mxu0 0.0
  %1408 = vmatpush1.msra.mxu0 0.0
  %1409 = vmatprep.subr.mxu0 0.0
  %1410 = vmatpush1.msra.mxu0 0.0
  %1411 = vmatprep.subr.mxu0 0.0
  %1412 = vmatpush1.msra.mxu0 0.0
  %1413 = vmatprep.subr.mxu0 0.0
  %1414 = vmatpush1.msra.mxu0 0.0
  %1415 = vmatprep.mubr.f32.mxu0 0.0
  %1416 = vmatmul.mubr.f32.gmra.mrb[0].mxu0 %v1349
  %v1417 = vpop.f32.mrb[0].mxu0
  %v1418 = vadd.f32 0.0, %v1417
  %v1419 = vpop.f32.mrb[0].mxu0
  %1420 = vdwg.mxu0
  %1422 = vrot.lane.b32.xlu0 %v1418, 16
  %v1423 = vpop.permute.xlu0 %1422
  %v1425 = vadd.f32 %v1333, %v1423
  %v1426 = vmax.f32 %v1425, 0.0
  %1428 = vrot.lane.b32.xlu0 %v1426, 112
  %v1429 = vpop.permute.xlu0 %1428
  %1432 = vrot.lane.b32.xlu0 %v1333, 80
  %v1433 = vpop.permute.xlu0 %1432
  %1434 = vrot.lane.b32.xlu0 %v1335, 80
  %v1435 = vpop.permute.xlu0 %1434
  %v1436 = vsel %vm260, %v1433, %v1435
  %v1438 = vsel %vm71, %v1429, 0
  %1440 = vmatprep.subr.mxu0 0.0
  %1441 = vmatpush1.msra.mxu0 %v53
  %1442 = vmatprep.subr.mxu0 0.0
  %1443 = vmatpush1.msra.mxu0 %v54
  %1444 = vmatprep.subr.mxu0 0.0
  %1445 = vmatpush1.msra.mxu0 %v55
  %1446 = vmatprep.subr.mxu0 0.0
  %1447 = vmatpush1.msra.mxu0 %v56
  %1448 = vmatprep.subr.mxu0 0.0
  %1449 = vmatpush1.msra.mxu0 0.0
  %1450 = vmatprep.subr.mxu0 0.0
  %1451 = vmatpush1.msra.mxu0 0.0
  %1452 = vmatprep.subr.mxu0 0.0
  %1453 = vmatpush1.msra.mxu0 0.0
  %1454 = vmatprep.subr.mxu0 0.0
  %1455 = vmatpush1.msra.mxu0 0.0
  %1456 = vmatprep.subr.mxu0 0.0
  %1457 = vmatpush1.msra.mxu0 0.0
  %1458 = vmatprep.subr.mxu0 0.0
  %1459 = vmatpush1.msra.mxu0 0.0
  %1460 = vmatprep.subr.mxu0 0.0
  %1461 = vmatpush1.msra.mxu0 0.0
  %1462 = vmatprep.subr.mxu0 0.0
  %1463 = vmatpush1.msra.mxu0 0.0
  %1464 = vmatprep.subr.mxu0 0.0
  %1465 = vmatpush1.msra.mxu0 0.0
  %1466 = vmatprep.subr.mxu0 0.0
  %1467 = vmatpush1.msra.mxu0 0.0
  %1468 = vmatprep.subr.mxu0 0.0
  %1469 = vmatpush1.msra.mxu0 0.0
  %1470 = vmatprep.subr.mxu0 0.0
  %1471 = vmatpush1.msra.mxu0 0.0
  %1472 = vmatprep.subr.mxu0 0.0
  %1473 = vmatpush1.msra.mxu0 0.0
  %1474 = vmatprep.subr.mxu0 0.0
  %1475 = vmatpush1.msra.mxu0 0.0
  %1476 = vmatprep.subr.mxu0 0.0
  %1477 = vmatpush1.msra.mxu0 0.0
  %1478 = vmatprep.subr.mxu0 0.0
  %1479 = vmatpush1.msra.mxu0 0.0
  %1480 = vmatprep.subr.mxu0 0.0
  %1481 = vmatpush1.msra.mxu0 0.0
  %1482 = vmatprep.subr.mxu0 0.0
  %1483 = vmatpush1.msra.mxu0 0.0
  %1484 = vmatprep.subr.mxu0 0.0
  %1485 = vmatpush1.msra.mxu0 0.0
  %1486 = vmatprep.subr.mxu0 0.0
  %1487 = vmatpush1.msra.mxu0 0.0
  %1488 = vmatprep.subr.mxu0 0.0
  %1489 = vmatpush1.msra.mxu0 0.0
  %1490 = vmatprep.subr.mxu0 0.0
  %1491 = vmatpush1.msra.mxu0 0.0
  %1492 = vmatprep.subr.mxu0 0.0
  %1493 = vmatpush1.msra.mxu0 0.0
  %1494 = vmatprep.subr.mxu0 0.0
  %1495 = vmatpush1.msra.mxu0 0.0
  %1496 = vmatprep.subr.mxu0 0.0
  %1497 = vmatpush1.msra.mxu0 0.0
  %1498 = vmatprep.subr.mxu0 0.0
  %1499 = vmatpush1.msra.mxu0 0.0
  %1500 = vmatprep.subr.mxu0 0.0
  %1501 = vmatpush1.msra.mxu0 0.0
  %1502 = vmatprep.subr.mxu0 0.0
  %1503 = vmatpush1.msra.mxu0 0.0
  %1504 = vmatprep.mubr.f32.mxu0 0.0
  %1505 = vmatmul.mubr.f32.gmra.mrb[0].mxu0 %v1438
  %v1506 = vpop.f32.mrb[0].mxu0
  %v1507 = vadd.f32 %v1436, %v1506
  %v1508 = vpop.f32.mrb[0].mxu0
  %1509 = vdwg.mxu0
  %v1510 = vxor.u32 %v1507, 2147483648
  %v1511 = vmul.f32 %v1510, 1.442695
  %v1512 = vpow.pop %v1511
  %v1513 = vadd.f32 %v1512, 1.0
  %v1514 = vrcp.pop %v1513
  %v1515 = vmul.f32 1.0, %v1514
  %v1516 = vtanh.pop %v1507
  %v1517 = vmul.f32 %v1515, %v1234
  %1519 = vrot.lane.b32.xlu0 %v1516, 64
  %v1520 = vpop.permute.xlu0 %1519
  %v1522 = vmul.f32 %v1515, %v1520
  %1524 = vrot.lane.b32.xlu0 %v1522, 32
  %v1525 = vpop.permute.xlu0 %1524
  %v1527 = vadd.f32 %v1517, %v1525
  %v1528 = vtanh.pop %v1527
  %1530 = vrot.lane.b32.xlu0 %v1528, 64
  %v1531 = vpop.permute.xlu0 %1530
  %v1533 = vmul.f32 %v1515, %v1531
  %1535 = vrot.lane.b32.xlu0 %v1533, 32
  %v1536 = vpop.permute.xlu0 %1535
  %1538 = vst.msk [vmem:[#allocation2 + $0x4] sm:$0x1] %vm363, %v1536
  %1539 = vrot.lane.b32.xlu0 %v1347, 64
  %v1540 = vpop.permute.xlu0 %1539
  %1542 = vst.msk [vmem:[%s9 + $0x4] sm:$0x1] %vm368, %v1540
  %1544 = vrot.lane.b32.xlu0 %v1527, 80
  %v1545 = vpop.permute.xlu0 %1544
  %1547 = vst.msk [vmem:[%s9 + $0x4] sm:$0x1] %vm374, %v1545
  %1548 = vst.msk [vmem:[%s9 + $0xc] sm:$0x1] %vm159, %v1545
  %s1549 = sld [smem:[#allocation4 + $0x5]]
  %s1550 = scalar_lea.vmem %s1, %s1549
  %v1551 = vld [vmem:[%s1550] sm:$0x1]
  %1552 = vrot.lane.b32.xlu0 %v1533, 64
  %v1553 = vpop.permute.xlu0 %1552
  %v1555 = vsel %vm71, %v1551, %v1553
  %v1557 = vsel %vm84, %v1555, 0
  %1559 = vmatprep.subr.mxu0 %v37
  %1560 = vmatpush1.msra.mxu0 %v36
  %1561 = vmatprep.subr.mxu0 %v39
  %1562 = vmatpush1.msra.mxu0 %v38
  %1563 = vmatprep.subr.mxu0 %v41
  %1564 = vmatpush1.msra.mxu0 %v40
  %1565 = vmatprep.subr.mxu0 %v43
  %1566 = vmatpush1.msra.mxu0 %v42
  %1567 = vmatprep.subr.mxu0 %v45
  %1568 = vmatpush1.msra.mxu0 %v44
  %1569 = vmatprep.subr.mxu0 %v47
  %1570 = vmatpush1.msra.mxu0 %v46
  %1571 = vmatprep.subr.mxu0 %v49
  %1572 = vmatpush1.msra.mxu0 %v48
  %1573 = vmatprep.subr.mxu0 %v51
  %1574 = vmatpush1.msra.mxu0 %v50
  %1575 = vmatprep.subr.mxu0 0.0
  %1576 = vmatpush1.msra.mxu0 0.0
  %1577 = vmatprep.subr.mxu0 0.0
  %1578 = vmatpush1.msra.mxu0 0.0
  %1579 = vmatprep.subr.mxu0 0.0
  %1580 = vmatpush1.msra.mxu0 0.0
  %1581 = vmatprep.subr.mxu0 0.0
  %1582 = vmatpush1.msra.mxu0 0.0
  %1583 = vmatprep.subr.mxu0 0.0
  %1584 = vmatpush1.msra.mxu0 0.0
  %1585 = vmatprep.subr.mxu0 0.0
  %1586 = vmatpush1.msra.mxu0 0.0
  %1587 = vmatprep.subr.mxu0 0.0
  %1588 = vmatpush1.msra.mxu0 0.0
  %1589 = vmatprep.subr.mxu0 0.0
  %1590 = vmatpush1.msra.mxu0 0.0
  %1591 = vmatprep.subr.mxu0 0.0
  %1592 = vmatpush1.msra.mxu0 0.0
  %1593 = vmatprep.subr.mxu0 0.0
  %1594 = vmatpush1.msra.mxu0 0.0
  %1595 = vmatprep.subr.mxu0 0.0
  %1596 = vmatpush1.msra.mxu0 0.0
  %1597 = vmatprep.subr.mxu0 0.0
  %1598 = vmatpush1.msra.mxu0 0.0
  %1599 = vmatprep.subr.mxu0 0.0
  %1600 = vmatpush1.msra.mxu0 0.0
  %1601 = vmatprep.subr.mxu0 0.0
  %1602 = vmatpush1.msra.mxu0 0.0
  %1603 = vmatprep.subr.mxu0 0.0
  %1604 = vmatpush1.msra.mxu0 0.0
  %1605 = vmatprep.subr.mxu0 0.0
  %1606 = vmatpush1.msra.mxu0 0.0
  %1607 = vmatprep.subr.mxu0 0.0
  %1608 = vmatpush1.msra.mxu0 0.0
  %1609 = vmatprep.subr.mxu0 0.0
  %1610 = vmatpush1.msra.mxu0 0.0
  %1611 = vmatprep.subr.mxu0 0.0
  %1612 = vmatpush1.msra.mxu0 0.0
  %1613 = vmatprep.subr.mxu0 0.0
  %1614 = vmatpush1.msra.mxu0 0.0
  %1615 = vmatprep.subr.mxu0 0.0
  %1616 = vmatpush1.msra.mxu0 0.0
  %1617 = vmatprep.subr.mxu0 0.0
  %1618 = vmatpush1.msra.mxu0 0.0
  %1619 = vmatprep.subr.mxu0 0.0
  %1620 = vmatpush1.msra.mxu0 0.0
  %1621 = vmatprep.subr.mxu0 0.0
  %1622 = vmatpush1.msra.mxu0 0.0
  %1623 = vmatprep.mubr.f32.mxu0 0.0
  %1624 = vmatmul.mubr.f32.gmra.mrb[0].mxu0 %v1557
  %v1625 = vpop.f32.mrb[0].mxu0
  %v1626 = vadd.f32 %v77, %v1625
  %v1627 = vpop.f32.mrb[0].mxu0
  %v1628 = vadd.f32 %v81, %v1627
  %1629 = vdwg.mxu0
  %v1630 = vsel %vm159, %v1626, -inf
  %1631 = vmax.xlane.f32.xlu0 %v1630
  %v1632 = vpop.xlane.xlu0 %1631
  %v1633 = vsub.f32 %v1626, %v1632
  %v1634 = vmul.f32 %v1633, 1.442695
  %v1635 = vpow.pop %v1634
  %v1636 = vsel %vm159, %v1635, 0.0
  %1637 = vadd.xlane.f32.xlu0 %v1636
  %v1638 = vpop.xlane.xlu0 %1637
  %v1639 = vrcp.pop %v1638
  %v1640 = vmul.f32 %v1635, %v1639
  %v1642 = vsel %vm171, %v1640, 0
  %1644 = vmatprep.subr.mxu0 0.0
  %1645 = vmatpush1.msra.mxu0 %v57
  %1646 = vmatprep.subr.mxu0 0.0
  %1647 = vmatpush1.msra.mxu0 %v58
  %1648 = vmatprep.subr.mxu0 0.0
  %1649 = vmatpush1.msra.mxu0 0.0
  %1650 = vmatprep.subr.mxu0 0.0
  %1651 = vmatpush1.msra.mxu0 0.0
  %1652 = vmatprep.subr.mxu0 0.0
  %1653 = vmatpush1.msra.mxu0 0.0
  %1654 = vmatprep.subr.mxu0 0.0
  %1655 = vmatpush1.msra.mxu0 0.0
  %1656 = vmatprep.subr.mxu0 0.0
  %1657 = vmatpush1.msra.mxu0 0.0
  %1658 = vmatprep.subr.mxu0 0.0
  %1659 = vmatpush1.msra.mxu0 0.0
  %1660 = vmatprep.subr.mxu0 0.0
  %1661 = vmatpush1.msra.mxu0 0.0
  %1662 = vmatprep.subr.mxu0 0.0
  %1663 = vmatpush1.msra.mxu0 0.0
  %1664 = vmatprep.subr.mxu0 0.0
  %1665 = vmatpush1.msra.mxu0 0.0
  %1666 = vmatprep.subr.mxu0 0.0
  %1667 = vmatpush1.msra.mxu0 0.0
  %1668 = vmatprep.subr.mxu0 0.0
  %1669 = vmatpush1.msra.mxu0 0.0
  %1670 = vmatprep.subr.mxu0 0.0
  %1671 = vmatpush1.msra.mxu0 0.0
  %1672 = vmatprep.subr.mxu0 0.0
  %1673 = vmatpush1.msra.mxu0 0.0
  %1674 = vmatprep.subr.mxu0 0.0
  %1675 = vmatpush1.msra.mxu0 0.0
  %1676 = vmatprep.subr.mxu0 0.0
  %1677 = vmatpush1.msra.mxu0 0.0
  %1678 = vmatprep.subr.mxu0 0.0
  %1679 = vmatpush1.msra.mxu0 0.0
  %1680 = vmatprep.subr.mxu0 0.0
  %1681 = vmatpush1.msra.mxu0 0.0
  %1682 = vmatprep.subr.mxu0 0.0
  %1683 = vmatpush1.msra.mxu0 0.0
  %1684 = vmatprep.subr.mxu0 0.0
  %1685 = vmatpush1.msra.mxu0 0.0
  %1686 = vmatprep.subr.mxu0 0.0
  %1687 = vmatpush1.msra.mxu0 0.0
  %1688 = vmatprep.subr.mxu0 0.0
  %1689 = vmatpush1.msra.mxu0 0.0
  %1690 = vmatprep.subr.mxu0 0.0
  %1691 = vmatpush1.msra.mxu0 0.0
  %1692 = vmatprep.subr.mxu0 0.0
  %1693 = vmatpush1.msra.mxu0 0.0
  %1694 = vmatprep.subr.mxu0 0.0
  %1695 = vmatpush1.msra.mxu0 0.0
  %1696 = vmatprep.subr.mxu0 0.0
  %1697 = vmatpush1.msra.mxu0 0.0
  %1698 = vmatprep.subr.mxu0 0.0
  %1699 = vmatpush1.msra.mxu0 0.0
  %1700 = vmatprep.subr.mxu0 0.0
  %1701 = vmatpush1.msra.mxu0 0.0
  %1702 = vmatprep.subr.mxu0 0.0
  %1703 = vmatpush1.msra.mxu0 0.0
  %1704 = vmatprep.subr.mxu0 0.0
  %1705 = vmatpush1.msra.mxu0 0.0
  %1706 = vmatprep.subr.mxu0 0.0
  %1707 = vmatpush1.msra.mxu0 0.0
  %1708 = vmatprep.mubr.f32.mxu0 0.0
  %1709 = vmatmul.mubr.f32.gmra.mrb[0].mxu0 %v1642
  %v1710 = vpop.f32.mrb[0].mxu0
  %v1711 = vadd.f32 0.0, %v1710
  %v1712 = vpop.f32.mrb[0].mxu0
  %1713 = vdwg.mxu0
  %1715 = vrot.lane.b32.xlu0 %v1711, 16
  %v1716 = vpop.permute.xlu0 %1715
  %v1718 = vadd.f32 %v1626, %v1716
  %v1719 = vmax.f32 %v1718, 0.0
  %1721 = vrot.lane.b32.xlu0 %v1719, 112
  %v1722 = vpop.permute.xlu0 %1721
  %1725 = vrot.lane.b32.xlu0 %v1626, 80
  %v1726 = vpop.permute.xlu0 %1725
  %1727 = vrot.lane.b32.xlu0 %v1628, 80
  %v1728 = vpop.permute.xlu0 %1727
  %v1729 = vsel %vm260, %v1726, %v1728
  %v1731 = vsel %vm71, %v1722, 0
  %1733 = vmatprep.subr.mxu0 0.0
  %1734 = vmatpush1.msra.mxu0 %v53
  %1735 = vmatprep.subr.mxu0 0.0
  %1736 = vmatpush1.msra.mxu0 %v54
  %1737 = vmatprep.subr.mxu0 0.0
  %1738 = vmatpush1.msra.mxu0 %v55
  %1739 = vmatprep.subr.mxu0 0.0
  %1740 = vmatpush1.msra.mxu0 %v56
  %1741 = vmatprep.subr.mxu0 0.0
  %1742 = vmatpush1.msra.mxu0 0.0
  %1743 = vmatprep.subr.mxu0 0.0
  %1744 = vmatpush1.msra.mxu0 0.0
  %1745 = vmatprep.subr.mxu0 0.0
  %1746 = vmatpush1.msra.mxu0 0.0
  %1747 = vmatprep.subr.mxu0 0.0
  %1748 = vmatpush1.msra.mxu0 0.0
  %1749 = vmatprep.subr.mxu0 0.0
  %1750 = vmatpush1.msra.mxu0 0.0
  %1751 = vmatprep.subr.mxu0 0.0
  %1752 = vmatpush1.msra.mxu0 0.0
  %1753 = vmatprep.subr.mxu0 0.0
  %1754 = vmatpush1.msra.mxu0 0.0
  %1755 = vmatprep.subr.mxu0 0.0
  %1756 = vmatpush1.msra.mxu0 0.0
  %1757 = vmatprep.subr.mxu0 0.0
  %1758 = vmatpush1.msra.mxu0 0.0
  %1759 = vmatprep.subr.mxu0 0.0
  %1760 = vmatpush1.msra.mxu0 0.0
  %1761 = vmatprep.subr.mxu0 0.0
  %1762 = vmatpush1.msra.mxu0 0.0
  %1763 = vmatprep.subr.mxu0 0.0
  %1764 = vmatpush1.msra.mxu0 0.0
  %1765 = vmatprep.subr.mxu0 0.0
  %1766 = vmatpush1.msra.mxu0 0.0
  %1767 = vmatprep.subr.mxu0 0.0
  %1768 = vmatpush1.msra.mxu0 0.0
  %1769 = vmatprep.subr.mxu0 0.0
  %1770 = vmatpush1.msra.mxu0 0.0
  %1771 = vmatprep.subr.mxu0 0.0
  %1772 = vmatpush1.msra.mxu0 0.0
  %1773 = vmatprep.subr.mxu0 0.0
  %1774 = vmatpush1.msra.mxu0 0.0
  %1775 = vmatprep.subr.mxu0 0.0
  %1776 = vmatpush1.msra.mxu0 0.0
  %1777 = vmatprep.subr.mxu0 0.0
  %1778 = vmatpush1.msra.mxu0 0.0
  %1779 = vmatprep.subr.mxu0 0.0
  %1780 = vmatpush1.msra.mxu0 0.0
  %1781 = vmatprep.subr.mxu0 0.0
  %1782 = vmatpush1.msra.mxu0 0.0
  %1783 = vmatprep.subr.mxu0 0.0
  %1784 = vmatpush1.msra.mxu0 0.0
  %1785 = vmatprep.subr.mxu0 0.0
  %1786 = vmatpush1.msra.mxu0 0.0
  %1787 = vmatprep.subr.mxu0 0.0
  %1788 = vmatpush1.msra.mxu0 0.0
  %1789 = vmatprep.subr.mxu0 0.0
  %1790 = vmatpush1.msra.mxu0 0.0
  %1791 = vmatprep.subr.mxu0 0.0
  %1792 = vmatpush1.msra.mxu0 0.0
  %1793 = vmatprep.subr.mxu0 0.0
  %1794 = vmatpush1.msra.mxu0 0.0
  %1795 = vmatprep.subr.mxu0 0.0
  %1796 = vmatpush1.msra.mxu0 0.0
  %1797 = vmatprep.mubr.f32.mxu0 0.0
  %1798 = vmatmul.mubr.f32.gmra.mrb[0].mxu0 %v1731
  %v1799 = vpop.f32.mrb[0].mxu0
  %v1800 = vadd.f32 %v1729, %v1799
  %v1801 = vpop.f32.mrb[0].mxu0
  %1802 = vdwg.mxu0
  %v1803 = vxor.u32 %v1800, 2147483648
  %v1804 = vmul.f32 %v1803, 1.442695
  %v1805 = vpow.pop %v1804
  %v1806 = vadd.f32 %v1805, 1.0
  %v1807 = vrcp.pop %v1806
  %v1808 = vmul.f32 1.0, %v1807
  %v1809 = vtanh.pop %v1800
  %v1810 = vmul.f32 %v1808, %v1527
  %1812 = vrot.lane.b32.xlu0 %v1809, 64
  %v1813 = vpop.permute.xlu0 %1812
  %v1815 = vmul.f32 %v1808, %v1813
  %1817 = vrot.lane.b32.xlu0 %v1815, 32
  %v1818 = vpop.permute.xlu0 %1817
  %v1820 = vadd.f32 %v1810, %v1818
  %v1821 = vtanh.pop %v1820
  %1823 = vrot.lane.b32.xlu0 %v1821, 64
  %v1824 = vpop.permute.xlu0 %1823
  %v1826 = vmul.f32 %v1808, %v1824
  %1828 = vrot.lane.b32.xlu0 %v1826, 32
  %v1829 = vpop.permute.xlu0 %1828
  %1831 = vst.msk [vmem:[#allocation2 + $0x5] sm:$0x1] %vm363, %v1829
  %1832 = vrot.lane.b32.xlu0 %v1640, 64
  %v1833 = vpop.permute.xlu0 %1832
  %1835 = vst.msk [vmem:[%s9 + $0x5] sm:$0x1] %vm368, %v1833
  %1837 = vrot.lane.b32.xlu0 %v1820, 80
  %v1838 = vpop.permute.xlu0 %1837
  %1840 = vst.msk [vmem:[%s9 + $0x5] sm:$0x1] %vm374, %v1838
  %1841 = vst.msk [vmem:[%s9 + $0xd] sm:$0x1] %vm159, %v1838
  %s1842 = sld [smem:[#allocation4 + $0x6]]
  %s1843 = scalar_lea.vmem %s1, %s1842
  %v1844 = vld [vmem:[%s1843] sm:$0x1]
  %1845 = vrot.lane.b32.xlu0 %v1826, 64
  %v1846 = vpop.permute.xlu0 %1845
  %v1848 = vsel %vm71, %v1844, %v1846
  %v1850 = vsel %vm84, %v1848, 0
  %1852 = vmatprep.subr.mxu0 %v37
  %1853 = vmatpush1.msra.mxu0 %v36
  %1854 = vmatprep.subr.mxu0 %v39
  %1855 = vmatpush1.msra.mxu0 %v38
  %1856 = vmatprep.subr.mxu0 %v41
  %1857 = vmatpush1.msra.mxu0 %v40
  %1858 = vmatprep.subr.mxu0 %v43
  %1859 = vmatpush1.msra.mxu0 %v42
  %1860 = vmatprep.subr.mxu0 %v45
  %1861 = vmatpush1.msra.mxu0 %v44
  %1862 = vmatprep.subr.mxu0 %v47
  %1863 = vmatpush1.msra.mxu0 %v46
  %1864 = vmatprep.subr.mxu0 %v49
  %1865 = vmatpush1.msra.mxu0 %v48
  %1866 = vmatprep.subr.mxu0 %v51
  %1867 = vmatpush1.msra.mxu0 %v50
  %1868 = vmatprep.subr.mxu0 0.0
  %1869 = vmatpush1.msra.mxu0 0.0
  %1870 = vmatprep.subr.mxu0 0.0
  %1871 = vmatpush1.msra.mxu0 0.0
  %1872 = vmatprep.subr.mxu0 0.0
  %1873 = vmatpush1.msra.mxu0 0.0
  %1874 = vmatprep.subr.mxu0 0.0
  %1875 = vmatpush1.msra.mxu0 0.0
  %1876 = vmatprep.subr.mxu0 0.0
  %1877 = vmatpush1.msra.mxu0 0.0
  %1878 = vmatprep.subr.mxu0 0.0
  %1879 = vmatpush1.msra.mxu0 0.0
  %1880 = vmatprep.subr.mxu0 0.0
  %1881 = vmatpush1.msra.mxu0 0.0
  %1882 = vmatprep.subr.mxu0 0.0
  %1883 = vmatpush1.msra.mxu0 0.0
  %1884 = vmatprep.subr.mxu0 0.0
  %1885 = vmatpush1.msra.mxu0 0.0
  %1886 = vmatprep.subr.mxu0 0.0
  %1887 = vmatpush1.msra.mxu0 0.0
  %1888 = vmatprep.subr.mxu0 0.0
  %1889 = vmatpush1.msra.mxu0 0.0
  %1890 = vmatprep.subr.mxu0 0.0
  %1891 = vmatpush1.msra.mxu0 0.0
  %1892 = vmatprep.subr.mxu0 0.0
  %1893 = vmatpush1.msra.mxu0 0.0
  %1894 = vmatprep.subr.mxu0 0.0
  %1895 = vmatpush1.msra.mxu0 0.0
  %1896 = vmatprep.subr.mxu0 0.0
  %1897 = vmatpush1.msra.mxu0 0.0
  %1898 = vmatprep.subr.mxu0 0.0
  %1899 = vmatpush1.msra.mxu0 0.0
  %1900 = vmatprep.subr.mxu0 0.0
  %1901 = vmatpush1.msra.mxu0 0.0
  %1902 = vmatprep.subr.mxu0 0.0
  %1903 = vmatpush1.msra.mxu0 0.0
  %1904 = vmatprep.subr.mxu0 0.0
  %1905 = vmatpush1.msra.mxu0 0.0
  %1906 = vmatprep.subr.mxu0 0.0
  %1907 = vmatpush1.msra.mxu0 0.0
  %1908 = vmatprep.subr.mxu0 0.0
  %1909 = vmatpush1.msra.mxu0 0.0
  %1910 = vmatprep.subr.mxu0 0.0
  %1911 = vmatpush1.msra.mxu0 0.0
  %1912 = vmatprep.subr.mxu0 0.0
  %1913 = vmatpush1.msra.mxu0 0.0
  %1914 = vmatprep.subr.mxu0 0.0
  %1915 = vmatpush1.msra.mxu0 0.0
  %1916 = vmatprep.mubr.f32.mxu0 0.0
  %1917 = vmatmul.mubr.f32.gmra.mrb[0].mxu0 %v1850
  %v1918 = vpop.f32.mrb[0].mxu0
  %v1919 = vadd.f32 %v77, %v1918
  %v1920 = vpop.f32.mrb[0].mxu0
  %v1921 = vadd.f32 %v81, %v1920
  %1922 = vdwg.mxu0
  %v1923 = vsel %vm159, %v1919, -inf
  %1924 = vmax.xlane.f32.xlu0 %v1923
  %v1925 = vpop.xlane.xlu0 %1924
  %v1926 = vsub.f32 %v1919, %v1925
  %v1927 = vmul.f32 %v1926, 1.442695
  %v1928 = vpow.pop %v1927
  %v1929 = vsel %vm159, %v1928, 0.0
  %1930 = vadd.xlane.f32.xlu0 %v1929
  %v1931 = vpop.xlane.xlu0 %1930
  %v1932 = vrcp.pop %v1931
  %v1933 = vmul.f32 %v1928, %v1932
  %v1935 = vsel %vm171, %v1933, 0
  %1937 = vmatprep.subr.mxu0 0.0
  %1938 = vmatpush1.msra.mxu0 %v57
  %1939 = vmatprep.subr.mxu0 0.0
  %1940 = vmatpush1.msra.mxu0 %v58
  %1941 = vmatprep.subr.mxu0 0.0
  %1942 = vmatpush1.msra.mxu0 0.0
  %1943 = vmatprep.subr.mxu0 0.0
  %1944 = vmatpush1.msra.mxu0 0.0
  %1945 = vmatprep.subr.mxu0 0.0
  %1946 = vmatpush1.msra.mxu0 0.0
  %1947 = vmatprep.subr.mxu0 0.0
  %1948 = vmatpush1.msra.mxu0 0.0
  %1949 = vmatprep.subr.mxu0 0.0
  %1950 = vmatpush1.msra.mxu0 0.0
  %1951 = vmatprep.subr.mxu0 0.0
  %1952 = vmatpush1.msra.mxu0 0.0
  %1953 = vmatprep.subr.mxu0 0.0
  %1954 = vmatpush1.msra.mxu0 0.0
  %1955 = vmatprep.subr.mxu0 0.0
  %1956 = vmatpush1.msra.mxu0 0.0
  %1957 = vmatprep.subr.mxu0 0.0
  %1958 = vmatpush1.msra.mxu0 0.0
  %1959 = vmatprep.subr.mxu0 0.0
  %1960 = vmatpush1.msra.mxu0 0.0
  %1961 = vmatprep.subr.mxu0 0.0
  %1962 = vmatpush1.msra.mxu0 0.0
  %1963 = vmatprep.subr.mxu0 0.0
  %1964 = vmatpush1.msra.mxu0 0.0
  %1965 = vmatprep.subr.mxu0 0.0
  %1966 = vmatpush1.msra.mxu0 0.0
  %1967 = vmatprep.subr.mxu0 0.0
  %1968 = vmatpush1.msra.mxu0 0.0
  %1969 = vmatprep.subr.mxu0 0.0
  %1970 = vmatpush1.msra.mxu0 0.0
  %1971 = vmatprep.subr.mxu0 0.0
  %1972 = vmatpush1.msra.mxu0 0.0
  %1973 = vmatprep.subr.mxu0 0.0
  %1974 = vmatpush1.msra.mxu0 0.0
  %1975 = vmatprep.subr.mxu0 0.0
  %1976 = vmatpush1.msra.mxu0 0.0
  %1977 = vmatprep.subr.mxu0 0.0
  %1978 = vmatpush1.msra.mxu0 0.0
  %1979 = vmatprep.subr.mxu0 0.0
  %1980 = vmatpush1.msra.mxu0 0.0
  %1981 = vmatprep.subr.mxu0 0.0
  %1982 = vmatpush1.msra.mxu0 0.0
  %1983 = vmatprep.subr.mxu0 0.0
  %1984 = vmatpush1.msra.mxu0 0.0
  %1985 = vmatprep.subr.mxu0 0.0
  %1986 = vmatpush1.msra.mxu0 0.0
  %1987 = vmatprep.subr.mxu0 0.0
  %1988 = vmatpush1.msra.mxu0 0.0
  %1989 = vmatprep.subr.mxu0 0.0
  %1990 = vmatpush1.msra.mxu0 0.0
  %1991 = vmatprep.subr.mxu0 0.0
  %1992 = vmatpush1.msra.mxu0 0.0
  %1993 = vmatprep.subr.mxu0 0.0
  %1994 = vmatpush1.msra.mxu0 0.0
  %1995 = vmatprep.subr.mxu0 0.0
  %1996 = vmatpush1.msra.mxu0 0.0
  %1997 = vmatprep.subr.mxu0 0.0
  %1998 = vmatpush1.msra.mxu0 0.0
  %1999 = vmatprep.subr.mxu0 0.0
  %2000 = vmatpush1.msra.mxu0 0.0
  %2001 = vmatprep.mubr.f32.mxu0 0.0
  %2002 = vmatmul.mubr.f32.gmra.mrb[0].mxu0 %v1935
  %v2003 = vpop.f32.mrb[0].mxu0
  %v2004 = vadd.f32 0.0, %v2003
  %v2005 = vpop.f32.mrb[0].mxu0
  %2006 = vdwg.mxu0
  %2008 = vrot.lane.b32.xlu0 %v2004, 16
  %v2009 = vpop.permute.xlu0 %2008
  %v2011 = vadd.f32 %v1919, %v2009
  %v2012 = vmax.f32 %v2011, 0.0
  %2014 = vrot.lane.b32.xlu0 %v2012, 112
  %v2015 = vpop.permute.xlu0 %2014
  %2018 = vrot.lane.b32.xlu0 %v1919, 80
  %v2019 = vpop.permute.xlu0 %2018
  %2020 = vrot.lane.b32.xlu0 %v1921, 80
  %v2021 = vpop.permute.xlu0 %2020
  %v2022 = vsel %vm260, %v2019, %v2021
  %v2024 = vsel %vm71, %v2015, 0
  %2026 = vmatprep.subr.mxu0 0.0
  %2027 = vmatpush1.msra.mxu0 %v53
  %2028 = vmatprep.subr.mxu0 0.0
  %2029 = vmatpush1.msra.mxu0 %v54
  %2030 = vmatprep.subr.mxu0 0.0
  %2031 = vmatpush1.msra.mxu0 %v55
  %2032 = vmatprep.subr.mxu0 0.0
  %2033 = vmatpush1.msra.mxu0 %v56
  %2034 = vmatprep.subr.mxu0 0.0
  %2035 = vmatpush1.msra.mxu0 0.0
  %2036 = vmatprep.subr.mxu0 0.0
  %2037 = vmatpush1.msra.mxu0 0.0
  %2038 = vmatprep.subr.mxu0 0.0
  %2039 = vmatpush1.msra.mxu0 0.0
  %2040 = vmatprep.subr.mxu0 0.0
  %2041 = vmatpush1.msra.mxu0 0.0
  %2042 = vmatprep.subr.mxu0 0.0
  %2043 = vmatpush1.msra.mxu0 0.0
  %2044 = vmatprep.subr.mxu0 0.0
  %2045 = vmatpush1.msra.mxu0 0.0
  %2046 = vmatprep.subr.mxu0 0.0
  %2047 = vmatpush1.msra.mxu0 0.0
  %2048 = vmatprep.subr.mxu0 0.0
  %2049 = vmatpush1.msra.mxu0 0.0
  %2050 = vmatprep.subr.mxu0 0.0
  %2051 = vmatpush1.msra.mxu0 0.0
  %2052 = vmatprep.subr.mxu0 0.0
  %2053 = vmatpush1.msra.mxu0 0.0
  %2054 = vmatprep.subr.mxu0 0.0
  %2055 = vmatpush1.msra.mxu0 0.0
  %2056 = vmatprep.subr.mxu0 0.0
  %2057 = vmatpush1.msra.mxu0 0.0
  %2058 = vmatprep.subr.mxu0 0.0
  %2059 = vmatpush1.msra.mxu0 0.0
  %2060 = vmatprep.subr.mxu0 0.0
  %2061 = vmatpush1.msra.mxu0 0.0
  %2062 = vmatprep.subr.mxu0 0.0
  %2063 = vmatpush1.msra.mxu0 0.0
  %2064 = vmatprep.subr.mxu0 0.0
  %2065 = vmatpush1.msra.mxu0 0.0
  %2066 = vmatprep.subr.mxu0 0.0
  %2067 = vmatpush1.msra.mxu0 0.0
  %2068 = vmatprep.subr.mxu0 0.0
  %2069 = vmatpush1.msra.mxu0 0.0
  %2070 = vmatprep.subr.mxu0 0.0
  %2071 = vmatpush1.msra.mxu0 0.0
  %2072 = vmatprep.subr.mxu0 0.0
  %2073 = vmatpush1.msra.mxu0 0.0
  %2074 = vmatprep.subr.mxu0 0.0
  %2075 = vmatpush1.msra.mxu0 0.0
  %2076 = vmatprep.subr.mxu0 0.0
  %2077 = vmatpush1.msra.mxu0 0.0
  %2078 = vmatprep.subr.mxu0 0.0
  %2079 = vmatpush1.msra.mxu0 0.0
  %2080 = vmatprep.subr.mxu0 0.0
  %2081 = vmatpush1.msra.mxu0 0.0
  %2082 = vmatprep.subr.mxu0 0.0
  %2083 = vmatpush1.msra.mxu0 0.0
  %2084 = vmatprep.subr.mxu0 0.0
  %2085 = vmatpush1.msra.mxu0 0.0
  %2086 = vmatprep.subr.mxu0 0.0
  %2087 = vmatpush1.msra.mxu0 0.0
  %2088 = vmatprep.subr.mxu0 0.0
  %2089 = vmatpush1.msra.mxu0 0.0
  %2090 = vmatprep.mubr.f32.mxu0 0.0
  %2091 = vmatmul.mubr.f32.gmra.mrb[0].mxu0 %v2024
  %v2092 = vpop.f32.mrb[0].mxu0
  %v2093 = vadd.f32 %v2022, %v2092
  %v2094 = vpop.f32.mrb[0].mxu0
  %2095 = vdwg.mxu0
  %v2096 = vxor.u32 %v2093, 2147483648
  %v2097 = vmul.f32 %v2096, 1.442695
  %v2098 = vpow.pop %v2097
  %v2099 = vadd.f32 %v2098, 1.0
  %v2100 = vrcp.pop %v2099
  %v2101 = vmul.f32 1.0, %v2100
  %v2102 = vtanh.pop %v2093
  %v2103 = vmul.f32 %v2101, %v1820
  %2105 = vrot.lane.b32.xlu0 %v2102, 64
  %v2106 = vpop.permute.xlu0 %2105
  %v2108 = vmul.f32 %v2101, %v2106
  %2110 = vrot.lane.b32.xlu0 %v2108, 32
  %v2111 = vpop.permute.xlu0 %2110
  %v2113 = vadd.f32 %v2103, %v2111
  %v2114 = vtanh.pop %v2113
  %2116 = vrot.lane.b32.xlu0 %v2114, 64
  %v2117 = vpop.permute.xlu0 %2116
  %v2119 = vmul.f32 %v2101, %v2117
  %2121 = vrot.lane.b32.xlu0 %v2119, 32
  %v2122 = vpop.permute.xlu0 %2121
  %2124 = vst.msk [vmem:[#allocation2 + $0x6] sm:$0x1] %vm363, %v2122
  %2125 = vrot.lane.b32.xlu0 %v1933, 64
  %v2126 = vpop.permute.xlu0 %2125
  %2128 = vst.msk [vmem:[%s9 + $0x6] sm:$0x1] %vm368, %v2126
  %2130 = vrot.lane.b32.xlu0 %v2113, 80
  %v2131 = vpop.permute.xlu0 %2130
  %2133 = vst.msk [vmem:[%s9 + $0x6] sm:$0x1] %vm374, %v2131
  %2134 = vst.msk [vmem:[%s9 + $0xe] sm:$0x1] %vm159, %v2131
  %s2135 = sld [smem:[#allocation4 + $0x7]]
  %s2136 = scalar_lea.vmem %s1, %s2135
  %v2137 = vld [vmem:[%s2136] sm:$0x1]
  %2138 = vrot.lane.b32.xlu0 %v2119, 64
  %v2139 = vpop.permute.xlu0 %2138
  %v2141 = vsel %vm71, %v2137, %v2139
  %v2143 = vsel %vm84, %v2141, 0
  %2145 = vmatprep.subr.mxu0 %v37
  %2146 = vmatpush1.msra.mxu0 %v36
  %2147 = vmatprep.subr.mxu0 %v39
  %2148 = vmatpush1.msra.mxu0 %v38
  %2149 = vmatprep.subr.mxu0 %v41
  %2150 = vmatpush1.msra.mxu0 %v40
  %2151 = vmatprep.subr.mxu0 %v43
  %2152 = vmatpush1.msra.mxu0 %v42
  %2153 = vmatprep.subr.mxu0 %v45
  %2154 = vmatpush1.msra.mxu0 %v44
  %2155 = vmatprep.subr.mxu0 %v47
  %2156 = vmatpush1.msra.mxu0 %v46
  %2157 = vmatprep.subr.mxu0 %v49
  %2158 = vmatpush1.msra.mxu0 %v48
  %2159 = vmatprep.subr.mxu0 %v51
  %2160 = vmatpush1.msra.mxu0 %v50
  %2161 = vmatprep.subr.mxu0 0.0
  %2162 = vmatpush1.msra.mxu0 0.0
  %2163 = vmatprep.subr.mxu0 0.0
  %2164 = vmatpush1.msra.mxu0 0.0
  %2165 = vmatprep.subr.mxu0 0.0
  %2166 = vmatpush1.msra.mxu0 0.0
  %2167 = vmatprep.subr.mxu0 0.0
  %2168 = vmatpush1.msra.mxu0 0.0
  %2169 = vmatprep.subr.mxu0 0.0
  %2170 = vmatpush1.msra.mxu0 0.0
  %2171 = vmatprep.subr.mxu0 0.0
  %2172 = vmatpush1.msra.mxu0 0.0
  %2173 = vmatprep.subr.mxu0 0.0
  %2174 = vmatpush1.msra.mxu0 0.0
  %2175 = vmatprep.subr.mxu0 0.0
  %2176 = vmatpush1.msra.mxu0 0.0
  %2177 = vmatprep.subr.mxu0 0.0
  %2178 = vmatpush1.msra.mxu0 0.0
  %2179 = vmatprep.subr.mxu0 0.0
  %2180 = vmatpush1.msra.mxu0 0.0
  %2181 = vmatprep.subr.mxu0 0.0
  %2182 = vmatpush1.msra.mxu0 0.0
  %2183 = vmatprep.subr.mxu0 0.0
  %2184 = vmatpush1.msra.mxu0 0.0
  %2185 = vmatprep.subr.mxu0 0.0
  %2186 = vmatpush1.msra.mxu0 0.0
  %2187 = vmatprep.subr.mxu0 0.0
  %2188 = vmatpush1.msra.mxu0 0.0
  %2189 = vmatprep.subr.mxu0 0.0
  %2190 = vmatpush1.msra.mxu0 0.0
  %2191 = vmatprep.subr.mxu0 0.0
  %2192 = vmatpush1.msra.mxu0 0.0
  %2193 = vmatprep.subr.mxu0 0.0
  %2194 = vmatpush1.msra.mxu0 0.0
  %2195 = vmatprep.subr.mxu0 0.0
  %2196 = vmatpush1.msra.mxu0 0.0
  %2197 = vmatprep.subr.mxu0 0.0
  %2198 = vmatpush1.msra.mxu0 0.0
  %2199 = vmatprep.subr.mxu0 0.0
  %2200 = vmatpush1.msra.mxu0 0.0
  %2201 = vmatprep.subr.mxu0 0.0
  %2202 = vmatpush1.msra.mxu0 0.0
  %2203 = vmatprep.subr.mxu0 0.0
  %2204 = vmatpush1.msra.mxu0 0.0
  %2205 = vmatprep.subr.mxu0 0.0
  %2206 = vmatpush1.msra.mxu0 0.0
  %2207 = vmatprep.subr.mxu0 0.0
  %2208 = vmatpush1.msra.mxu0 0.0
  %2209 = vmatprep.mubr.f32.mxu0 0.0
  %2210 = vmatmul.mubr.f32.gmra.mrb[0].mxu0 %v2143
  %v2211 = vpop.f32.mrb[0].mxu0
  %v2212 = vadd.f32 %v77, %v2211
  %v2213 = vpop.f32.mrb[0].mxu0
  %v2214 = vadd.f32 %v81, %v2213
  %2215 = vdwg.mxu0
  %v2216 = vsel %vm159, %v2212, -inf
  %2217 = vmax.xlane.f32.xlu0 %v2216
  %v2218 = vpop.xlane.xlu0 %2217
  %v2219 = vsub.f32 %v2212, %v2218
  %v2220 = vmul.f32 %v2219, 1.442695
  %v2221 = vpow.pop %v2220
  %v2222 = vsel %vm159, %v2221, 0.0
  %2223 = vadd.xlane.f32.xlu0 %v2222
  %v2224 = vpop.xlane.xlu0 %2223
  %v2225 = vrcp.pop %v2224
  %v2226 = vmul.f32 %v2221, %v2225
  %v2228 = vsel %vm171, %v2226, 0
  %2230 = vmatprep.subr.mxu0 0.0
  %2231 = vmatpush1.msra.mxu0 %v57
  %2232 = vmatprep.subr.mxu0 0.0
  %2233 = vmatpush1.msra.mxu0 %v58
  %2234 = vmatprep.subr.mxu0 0.0
  %2235 = vmatpush1.msra.mxu0 0.0
  %2236 = vmatprep.subr.mxu0 0.0
  %2237 = vmatpush1.msra.mxu0 0.0
  %2238 = vmatprep.subr.mxu0 0.0
  %2239 = vmatpush1.msra.mxu0 0.0
  %2240 = vmatprep.subr.mxu0 0.0
  %2241 = vmatpush1.msra.mxu0 0.0
  %2242 = vmatprep.subr.mxu0 0.0
  %2243 = vmatpush1.msra.mxu0 0.0
  %2244 = vmatprep.subr.mxu0 0.0
  %2245 = vmatpush1.msra.mxu0 0.0
  %2246 = vmatprep.subr.mxu0 0.0
  %2247 = vmatpush1.msra.mxu0 0.0
  %2248 = vmatprep.subr.mxu0 0.0
  %2249 = vmatpush1.msra.mxu0 0.0
  %2250 = vmatprep.subr.mxu0 0.0
  %2251 = vmatpush1.msra.mxu0 0.0
  %2252 = vmatprep.subr.mxu0 0.0
  %2253 = vmatpush1.msra.mxu0 0.0
  %2254 = vmatprep.subr.mxu0 0.0
  %2255 = vmatpush1.msra.mxu0 0.0
  %2256 = vmatprep.subr.mxu0 0.0
  %2257 = vmatpush1.msra.mxu0 0.0
  %2258 = vmatprep.subr.mxu0 0.0
  %2259 = vmatpush1.msra.mxu0 0.0
  %2260 = vmatprep.subr.mxu0 0.0
  %2261 = vmatpush1.msra.mxu0 0.0
  %2262 = vmatprep.subr.mxu0 0.0
  %2263 = vmatpush1.msra.mxu0 0.0
  %2264 = vmatprep.subr.mxu0 0.0
  %2265 = vmatpush1.msra.mxu0 0.0
  %2266 = vmatprep.subr.mxu0 0.0
  %2267 = vmatpush1.msra.mxu0 0.0
  %2268 = vmatprep.subr.mxu0 0.0
  %2269 = vmatpush1.msra.mxu0 0.0
  %2270 = vmatprep.subr.mxu0 0.0
  %2271 = vmatpush1.msra.mxu0 0.0
  %2272 = vmatprep.subr.mxu0 0.0
  %2273 = vmatpush1.msra.mxu0 0.0
  %2274 = vmatprep.subr.mxu0 0.0
  %2275 = vmatpush1.msra.mxu0 0.0
  %2276 = vmatprep.subr.mxu0 0.0
  %2277 = vmatpush1.msra.mxu0 0.0
  %2278 = vmatprep.subr.mxu0 0.0
  %2279 = vmatpush1.msra.mxu0 0.0
  %2280 = vmatprep.subr.mxu0 0.0
  %2281 = vmatpush1.msra.mxu0 0.0
  %2282 = vmatprep.subr.mxu0 0.0
  %2283 = vmatpush1.msra.mxu0 0.0
  %2284 = vmatprep.subr.mxu0 0.0
  %2285 = vmatpush1.msra.mxu0 0.0
  %2286 = vmatprep.subr.mxu0 0.0
  %2287 = vmatpush1.msra.mxu0 0.0
  %2288 = vmatprep.subr.mxu0 0.0
  %2289 = vmatpush1.msra.mxu0 0.0
  %2290 = vmatprep.subr.mxu0 0.0
  %2291 = vmatpush1.msra.mxu0 0.0
  %2292 = vmatprep.subr.mxu0 0.0
  %2293 = vmatpush1.msra.mxu0 0.0
  %2294 = vmatprep.mubr.f32.mxu0 0.0
  %2295 = vmatmul.mubr.f32.gmra.mrb[0].mxu0 %v2228
  %v2296 = vpop.f32.mrb[0].mxu0
  %v2297 = vadd.f32 0.0, %v2296
  %v2298 = vpop.f32.mrb[0].mxu0
  %2299 = vdwg.mxu0
  %2301 = vrot.lane.b32.xlu0 %v2297, 16
  %v2302 = vpop.permute.xlu0 %2301
  %v2304 = vadd.f32 %v2212, %v2302
  %v2305 = vmax.f32 %v2304, 0.0
  %2307 = vrot.lane.b32.xlu0 %v2305, 112
  %v2308 = vpop.permute.xlu0 %2307
  %2311 = vrot.lane.b32.xlu0 %v2212, 80
  %v2312 = vpop.permute.xlu0 %2311
  %2313 = vrot.lane.b32.xlu0 %v2214, 80
  %v2314 = vpop.permute.xlu0 %2313
  %v2315 = vsel %vm260, %v2312, %v2314
  %v2317 = vsel %vm71, %v2308, 0
  %2319 = vmatprep.subr.mxu0 0.0
  %2320 = vmatpush1.msra.mxu0 %v53
  %2321 = vmatprep.subr.mxu0 0.0
  %2322 = vmatpush1.msra.mxu0 %v54
  %2323 = vmatprep.subr.mxu0 0.0
  %2324 = vmatpush1.msra.mxu0 %v55
  %2325 = vmatprep.subr.mxu0 0.0
  %2326 = vmatpush1.msra.mxu0 %v56
  %2327 = vmatprep.subr.mxu0 0.0
  %2328 = vmatpush1.msra.mxu0 0.0
  %2329 = vmatprep.subr.mxu0 0.0
  %2330 = vmatpush1.msra.mxu0 0.0
  %2331 = vmatprep.subr.mxu0 0.0
  %2332 = vmatpush1.msra.mxu0 0.0
  %2333 = vmatprep.subr.mxu0 0.0
  %2334 = vmatpush1.msra.mxu0 0.0
  %2335 = vmatprep.subr.mxu0 0.0
  %2336 = vmatpush1.msra.mxu0 0.0
  %2337 = vmatprep.subr.mxu0 0.0
  %2338 = vmatpush1.msra.mxu0 0.0
  %2339 = vmatprep.subr.mxu0 0.0
  %2340 = vmatpush1.msra.mxu0 0.0
  %2341 = vmatprep.subr.mxu0 0.0
  %2342 = vmatpush1.msra.mxu0 0.0
  %2343 = vmatprep.subr.mxu0 0.0
  %2344 = vmatpush1.msra.mxu0 0.0
  %2345 = vmatprep.subr.mxu0 0.0
  %2346 = vmatpush1.msra.mxu0 0.0
  %2347 = vmatprep.subr.mxu0 0.0
  %2348 = vmatpush1.msra.mxu0 0.0
  %2349 = vmatprep.subr.mxu0 0.0
  %2350 = vmatpush1.msra.mxu0 0.0
  %2351 = vmatprep.subr.mxu0 0.0
  %2352 = vmatpush1.msra.mxu0 0.0
  %2353 = vmatprep.subr.mxu0 0.0
  %2354 = vmatpush1.msra.mxu0 0.0
  %2355 = vmatprep.subr.mxu0 0.0
  %2356 = vmatpush1.msra.mxu0 0.0
  %2357 = vmatprep.subr.mxu0 0.0
  %2358 = vmatpush1.msra.mxu0 0.0
  %2359 = vmatprep.subr.mxu0 0.0
  %2360 = vmatpush1.msra.mxu0 0.0
  %2361 = vmatprep.subr.mxu0 0.0
  %2362 = vmatpush1.msra.mxu0 0.0
  %2363 = vmatprep.subr.mxu0 0.0
  %2364 = vmatpush1.msra.mxu0 0.0
  %2365 = vmatprep.subr.mxu0 0.0
  %2366 = vmatpush1.msra.mxu0 0.0
  %2367 = vmatprep.subr.mxu0 0.0
  %2368 = vmatpush1.msra.mxu0 0.0
  %2369 = vmatprep.subr.mxu0 0.0
  %2370 = vmatpush1.msra.mxu0 0.0
  %2371 = vmatprep.subr.mxu0 0.0
  %2372 = vmatpush1.msra.mxu0 0.0
  %2373 = vmatprep.subr.mxu0 0.0
  %2374 = vmatpush1.msra.mxu0 0.0
  %2375 = vmatprep.subr.mxu0 0.0
  %2376 = vmatpush1.msra.mxu0 0.0
  %2377 = vmatprep.subr.mxu0 0.0
  %2378 = vmatpush1.msra.mxu0 0.0
  %2379 = vmatprep.subr.mxu0 0.0
  %2380 = vmatpush1.msra.mxu0 0.0
  %2381 = vmatprep.subr.mxu0 0.0
  %2382 = vmatpush1.msra.mxu0 0.0
  %2383 = vmatprep.mubr.f32.mxu0 0.0
  %2384 = vmatmul.mubr.f32.gmra.mrb[0].mxu0 %v2317
  %v2385 = vpop.f32.mrb[0].mxu0
  %v2386 = vadd.f32 %v2315, %v2385
  %v2387 = vpop.f32.mrb[0].mxu0
  %2388 = vdwg.mxu0
  %v2389 = vxor.u32 %v2386, 2147483648
  %v2390 = vmul.f32 %v2389, 1.442695
  %v2391 = vpow.pop %v2390
  %v2392 = vadd.f32 %v2391, 1.0
  %v2393 = vrcp.pop %v2392
  %v2394 = vmul.f32 1.0, %v2393
  %v2395 = vtanh.pop %v2386
  %v2396 = vmul.f32 %v2394, %v2113
  %2398 = vrot.lane.b32.xlu0 %v2395, 64
  %v2399 = vpop.permute.xlu0 %2398
  %v2401 = vmul.f32 %v2394, %v2399
  %2403 = vrot.lane.b32.xlu0 %v2401, 32
  %v2404 = vpop.permute.xlu0 %2403
  %v2406 = vadd.f32 %v2396, %v2404
  %v2407 = vtanh.pop %v2406
  %2409 = vrot.lane.b32.xlu0 %v2407, 64
  %v2410 = vpop.permute.xlu0 %2409
  %v2412 = vmul.f32 %v2394, %v2410
  %2414 = vrot.lane.b32.xlu0 %v2412, 32
  %v2415 = vpop.permute.xlu0 %2414
  %2417 = vst.msk [vmem:[#allocation2 + $0x7] sm:$0x1] %vm363, %v2415
  %2418 = vrot.lane.b32.xlu0 %v2226, 64
  %v2419 = vpop.permute.xlu0 %2418
  %2421 = vst.msk [vmem:[%s9 + $0x7] sm:$0x1] %vm368, %v2419
  %2423 = vrot.lane.b32.xlu0 %v2406, 80
  %v2424 = vpop.permute.xlu0 %2423
  %2426 = vst.msk [vmem:[%s9 + $0x7] sm:$0x1] %vm374, %v2424
  %2427 = vst.msk [vmem:[%s9 + $0xf] sm:$0x1] %vm159, %v2424
  %v2428 = vld [vmem:[#allocation2] sm:$0xff]
  %v2429 = vld [vmem:[%s6] sm:$0xff]
  %v2430 = vld [vmem:[%s6 + $0x8] sm:$0xff]
  %v2431 = vld [vmem:[%s6 + $0x10] sm:$0xff]
  %v2432 = vld [vmem:[%s6 + $0x18] sm:$0xff]
  %v2433 = vld [vmem:[%s8] sm:$0x1]
  %v2435 = vlaneseq
  %v2436 = vshrl.u32 %v2435, 7
  %v2437 = vsub.s32 0, %v2436
  %v2438 = vrot.slane %v2433, %v2437
  %v2441 = vsel %vm71, %v2428, 0
  %2443 = vmatprep.subr.mxu0 0.0
  %2444 = vmatpush1.msra.mxu0 %v2429
  %2445 = vmatprep.subr.mxu0 0.0
  %2446 = vmatpush1.msra.mxu0 %v2430
  %2447 = vmatprep.subr.mxu0 0.0
  %2448 = vmatpush1.msra.mxu0 %v2431
  %2449 = vmatprep.subr.mxu0 0.0
  %2450 = vmatpush1.msra.mxu0 %v2432
  %2451 = vmatprep.subr.mxu0 0.0
  %2452 = vmatpush1.msra.mxu0 0.0
  %2453 = vmatprep.subr.mxu0 0.0
  %2454 = vmatpush1.msra.mxu0 0.0
  %2455 = vmatprep.subr.mxu0 0.0
  %2456 = vmatpush1.msra.mxu0 0.0
  %2457 = vmatprep.subr.mxu0 0.0
  %2458 = vmatpush1.msra.mxu0 0.0
  %2459 = vmatprep.subr.mxu0 0.0
  %2460 = vmatpush1.msra.mxu0 0.0
  %2461 = vmatprep.subr.mxu0 0.0
  %2462 = vmatpush1.msra.mxu0 0.0
  %2463 = vmatprep.subr.mxu0 0.0
  %2464 = vmatpush1.msra.mxu0 0.0
  %2465 = vmatprep.subr.mxu0 0.0
  %2466 = vmatpush1.msra.mxu0 0.0
  %2467 = vmatprep.subr.mxu0 0.0
  %2468 = vmatpush1.msra.mxu0 0.0
  %2469 = vmatprep.subr.mxu0 0.0
  %2470 = vmatpush1.msra.mxu0 0.0
  %2471 = vmatprep.subr.mxu0 0.0
  %2472 = vmatpush1.msra.mxu0 0.0
  %2473 = vmatprep.subr.mxu0 0.0
  %2474 = vmatpush1.msra.mxu0 0.0
  %2475 = vmatprep.subr.mxu0 0.0
  %2476 = vmatpush1.msra.mxu0 0.0
  %2477 = vmatprep.subr.mxu0 0.0
  %2478 = vmatpush1.msra.mxu0 0.0
  %2479 = vmatprep.subr.mxu0 0.0
  %2480 = vmatpush1.msra.mxu0 0.0
  %2481 = vmatprep.subr.mxu0 0.0
  %2482 = vmatpush1.msra.mxu0 0.0
  %2483 = vmatprep.subr.mxu0 0.0
  %2484 = vmatpush1.msra.mxu0 0.0
  %2485 = vmatprep.subr.mxu0 0.0
  %2486 = vmatpush1.msra.mxu0 0.0
  %2487 = vmatprep.subr.mxu0 0.0
  %2488 = vmatpush1.msra.mxu0 0.0
  %2489 = vmatprep.subr.mxu0 0.0
  %2490 = vmatpush1.msra.mxu0 0.0
  %2491 = vmatprep.subr.mxu0 0.0
  %2492 = vmatpush1.msra.mxu0 0.0
  %2493 = vmatprep.subr.mxu0 0.0
  %2494 = vmatpush1.msra.mxu0 0.0
  %2495 = vmatprep.subr.mxu0 0.0
  %2496 = vmatpush1.msra.mxu0 0.0
  %2497 = vmatprep.subr.mxu0 0.0
  %2498 = vmatpush1.msra.mxu0 0.0
  %2499 = vmatprep.subr.mxu0 0.0
  %2500 = vmatpush1.msra.mxu0 0.0
  %2501 = vmatprep.subr.mxu0 0.0
  %2502 = vmatpush1.msra.mxu0 0.0
  %2503 = vmatprep.subr.mxu0 0.0
  %2504 = vmatpush1.msra.mxu0 0.0
  %2505 = vmatprep.subr.mxu0 0.0
  %2506 = vmatpush1.msra.mxu0 0.0
  %2507 = vmatprep.mubr.f32.mxu0 0.0
  %2508 = vmatmul.mubr.f32.gmra.mrb[0].mxu0 %v2441
  %v2509 = vpop.f32.mrb[0].mxu0
  %v2510 = vadd.f32 %v2438, %v2509
  %v2511 = vpop.f32.mrb[0].mxu0
  %2512 = vdwg.mxu0
  %v2513 = vsel %vm84, %v2510, -inf
  %2514 = vmax.xlane.f32.xlu0 %v2513
  %v2515 = vpop.xlane.xlu0 %2514
  %v2516 = vsub.f32 %v2510, %v2515
  %v2517 = vmul.f32 %v2516, 1.442695
  %v2518 = vpow.pop %v2517
  %v2519 = vsel %vm84, %v2518, 0.0
  %2520 = vadd.xlane.f32.xlu0 %v2519
  %v2521 = vpop.xlane.xlu0 %2520
  %v2522 = vlog2.pop %v2521
  %v2523 = vmul.f32 %v2522, 0.6931472
  %v2524 = vsub.f32 %v2516, %v2523
  %2525 = vst.msk [vmem:[%s9] sm:$0xff] %vm84, %v2524
  %2526 = vrot.lane.b32.xlu0 %v2428, 80
  %v2527 = vpop.permute.xlu0 %2526
  %vm2529 = vcmask 917120
  %2530 = vst.msk [vmem:[%s9] sm:$0xff] %vm2529, %v2527
  %vm2531 = vcmask 1047680
  %2532 = vst.msk [vmem:[%s9 + $0x8] sm:$0xff] %vm2531, 0.0
  // Predicated region
  $region34: #{attn_decoder_decode.1} parent=0 // pred_check
    _
  $region35: #{attn_decoder_decode.1} parent=0 // pred_check_branch
    %2534 = sbr.rel (0) target = $region37
  $region36: #{attn_decoder_decode.1} parent=0 // pred_region
    _
  $region37: #{attn_decoder_decode.1} parent=0 // pred_fallthru
    _
  // Predicated region
  $region38: #{attn_decoder_decode.1} parent=0 // pred_check
    _
  $region39: #{attn_decoder_decode.1} parent=0 // pred_check_branch
    %2536 = sbr.rel (0) target = $region41
  $region40: #{attn_decoder_decode.1} parent=0 // pred_region
    _
  $region41: #{attn_decoder_decode.1} parent=0 // pred_fallthru
    _

</llo_original>
